<compile_context>
chip_gen: v7x
topology: tpu7x:2x2x1
jax: 0.10.0
libtpu: 0.0.40
codegen_flags: <defaults>
</compile_context>

<pallas_src>
import functools

import jax
import jax.numpy as jnp
from jax.experimental import pallas as pl
from jax.experimental.pallas import tpu as pltpu


def _vmem_budget_bytes():
    """Per-generation VMEM budget: ~3/4 of physical, never the whole thing."""
    cap = None
    try:
        cap = getattr(pltpu.get_tpu_info(), "vmem_capacity_bytes", None)
    except Exception:                      # best-effort hardware query
        cap = None
    if not cap:
        cap = 64 * 1024 * 1024             # conservative default (v7x physical per-TC)
    # ~48 MiB on v7x (64 MiB physical), ~96 MiB on v5e/v6e (128 MiB physical).
    return min(int(cap * 3 // 4), 100 * 1024 * 1024)


def _tile_footprint_bytes(TH, W, C, Cmid, in_bytes):
    """Rough per-grid-step VMEM footprint (incl. double-buffered streams)."""
    tile = TH * W * C * in_bytes
    halo_row = W * C * in_bytes
    streams = 2 * (3 * tile + 2 * halo_row)           # x/enc/out tiles + 2 halo rows, x2 buffers
    hp = (TH + 2) * (W + 2) * Cmid * in_bytes         # padded h1 scratch
    carry = W * Cmid * 4
    work = TH * W * (2 * Cmid + C) * 4                # h1 / acc / out f32 temporaries
    weights = 2 * (2 * C * Cmid + 9 * Cmid * Cmid + Cmid * C + 2 * Cmid + C) * 4
    return streams + hp + carry + work + weights


def _pick_row_tile(H2, W, C, Cmid, dtype, budget):
    """Largest row tile dividing the left-half height whose footprint fits."""
    in_bytes = jnp.dtype(dtype).itemsize
    best = 1
    for t in range(1, H2 + 1):
        if H2 % t == 0 and _tile_footprint_bytes(t, W, C, Cmid, in_bytes) <= budget:
            best = t
    return best


def _skip_conn_kernel(x_ref, enc_ref, xb_ref, eb_ref,
                      w1a_ref, w1b_ref, b1_ref, w2_ref, b2_ref, w3_ref, b3_ref,
                      out_ref, hp_ref, carry_ref, *, TH, W, C, Cmid, n_left):
    i = pl.program_id(1)
    HW = TH * W
    f32 = jnp.float32
    hp_dtype = hp_ref.dtype

    lx = x_ref[0].reshape(HW, C)        # decoder rows (left half of x)
    enc = enc_ref[0].reshape(HW, C)     # encoder shortcut rows
    w1a = w1a_ref[...]
    w1b = w1b_ref[...]
    b1 = b1_ref[...]

    # ---- stage 1: 1x1 conv over the channel concat == two split-weight dots ----
    h1 = (jnp.dot(lx, w1a, preferred_element_type=f32)
          + jnp.dot(enc, w1b, preferred_element_type=f32) + b1)

    # Top 3x3 halo row: carried from the previous row tile (zero at the top edge).
    @pl.when(i == 0)
    def _zero_carry():
        carry_ref[...] = jnp.zeros_like(carry_ref)
    top = carry_ref[...]                                    # (W, Cmid) f32

    # Bottom 3x3 halo row: recomputed from the pre-gathered next-row inputs,
    # zeroed at the true bottom boundary of the left half.
    xb = xb_ref[...].reshape(W, C)
    eb = eb_ref[...].reshape(W, C)
    h_bot = (jnp.dot(xb, w1a, preferred_element_type=f32)
             + jnp.dot(eb, w1b, preferred_element_type=f32) + b1)
    bot = jnp.where(i < n_left - 1, h_bot, 0.0)

    # Carry this tile's last h1 row for the next tile's top halo.
    carry_ref[...] = h1[HW - W:, :]

    # ---- zero-padded scratch holding h1 + halos for the 3x3 stage ----
    zcol = jnp.zeros((TH + 2, 1, Cmid), hp_dtype)
    hp_ref[:, 0:1, :] = zcol                                # left zero column
    hp_ref[:, W + 1:W + 2, :] = zcol                        # right zero column
    hp_ref[0:1, 1:W + 1, :] = top.astype(hp_dtype).reshape(1, W, Cmid)
    hp_ref[1:TH + 1, 1:W + 1, :] = h1.astype(hp_dtype).reshape(TH, W, Cmid)
    hp_ref[TH + 1:TH + 2, 1:W + 1, :] = bot.astype(hp_dtype).reshape(1, W, Cmid)

    # ---- stage 2: 3x3 conv as 9 accumulating dots (K = Cmid); no im2col ----
    acc = jnp.zeros((HW, Cmid), f32)
    t = 0
    for kh in range(3):
        for kw in range(3):
            tap = hp_ref[kh:kh + TH, kw:kw + W, :].reshape(HW, Cmid)
            acc = acc + jnp.dot(tap, w2_ref[t], preferred_element_type=f32)
            t += 1
    acc = acc + b2_ref[...]

    # ---- stage 3: 1x1 conv back to C + fused residual add, single store ----
    h3 = jnp.dot(acc, w3_ref[...], preferred_element_type=f32) + b3_ref[...]
    out = h3 + enc.astype(f32)
    out_ref[0] = out.reshape(TH, W, C).astype(out_ref.dtype)


def skip_horizontal_connection_nhwc(x_nhwc, enc_nhwc, params, *, row_tile=None):
    """x_nhwc: (N, H, W, C); enc_nhwc: (N, H2, W, C) with H2 = ceil(H/2).
    Returns the stitched (N, H, W, C) output.  x_nhwc is aliased to the output
    (in-place stitching of the untouched right half), so do not reuse it."""
    N, H, W, C = x_nhwc.shape
    H2 = enc_nhwc.shape[1]
    Cmid = params["w1a"].shape[1]
    assert H > H2 >= 1, "left half must be non-empty and smaller than H"
    assert params["w1a"].shape[0] == C and params["w1b"].shape[0] == C

    budget = _vmem_budget_bytes()
    TH = row_tile if row_tile is not None else _pick_row_tile(
        H2, W, C, Cmid, x_nhwc.dtype, budget)
    assert H2 % TH == 0, "row tile must divide the left-half height"
    n_left = H2 // TH

    # Next-row halo inputs, pre-gathered with tiny strided slices so x appears
    # exactly once in the pallas_call (as the aliased operand) and no in-kernel
    # read overlaps a region another grid step writes in place.
    xb_all = x_nhwc[:, TH:H2 + 1:TH]                          # (N, n_left, W, C)
    eb_all = jnp.concatenate(
        [enc_nhwc[:, TH::TH], jnp.zeros((N, 1, W, C), enc_nhwc.dtype)],
        axis=1)[:, :n_left]                                   # (N, n_left, W, C)
    assert xb_all.shape[1] == n_left and eb_all.shape[1] == n_left

    kernel = functools.partial(_skip_conn_kernel,
                               TH=TH, W=W, C=C, Cmid=Cmid, n_left=n_left)

    tile_spec = pl.BlockSpec((1, TH, W, C), lambda n, i: (n, i, 0, 0))
    halo_spec = pl.BlockSpec((1, 1, W, C), lambda n, i: (n, i, 0, 0))

    def full_spec(arr):
        nd = arr.ndim
        return pl.BlockSpec(arr.shape, lambda n, i, _nd=nd: (0,) * _nd)

    flops = 2 * N * H2 * W * (2 * C * Cmid + 9 * Cmid * Cmid + Cmid * C)
    itemsize = jnp.dtype(x_nhwc.dtype).itemsize
    bytes_accessed = itemsize * (3 * N * H2 * W * C + 2 * N * n_left * W * C)
    bytes_accessed += 4 * (2 * C * Cmid + 9 * Cmid * Cmid + Cmid * C + 2 * Cmid + C)

    out = pl.pallas_call(
        kernel,
        out_shape=jax.ShapeDtypeStruct((N, H, W, C), x_nhwc.dtype),
        grid=(N, n_left),
        in_specs=[
            tile_spec,                 # x (aliased to the output)
            tile_spec,                 # encoder shortcut
            halo_spec, halo_spec,      # next-row halo inputs (x / enc)
            full_spec(params["w1a"]), full_spec(params["w1b"]), full_spec(params["b1"]),
            full_spec(params["w2"]), full_spec(params["b2"]),
            full_spec(params["w3"]), full_spec(params["b3"]),
        ],
        out_specs=pl.BlockSpec((1, TH, W, C), lambda n, i: (n, i, 0, 0)),
        scratch_shapes=[pltpu.VMEM((TH + 2, W + 2, Cmid), x_nhwc.dtype),
                        pltpu.VMEM((W, Cmid), jnp.float32)],
        input_output_aliases={0: 0},   # right-half rows of x stay in place
        cost_estimate=pl.CostEstimate(flops=flops, transcendentals=0,
                                      bytes_accessed=int(bytes_accessed)),
        compiler_params=pltpu.CompilerParams(
            # The row axis carries the top-halo h1 row, so it must stay
            # "arbitrary"; the batch axis is what megacore (v7x) splits.
            dimension_semantics=("parallel", "arbitrary"),
            vmem_limit_bytes=budget),
    )(x_nhwc, enc_nhwc, xb_all, eb_all,
      params["w1a"], params["w1b"], params["b1"],
      params["w2"], params["b2"], params["w3"], params["b3"])
    return out


def skip_horizontal_connection(x, left_shortcut, params, *, row_tile=None):
    """PyTorch-layout (NCHW) adapter around the NHWC-native kernel.  NHWC-native
    models should call skip_horizontal_connection_nhwc directly and skip the
    relayouts; the transposed x here is a jit intermediate, so the in-place
    aliasing never touches the caller's NCHW buffer."""
    x_nhwc = jnp.transpose(x, (0, 2, 3, 1))
    enc_nhwc = jnp.transpose(left_shortcut, (0, 2, 3, 1))
    out_nhwc = skip_horizontal_connection_nhwc(x_nhwc, enc_nhwc, params,
                                               row_tile=row_tile)
    return jnp.transpose(out_nhwc, (0, 3, 1, 2))


def _ref_forward(x, enc, oihw):
    """Pure-JAX NCHW reference mirroring the PyTorch module."""
    H2 = enc.shape[2]
    left, right = x[:, :, :H2, :], x[:, :, H2:, :]

    def conv(h, w, b, pad):
        y = jax.lax.conv_general_dilated(
            h, w, window_strides=(1, 1), padding=[(pad, pad), (pad, pad)],
            dimension_numbers=("NCHW", "OIHW", "NCHW"))
        return y + b[None, :, None, None]

    h = jnp.concatenate([left, enc], axis=1)
    h = conv(h, oihw["w1"], oihw["b1"], 0)
    h = conv(h, oihw["w2"], oihw["b2"], 1)
    h = conv(h, oihw["w3"], oihw["b3"], 0)
    h = h + enc
    return jnp.concatenate([h, right], axis=2)


if __name__ == "__main__":
    N, C, H, W = 2, 4, 16, 16
    H2 = (H + 1) // 2
    Cmid = C // 2

    key = jax.random.PRNGKey(0)
    kx, ks, k1, k2, k3, k4, k5, k6 = jax.random.split(key, 8)

    x = jax.random.normal(kx, (N, C, H, W), jnp.float32)
    left_shortcut = jax.random.normal(ks, (N, C, H2, W), jnp.float32)

    # Deterministic synthetic parameters (PyTorch Conv2d weight layout = OIHW).
    w1_oihw = 0.1 * jax.random.normal(k1, (Cmid, 2 * C, 1, 1), jnp.float32)
    b1 = 0.1 * jax.random.normal(k2, (Cmid,), jnp.float32)
    w2_oihw = 0.1 * jax.random.normal(k3, (Cmid, Cmid, 3, 3), jnp.float32)
    b2 = 0.1 * jax.random.normal(k4, (Cmid,), jnp.float32)
    w3_oihw = 0.1 * jax.random.normal(k5, (C, Cmid, 1, 1), jnp.float32)
    b3 = 0.1 * jax.random.normal(k6, (C,), jnp.float32)

    # Kernel-friendly parameter forms (w1 pre-split => no in-kernel concat).
    w1_full = jnp.transpose(w1_oihw[:, :, 0, 0], (1, 0))                  # (2C, Cmid)
    params = {
        "w1a": w1_full[:C],                                               # decoder half
        "w1b": w1_full[C:],                                               # encoder half
        "b1": b1.reshape(1, Cmid),
        "w2": jnp.transpose(w2_oihw, (2, 3, 1, 0)).reshape(9, Cmid, Cmid),  # per-tap (Cin, Cout)
        "b2": b2.reshape(1, Cmid),
        "w3": jnp.transpose(w3_oihw[:, :, 0, 0], (1, 0)),                 # (Cmid, C)
        "b3": b3.reshape(1, C),
    }

    ref = _ref_forward(x, left_shortcut,
                       {"w1": w1_oihw, "b1": b1, "w2": w2_oihw, "b2": b2,
                        "w3": w3_oihw, "b3": b3})

    run = jax.jit(skip_horizontal_connection, static_argnames=("row_tile",))

    # row_tile=None: auto tile (single left tile here);
    # row_tile=2: 4 row tiles -> exercises the carried top halo + bottom halo paths.
    for rt in (None, 2):
        out = jax.block_until_ready(run(x, left_shortcut, params, row_tile=rt))
        assert out.shape == (N, C, H, W)
        max_err = float(jnp.max(jnp.abs(out - ref)))
        if max_err > 2e-3:
            raise AssertionError(
                f"Pallas kernel mismatch vs reference (row_tile={rt}): max_err={max_err}")

    print("KERNEL_OK")
</pallas_src>

<mosaic_0001>
module attributes {stable_mosaic.version = 11 : i64} {
  func.func @_skip_conn_kernel(%arg0: i32, %arg1: i32, %arg2: memref<1x8x16x4xf32, #tpu.memory_space<vmem>>, %arg3: memref<1x8x16x4xf32, #tpu.memory_space<vmem>>, %arg4: memref<1x1x16x4xf32, #tpu.memory_space<vmem>>, %arg5: memref<1x1x16x4xf32, #tpu.memory_space<vmem>>, %arg6: memref<4x2xf32, #tpu.memory_space<vmem>>, %arg7: memref<4x2xf32, #tpu.memory_space<vmem>>, %arg8: memref<1x2xf32, #tpu.memory_space<vmem>>, %arg9: memref<9x2x2xf32, #tpu.memory_space<vmem>>, %arg10: memref<1x2xf32, #tpu.memory_space<vmem>>, %arg11: memref<2x4xf32, #tpu.memory_space<vmem>>, %arg12: memref<1x4xf32, #tpu.memory_space<vmem>>, %arg13: memref<1x8x16x4xf32, #tpu.memory_space<vmem>>, %arg14: memref<10x18x2xf32, #tpu.memory_space<vmem>>, %arg15: memref<16x2xf32, #tpu.memory_space<vmem>>) attributes {dimension_semantics = [#tpu.dimension_semantics<parallel>, #tpu.dimension_semantics<arbitrary>], iteration_bounds = array<i64: 2, 1>, scalar_prefetch = 0 : i64, scratch_operands = 2 : i64, tpu.core_type = #tpu.core_type<tc>, window_params = [{transform_indices = @transform_0, window_bounds = array<i64: 1, 8, 16, 4>}, {transform_indices = @transform_1, window_bounds = array<i64: 1, 8, 16, 4>}, {transform_indices = @transform_2, window_bounds = array<i64: 1, 1, 16, 4>}, {transform_indices = @transform_3, window_bounds = array<i64: 1, 1, 16, 4>}, {pipeline_mode = #tpu.pipeline_mode<synchronous>, transform_indices = @transform_4, window_bounds = array<i64: 4, 2>}, {pipeline_mode = #tpu.pipeline_mode<synchronous>, transform_indices = @transform_5, window_bounds = array<i64: 4, 2>}, {pipeline_mode = #tpu.pipeline_mode<synchronous>, transform_indices = @transform_6, window_bounds = array<i64: 1, 2>}, {pipeline_mode = #tpu.pipeline_mode<synchronous>, transform_indices = @transform_7, window_bounds = array<i64: 9, 2, 2>}, {pipeline_mode = #tpu.pipeline_mode<synchronous>, transform_indices = @transform_8, window_bounds = array<i64: 1, 2>}, {pipeline_mode = #tpu.pipeline_mode<synchronous>, transform_indices = @transform_9, window_bounds = array<i64: 2, 4>}, {pipeline_mode = #tpu.pipeline_mode<synchronous>, transform_indices = @transform_10, window_bounds = array<i64: 1, 4>}, {transform_indices = @transform_11, window_bounds = array<i64: 1, 8, 16, 4>}]} {
    %c0 = arith.constant 0 : index
    %c0_0 = arith.constant 0 : index
    %c0_1 = arith.constant 0 : index
    %c0_2 = arith.constant 0 : index
    %0 = vector.load %arg2[%c0, %c0_0, %c0_1, %c0_2] : memref<1x8x16x4xf32, #tpu.memory_space<vmem>>, vector<1x8x16x4xf32>
    %1 = vector.shape_cast %0 : vector<1x8x16x4xf32> to vector<8x16x4xf32>
    %2 = vector.shape_cast %1 : vector<8x16x4xf32> to vector<128x4xf32>
    %c0_3 = arith.constant 0 : index
    %c0_4 = arith.constant 0 : index
    %c0_5 = arith.constant 0 : index
    %c0_6 = arith.constant 0 : index
    %3 = vector.load %arg3[%c0_3, %c0_4, %c0_5, %c0_6] : memref<1x8x16x4xf32, #tpu.memory_space<vmem>>, vector<1x8x16x4xf32>
    %4 = vector.shape_cast %3 : vector<1x8x16x4xf32> to vector<8x16x4xf32>
    %5 = vector.shape_cast %4 : vector<8x16x4xf32> to vector<128x4xf32>
    %c0_7 = arith.constant 0 : index
    %c0_8 = arith.constant 0 : index
    %6 = vector.load %arg6[%c0_7, %c0_8] : memref<4x2xf32, #tpu.memory_space<vmem>>, vector<4x2xf32>
    %c0_9 = arith.constant 0 : index
    %c0_10 = arith.constant 0 : index
    %7 = vector.load %arg7[%c0_9, %c0_10] : memref<4x2xf32, #tpu.memory_space<vmem>>, vector<4x2xf32>
    %c0_11 = arith.constant 0 : index
    %c0_12 = arith.constant 0 : index
    %8 = vector.load %arg8[%c0_11, %c0_12] : memref<1x2xf32, #tpu.memory_space<vmem>>, vector<1x2xf32>
    %cst = arith.constant dense<0.000000e+00> : vector<128x2xf32>
    %9 = tpu.matmul %2, %6, %cst {dimension_numbers = #tpu.dot_dimension_numbers<[1], [0], [0], [1], [0, 0, 1, 1], [], []>} : vector<128x4xf32>, vector<4x2xf32>, vector<128x2xf32> -> vector<128x2xf32>
    %cst_13 = arith.constant dense<0.000000e+00> : vector<128x2xf32>
    %10 = tpu.matmul %5, %7, %cst_13 {dimension_numbers = #tpu.dot_dimension_numbers<[1], [0], [0], [1], [0, 0, 1, 1], [], []>} : vector<128x4xf32>, vector<4x2xf32>, vector<128x2xf32> -> vector<128x2xf32>
    %11 = arith.addf %9, %10 : vector<128x2xf32>
    %12 = vector.broadcast %8 : vector<1x2xf32> to vector<128x2xf32>
    %13 = arith.addf %11, %12 : vector<128x2xf32>
    %c0_i32 = arith.constant 0 : i32
    %14 = arith.cmpi eq, %arg1, %c0_i32 : i32
    %15 = arith.extui %14 : i1 to i32
    %c0_i32_14 = arith.constant 0 : i32
    %16 = arith.cmpi ne, %15, %c0_i32_14 : i32
    scf.if %16 {
      %cst_112 = arith.constant 0.000000e+00 : f32
      %109 = vector.broadcast %cst_112 : f32 to vector<16x2xf32>
      %c0_113 = arith.constant 0 : index
      %c0_114 = arith.constant 0 : index
      %110 = vector.load %arg15[%c0_113, %c0_114] : memref<16x2xf32, #tpu.memory_space<vmem>>, vector<16x2xf32>
      tpu.vector_store %arg15[%c0_113, %c0_114], %109 {strides = array<i32>} : memref<16x2xf32, #tpu.memory_space<vmem>>, vector<16x2xf32>,
    } else {
    }
    %c0_15 = arith.constant 0 : index
    %c0_16 = arith.constant 0 : index
    %17 = vector.load %arg15[%c0_15, %c0_16] : memref<16x2xf32, #tpu.memory_space<vmem>>, vector<16x2xf32>
    %c0_17 = arith.constant 0 : index
    %c0_18 = arith.constant 0 : index
    %c0_19 = arith.constant 0 : index
    %c0_20 = arith.constant 0 : index
    %18 = vector.load %arg4[%c0_17, %c0_18, %c0_19, %c0_20] : memref<1x1x16x4xf32, #tpu.memory_space<vmem>>, vector<1x1x16x4xf32>
    %19 = vector.shape_cast %18 : vector<1x1x16x4xf32> to vector<16x4xf32>
    %c0_21 = arith.constant 0 : index
    %c0_22 = arith.constant 0 : index
    %c0_23 = arith.constant 0 : index
    %c0_24 = arith.constant 0 : index
    %20 = vector.load %arg5[%c0_21, %c0_22, %c0_23, %c0_24] : memref<1x1x16x4xf32, #tpu.memory_space<vmem>>, vector<1x1x16x4xf32>
    %21 = vector.shape_cast %20 : vector<1x1x16x4xf32> to vector<16x4xf32>
    %cst_25 = arith.constant dense<0.000000e+00> : vector<16x2xf32>
    %22 = tpu.matmul %19, %6, %cst_25 {dimension_numbers = #tpu.dot_dimension_numbers<[1], [0], [0], [1], [0, 0, 1, 1], [], []>} : vector<16x4xf32>, vector<4x2xf32>, vector<16x2xf32> -> vector<16x2xf32>
    %cst_26 = arith.constant dense<0.000000e+00> : vector<16x2xf32>
    %23 = tpu.matmul %21, %7, %cst_26 {dimension_numbers = #tpu.dot_dimension_numbers<[1], [0], [0], [1], [0, 0, 1, 1], [], []>} : vector<16x4xf32>, vector<4x2xf32>, vector<16x2xf32> -> vector<16x2xf32>
    %24 = arith.addf %22, %23 : vector<16x2xf32>
    %25 = vector.broadcast %8 : vector<1x2xf32> to vector<16x2xf32>
    %26 = arith.addf %24, %25 : vector<16x2xf32>
    %c0_i32_27 = arith.constant 0 : i32
    %27 = arith.cmpi slt, %arg1, %c0_i32_27 : i32
    %cst_28 = arith.constant 0.000000e+00 : f32
    %28 = vector.broadcast %cst_28 : f32 to vector<16x2xf32>
    %29 = arith.select %27, %26, %28 : vector<16x2xf32>
    %30 = vector.extract_strided_slice %13 {offsets = [112, 0], sizes = [16, 2], strides = [1, 1]} : vector<128x2xf32> to vector<16x2xf32>
    %c0_29 = arith.constant 0 : index
    %c0_30 = arith.constant 0 : index
    %31 = vector.load %arg15[%c0_29, %c0_30] : memref<16x2xf32, #tpu.memory_space<vmem>>, vector<16x2xf32>
    tpu.vector_store %arg15[%c0_29, %c0_30], %30 {strides = array<i32>} : memref<16x2xf32, #tpu.memory_space<vmem>>, vector<16x2xf32>,
    %cst_31 = arith.constant 0.000000e+00 : f32
    %32 = vector.broadcast %cst_31 : f32 to vector<10x1x2xf32>
    %c0_32 = arith.constant 0 : index
    %c0_33 = arith.constant 0 : index
    %c0_34 = arith.constant 0 : index
    %33 = vector.load %arg14[%c0_32, %c0_33, %c0_34] : memref<10x18x2xf32, #tpu.memory_space<vmem>>, vector<10x1x2xf32>
    tpu.vector_store %arg14[%c0_32, %c0_33, %c0_34], %32 {strides = array<i32>} : memref<10x18x2xf32, #tpu.memory_space<vmem>>, vector<10x1x2xf32>,
    %c0_35 = arith.constant 0 : index
    %c17 = arith.constant 17 : index
    %c0_36 = arith.constant 0 : index
    %34 = vector.load %arg14[%c0_35, %c17, %c0_36] : memref<10x18x2xf32, #tpu.memory_space<vmem>>, vector<10x1x2xf32>
    tpu.vector_store %arg14[%c0_35, %c17, %c0_36], %32 {strides = array<i32>} : memref<10x18x2xf32, #tpu.memory_space<vmem>>, vector<10x1x2xf32>,
    %35 = vector.shape_cast %17 : vector<16x2xf32> to vector<1x16x2xf32>
    %c0_37 = arith.constant 0 : index
    %c1 = arith.constant 1 : index
    %c0_38 = arith.constant 0 : index
    %36 = vector.load %arg14[%c0_37, %c1, %c0_38] : memref<10x18x2xf32, #tpu.memory_space<vmem>>, vector<1x16x2xf32>
    tpu.vector_store %arg14[%c0_37, %c1, %c0_38], %35 {strides = array<i32>} : memref<10x18x2xf32, #tpu.memory_space<vmem>>, vector<1x16x2xf32>,
    %37 = vector.shape_cast %13 : vector<128x2xf32> to vector<8x16x2xf32>
    %c1_39 = arith.constant 1 : index
    %c1_40 = arith.constant 1 : index
    %c0_41 = arith.constant 0 : index
    %38 = vector.load %arg14[%c1_39, %c1_40, %c0_41] : memref<10x18x2xf32, #tpu.memory_space<vmem>>, vector<8x16x2xf32>
    tpu.vector_store %arg14[%c1_39, %c1_40, %c0_41], %37 {strides = array<i32>} : memref<10x18x2xf32, #tpu.memory_space<vmem>>, vector<8x16x2xf32>,
    %39 = vector.shape_cast %29 : vector<16x2xf32> to vector<1x16x2xf32>
    %c9 = arith.constant 9 : index
    %c1_42 = arith.constant 1 : index
    %c0_43 = arith.constant 0 : index
    %40 = vector.load %arg14[%c9, %c1_42, %c0_43] : memref<10x18x2xf32, #tpu.memory_space<vmem>>, vector<1x16x2xf32>
    tpu.vector_store %arg14[%c9, %c1_42, %c0_43], %39 {strides = array<i32>} : memref<10x18x2xf32, #tpu.memory_space<vmem>>, vector<1x16x2xf32>,
    %cst_44 = arith.constant 0.000000e+00 : f32
    %41 = vector.broadcast %cst_44 : f32 to vector<128x2xf32>
    %c0_45 = arith.constant 0 : index
    %c0_46 = arith.constant 0 : index
    %c0_47 = arith.constant 0 : index
    %42 = vector.load %arg14[%c0_45, %c0_46, %c0_47] : memref<10x18x2xf32, #tpu.memory_space<vmem>>, vector<8x16x2xf32>
    %43 = vector.shape_cast %42 : vector<8x16x2xf32> to vector<128x2xf32>
    %c0_48 = arith.constant 0 : index
    %c0_49 = arith.constant 0 : index
    %c0_50 = arith.constant 0 : index
    %44 = vector.load %arg9[%c0_48, %c0_49, %c0_50] : memref<9x2x2xf32, #tpu.memory_space<vmem>>, vector<1x2x2xf32>
    %45 = vector.shape_cast %44 : vector<1x2x2xf32> to vector<2x2xf32>
    %cst_51 = arith.constant dense<0.000000e+00> : vector<128x2xf32>
    %46 = tpu.matmul %43, %45, %cst_51 {dimension_numbers = #tpu.dot_dimension_numbers<[1], [0], [0], [1], [0, 0, 1, 1], [], []>} : vector<128x2xf32>, vector<2x2xf32>, vector<128x2xf32> -> vector<128x2xf32>
    %47 = arith.addf %41, %46 : vector<128x2xf32>
    %c0_52 = arith.constant 0 : index
    %c1_53 = arith.constant 1 : index
    %c0_54 = arith.constant 0 : index
    %48 = vector.load %arg14[%c0_52, %c1_53, %c0_54] : memref<10x18x2xf32, #tpu.memory_space<vmem>>, vector<8x16x2xf32>
    %49 = vector.shape_cast %48 : vector<8x16x2xf32> to vector<128x2xf32>
    %c1_55 = arith.constant 1 : index
    %c0_56 = arith.constant 0 : index
    %c0_57 = arith.constant 0 : index
    %50 = vector.load %arg9[%c1_55, %c0_56, %c0_57] : memref<9x2x2xf32, #tpu.memory_space<vmem>>, vector<1x2x2xf32>
    %51 = vector.shape_cast %50 : vector<1x2x2xf32> to vector<2x2xf32>
    %cst_58 = arith.constant dense<0.000000e+00> : vector<128x2xf32>
    %52 = tpu.matmul %49, %51, %cst_58 {dimension_numbers = #tpu.dot_dimension_numbers<[1], [0], [0], [1], [0, 0, 1, 1], [], []>} : vector<128x2xf32>, vector<2x2xf32>, vector<128x2xf32> -> vector<128x2xf32>
    %53 = arith.addf %47, %52 : vector<128x2xf32>
    %c0_59 = arith.constant 0 : index
    %c2 = arith.constant 2 : index
    %c0_60 = arith.constant 0 : index
    %54 = vector.load %arg14[%c0_59, %c2, %c0_60] : memref<10x18x2xf32, #tpu.memory_space<vmem>>, vector<8x16x2xf32>
    %55 = vector.shape_cast %54 : vector<8x16x2xf32> to vector<128x2xf32>
    %c2_61 = arith.constant 2 : index
    %c0_62 = arith.constant 0 : index
    %c0_63 = arith.constant 0 : index
    %56 = vector.load %arg9[%c2_61, %c0_62, %c0_63] : memref<9x2x2xf32, #tpu.memory_space<vmem>>, vector<1x2x2xf32>
    %57 = vector.shape_cast %56 : vector<1x2x2xf32> to vector<2x2xf32>
    %cst_64 = arith.constant dense<0.000000e+00> : vector<128x2xf32>
    %58 = tpu.matmul %55, %57, %cst_64 {dimension_numbers = #tpu.dot_dimension_numbers<[1], [0], [0], [1], [0, 0, 1, 1], [], []>} : vector<128x2xf32>, vector<2x2xf32>, vector<128x2xf32> -> vector<128x2xf32>
    %59 = arith.addf %53, %58 : vector<128x2xf32>
    %c1_65 = arith.constant 1 : index
    %c0_66 = arith.constant 0 : index
    %c0_67 = arith.constant 0 : index
    %60 = vector.load %arg14[%c1_65, %c0_66, %c0_67] : memref<10x18x2xf32, #tpu.memory_space<vmem>>, vector<8x16x2xf32>
    %61 = vector.shape_cast %60 : vector<8x16x2xf32> to vector<128x2xf32>
    %c3 = arith.constant 3 : index
    %c0_68 = arith.constant 0 : index
    %c0_69 = arith.constant 0 : index
    %62 = vector.load %arg9[%c3, %c0_68, %c0_69] : memref<9x2x2xf32, #tpu.memory_space<vmem>>, vector<1x2x2xf32>
    %63 = vector.shape_cast %62 : vector<1x2x2xf32> to vector<2x2xf32>
    %cst_70 = arith.constant dense<0.000000e+00> : vector<128x2xf32>
    %64 = tpu.matmul %61, %63, %cst_70 {dimension_numbers = #tpu.dot_dimension_numbers<[1], [0], [0], [1], [0, 0, 1, 1], [], []>} : vector<128x2xf32>, vector<2x2xf32>, vector<128x2xf32> -> vector<128x2xf32>
    %65 = arith.addf %59, %64 : vector<128x2xf32>
    %c1_71 = arith.constant 1 : index
    %c1_72 = arith.constant 1 : index
    %c0_73 = arith.constant 0 : index
    %66 = vector.load %arg14[%c1_71, %c1_72, %c0_73] : memref<10x18x2xf32, #tpu.memory_space<vmem>>, vector<8x16x2xf32>
    %67 = vector.shape_cast %66 : vector<8x16x2xf32> to vector<128x2xf32>
    %c4 = arith.constant 4 : index
    %c0_74 = arith.constant 0 : index
    %c0_75 = arith.constant 0 : index
    %68 = vector.load %arg9[%c4, %c0_74, %c0_75] : memref<9x2x2xf32, #tpu.memory_space<vmem>>, vector<1x2x2xf32>
    %69 = vector.shape_cast %68 : vector<1x2x2xf32> to vector<2x2xf32>
    %cst_76 = arith.constant dense<0.000000e+00> : vector<128x2xf32>
    %70 = tpu.matmul %67, %69, %cst_76 {dimension_numbers = #tpu.dot_dimension_numbers<[1], [0], [0], [1], [0, 0, 1, 1], [], []>} : vector<128x2xf32>, vector<2x2xf32>, vector<128x2xf32> -> vector<128x2xf32>
    %71 = arith.addf %65, %70 : vector<128x2xf32>
    %c1_77 = arith.constant 1 : index
    %c2_78 = arith.constant 2 : index
    %c0_79 = arith.constant 0 : index
    %72 = vector.load %arg14[%c1_77, %c2_78, %c0_79] : memref<10x18x2xf32, #tpu.memory_space<vmem>>, vector<8x16x2xf32>
    %73 = vector.shape_cast %72 : vector<8x16x2xf32> to vector<128x2xf32>
    %c5 = arith.constant 5 : index
    %c0_80 = arith.constant 0 : index
    %c0_81 = arith.constant 0 : index
    %74 = vector.load %arg9[%c5, %c0_80, %c0_81] : memref<9x2x2xf32, #tpu.memory_space<vmem>>, vector<1x2x2xf32>
    %75 = vector.shape_cast %74 : vector<1x2x2xf32> to vector<2x2xf32>
    %cst_82 = arith.constant dense<0.000000e+00> : vector<128x2xf32>
    %76 = tpu.matmul %73, %75, %cst_82 {dimension_numbers = #tpu.dot_dimension_numbers<[1], [0], [0], [1], [0, 0, 1, 1], [], []>} : vector<128x2xf32>, vector<2x2xf32>, vector<128x2xf32> -> vector<128x2xf32>
    %77 = arith.addf %71, %76 : vector<128x2xf32>
    %c2_83 = arith.constant 2 : index
    %c0_84 = arith.constant 0 : index
    %c0_85 = arith.constant 0 : index
    %78 = vector.load %arg14[%c2_83, %c0_84, %c0_85] : memref<10x18x2xf32, #tpu.memory_space<vmem>>, vector<8x16x2xf32>
    %79 = vector.shape_cast %78 : vector<8x16x2xf32> to vector<128x2xf32>
    %c6 = arith.constant 6 : index
    %c0_86 = arith.constant 0 : index
    %c0_87 = arith.constant 0 : index
    %80 = vector.load %arg9[%c6, %c0_86, %c0_87] : memref<9x2x2xf32, #tpu.memory_space<vmem>>, vector<1x2x2xf32>
    %81 = vector.shape_cast %80 : vector<1x2x2xf32> to vector<2x2xf32>
    %cst_88 = arith.constant dense<0.000000e+00> : vector<128x2xf32>
    %82 = tpu.matmul %79, %81, %cst_88 {dimension_numbers = #tpu.dot_dimension_numbers<[1], [0], [0], [1], [0, 0, 1, 1], [], []>} : vector<128x2xf32>, vector<2x2xf32>, vector<128x2xf32> -> vector<128x2xf32>
    %83 = arith.addf %77, %82 : vector<128x2xf32>
    %c2_89 = arith.constant 2 : index
    %c1_90 = arith.constant 1 : index
    %c0_91 = arith.constant 0 : index
    %84 = vector.load %arg14[%c2_89, %c1_90, %c0_91] : memref<10x18x2xf32, #tpu.memory_space<vmem>>, vector<8x16x2xf32>
    %85 = vector.shape_cast %84 : vector<8x16x2xf32> to vector<128x2xf32>
    %c7 = arith.constant 7 : index
    %c0_92 = arith.constant 0 : index
    %c0_93 = arith.constant 0 : index
    %86 = vector.load %arg9[%c7, %c0_92, %c0_93] : memref<9x2x2xf32, #tpu.memory_space<vmem>>, vector<1x2x2xf32>
    %87 = vector.shape_cast %86 : vector<1x2x2xf32> to vector<2x2xf32>
    %cst_94 = arith.constant dense<0.000000e+00> : vector<128x2xf32>
    %88 = tpu.matmul %85, %87, %cst_94 {dimension_numbers = #tpu.dot_dimension_numbers<[1], [0], [0], [1], [0, 0, 1, 1], [], []>} : vector<128x2xf32>, vector<2x2xf32>, vector<128x2xf32> -> vector<128x2xf32>
    %89 = arith.addf %83, %88 : vector<128x2xf32>
    %c2_95 = arith.constant 2 : index
    %c2_96 = arith.constant 2 : index
    %c0_97 = arith.constant 0 : index
    %90 = vector.load %arg14[%c2_95, %c2_96, %c0_97] : memref<10x18x2xf32, #tpu.memory_space<vmem>>, vector<8x16x2xf32>
    %91 = vector.shape_cast %90 : vector<8x16x2xf32> to vector<128x2xf32>
    %c8 = arith.constant 8 : index
    %c0_98 = arith.constant 0 : index
    %c0_99 = arith.constant 0 : index
    %92 = vector.load %arg9[%c8, %c0_98, %c0_99] : memref<9x2x2xf32, #tpu.memory_space<vmem>>, vector<1x2x2xf32>
    %93 = vector.shape_cast %92 : vector<1x2x2xf32> to vector<2x2xf32>
    %cst_100 = arith.constant dense<0.000000e+00> : vector<128x2xf32>
    %94 = tpu.matmul %91, %93, %cst_100 {dimension_numbers = #tpu.dot_dimension_numbers<[1], [0], [0], [1], [0, 0, 1, 1], [], []>} : vector<128x2xf32>, vector<2x2xf32>, vector<128x2xf32> -> vector<128x2xf32>
    %95 = arith.addf %89, %94 : vector<128x2xf32>
    %c0_101 = arith.constant 0 : index
    %c0_102 = arith.constant 0 : index
    %96 = vector.load %arg10[%c0_101, %c0_102] : memref<1x2xf32, #tpu.memory_space<vmem>>, vector<1x2xf32>
    %97 = vector.broadcast %96 : vector<1x2xf32> to vector<128x2xf32>
    %98 = arith.addf %95, %97 : vector<128x2xf32>
    %c0_103 = arith.constant 0 : index
    %c0_104 = arith.constant 0 : index
    %99 = vector.load %arg11[%c0_103, %c0_104] : memref<2x4xf32, #tpu.memory_space<vmem>>, vector<2x4xf32>
    %cst_105 = arith.constant dense<0.000000e+00> : vector<128x4xf32>
    %100 = tpu.matmul %98, %99, %cst_105 {dimension_numbers = #tpu.dot_dimension_numbers<[1], [0], [0], [1], [0, 0, 1, 1], [], []>} : vector<128x2xf32>, vector<2x4xf32>, vector<128x4xf32> -> vector<128x4xf32>
    %c0_106 = arith.constant 0 : index
    %c0_107 = arith.constant 0 : index
    %101 = vector.load %arg12[%c0_106, %c0_107] : memref<1x4xf32, #tpu.memory_space<vmem>>, vector<1x4xf32>
    %102 = vector.broadcast %101 : vector<1x4xf32> to vector<128x4xf32>
    %103 = arith.addf %100, %102 : vector<128x4xf32>
    %104 = arith.addf %103, %5 : vector<128x4xf32>
    %105 = vector.shape_cast %104 : vector<128x4xf32> to vector<8x16x4xf32>
    %c0_108 = arith.constant 0 : index
    %c0_109 = arith.constant 0 : index
    %c0_110 = arith.constant 0 : index
    %c0_111 = arith.constant 0 : index
    %106 = vector.load %arg13[%c0_108, %c0_109, %c0_110, %c0_111] : memref<1x8x16x4xf32, #tpu.memory_space<vmem>>, vector<1x8x16x4xf32>
    %107 = vector.shape_cast %106 : vector<1x8x16x4xf32> to vector<8x16x4xf32>
    %108 = vector.shape_cast %105 : vector<8x16x4xf32> to vector<1x8x16x4xf32>
    tpu.vector_store %arg13[%c0_108, %c0_109, %c0_110, %c0_111], %108 {strides = array<i32>} : memref<1x8x16x4xf32, #tpu.memory_space<vmem>>, vector<1x8x16x4xf32>,
    return
  }
  func.func @transform_0(%arg0: i32, %arg1: i32) -> (i32, i32, i32, i32) {
    %c0_i32 = arith.constant 0 : i32
    %c0_i32_0 = arith.constant 0 : i32
    %c0_i32_1 = arith.constant 0 : i32
    return %arg0, %arg1, %c0_i32, %c0_i32_0 : i32, i32, i32, i32
  }
  func.func @transform_1(%arg0: i32, %arg1: i32) -> (i32, i32, i32, i32) {
    %c0_i32 = arith.constant 0 : i32
    %c0_i32_0 = arith.constant 0 : i32
    %c0_i32_1 = arith.constant 0 : i32
    return %arg0, %arg1, %c0_i32, %c0_i32_0 : i32, i32, i32, i32
  }
  func.func @transform_2(%arg0: i32, %arg1: i32) -> (i32, i32, i32, i32) {
    %c0_i32 = arith.constant 0 : i32
    %c0_i32_0 = arith.constant 0 : i32
    %c0_i32_1 = arith.constant 0 : i32
    return %arg0, %arg1, %c0_i32, %c0_i32_0 : i32, i32, i32, i32
  }
  func.func @transform_3(%arg0: i32, %arg1: i32) -> (i32, i32, i32, i32) {
    %c0_i32 = arith.constant 0 : i32
    %c0_i32_0 = arith.constant 0 : i32
    %c0_i32_1 = arith.constant 0 : i32
    return %arg0, %arg1, %c0_i32, %c0_i32_0 : i32, i32, i32, i32
  }
  func.func @transform_4(%arg0: i32, %arg1: i32) -> (i32, i32) {
    %c0_i32 = arith.constant 0 : i32
    %c0_i32_0 = arith.constant 0 : i32
    %c0_i32_1 = arith.constant 0 : i32
    return %c0_i32, %c0_i32_0 : i32, i32
  }
  func.func @transform_5(%arg0: i32, %arg1: i32) -> (i32, i32) {
    %c0_i32 = arith.constant 0 : i32
    %c0_i32_0 = arith.constant 0 : i32
    %c0_i32_1 = arith.constant 0 : i32
    return %c0_i32, %c0_i32_0 : i32, i32
  }
  func.func @transform_6(%arg0: i32, %arg1: i32) -> (i32, i32) {
    %c0_i32 = arith.constant 0 : i32
    %c0_i32_0 = arith.constant 0 : i32
    %c0_i32_1 = arith.constant 0 : i32
    return %c0_i32, %c0_i32_0 : i32, i32
  }
  func.func @transform_7(%arg0: i32, %arg1: i32) -> (i32, i32, i32) {
    %c0_i32 = arith.constant 0 : i32
    %c0_i32_0 = arith.constant 0 : i32
    %c0_i32_1 = arith.constant 0 : i32
    %c0_i32_2 = arith.constant 0 : i32
    return %c0_i32, %c0_i32_0, %c0_i32_1 : i32, i32, i32
  }
  func.func @transform_8(%arg0: i32, %arg1: i32) -> (i32, i32) {
    %c0_i32 = arith.constant 0 : i32
    %c0_i32_0 = arith.constant 0 : i32
    %c0_i32_1 = arith.constant 0 : i32
    return %c0_i32, %c0_i32_0 : i32, i32
  }
  func.func @transform_9(%arg0: i32, %arg1: i32) -> (i32, i32) {
    %c0_i32 = arith.constant 0 : i32
    %c0_i32_0 = arith.constant 0 : i32
    %c0_i32_1 = arith.constant 0 : i32
    return %c0_i32, %c0_i32_0 : i32, i32
  }
  func.func @transform_10(%arg0: i32, %arg1: i32) -> (i32, i32) {
    %c0_i32 = arith.constant 0 : i32
    %c0_i32_0 = arith.constant 0 : i32
    %c0_i32_1 = arith.constant 0 : i32
    return %c0_i32, %c0_i32_0 : i32, i32
  }
  func.func @transform_11(%arg0: i32, %arg1: i32) -> (i32, i32, i32, i32) {
    %c0_i32 = arith.constant 0 : i32
    %c0_i32_0 = arith.constant 0 : i32
    %c0_i32_1 = arith.constant 0 : i32
    return %arg0, %arg1, %c0_i32, %c0_i32_0 : i32, i32, i32, i32
  }
}

</mosaic_0001>

<llo_original>
// kernel: skip_horizontal_connection.1
$region0: #{skip_horizontal_connection.1}
  #allocation0 [shape = 'u32[]', space=smem, size = 0x4, offset = 0x4, fixed_abs, tag = 'smem constant byte address 0x4 - core index']
  #allocation1 [shape = 'u32[144,128]{1,0:T(1,128)}', space=vmem, size = 0x12000, scoped, tag = 'internal scratch']
  #allocation2 [shape = 'f32[10,18,2]{2,1,0:T(8,128)}', space=vmem, size = 0x1e000, scoped, tag = 'scratch operand']
  #allocation3 [shape = 'f32[16,2]{1,0:T(8,128)}', space=vmem, size = 0x2000, scoped, tag = 'scratch operand']
  %s0 = inlined_call_operand.vmem [shape: f32[2,16,16,4], index: 0, kind: input, shape index: {}, may-alias: {0,11}]
  %s1 = inlined_call_operand.vmem [shape: f32[2,8,16,4], index: 1, kind: input, shape index: {}]
  %s2 = inlined_call_operand.vmem [shape: f32[2,1,16,4], index: 2, kind: input, shape index: {}]
  %s3 = inlined_call_operand.vmem [shape: f32[2,1,16,4], index: 3, kind: input, shape index: {}]
  %s4 = inlined_call_operand.vmem [shape: f32[4,2], index: 4, kind: input, shape index: {}]
  %s5 = inlined_call_operand.vmem [shape: f32[4,2], index: 5, kind: input, shape index: {}]
  %s6 = inlined_call_operand.vmem [shape: f32[1,2], index: 6, kind: input, shape index: {}]
  %s7 = inlined_call_operand.vmem [shape: f32[9,2,2], index: 7, kind: input, shape index: {}]
  %s8 = inlined_call_operand.vmem [shape: f32[1,2], index: 8, kind: input, shape index: {}]
  %s9 = inlined_call_operand.vmem [shape: f32[2,4], index: 9, kind: input, shape index: {}]
  %s10 = inlined_call_operand.vmem [shape: f32[1,4], index: 10, kind: input, shape index: {}]
  %s11 = inlined_call_operand.vmem [shape: f32[2,16,16,4], index: 11, kind: output, shape index: {}, may-alias: {0,11}]
  %s12 = sld [smem:[#allocation0]]
  $region81: #{skip_horizontal_connection.1} parent=0
    _
  %s14 = ssub.s32 1, %s12
  %s15 = scalar_select 0, %s14, %s12
  loop: start=0, step=1, limit=4
  $region2: #{skip_horizontal_connection.1} parent=0 // loop_pre_header
    _
  $region3: #{skip_horizontal_connection.1} parent=0 // loop_header
    %s17 = sphi 0, %s21
    %p18 = scmp.ge.s32.totalorder %s17, 4
    %s24 = sphi 0, %s36
    %s25 = sphi 0, %s32
    %s26 = sphi 0, %s24
    %s27 = sphi 0, %s25
    %s28 = sphi 0, %s26
    %s29 = sphi 0, %s27
    %s41 = sphi 0, %s43
    %s44 = sphi 0, %s41
    %s45 = sphi 0, %s44
    %s61 = sphi 0, %s45
    %s69 = sphi 0, %s71
    %s72 = sphi 0, %s69
    %s73 = sphi 0, %s72
    %s89 = sphi 0, %s73
    %s97 = sphi 0, %s99
    %s100 = sphi 0, %s97
    %s101 = sphi 0, %s100
    %s117 = sphi 0, %s101
    %s125 = sphi 0, %s127
    %s128 = sphi 0, %s125
    %s129 = sphi 0, %s128
    %s145 = sphi 0, %s129
    %s149 = sphi 0, %s149
    %s151 = sphi 0, %s149
    %s152 = sphi 0, %s151
    %s166 = sphi 0, %s152
    %s170 = sphi 0, %s170
    %s172 = sphi 0, %s170
    %s173 = sphi 0, %s172
    %s187 = sphi 0, %s173
    %s191 = sphi 0, %s191
    %s193 = sphi 0, %s191
    %s194 = sphi 0, %s193
    %s208 = sphi 0, %s194
    %s212 = sphi 0, %s212
    %s214 = sphi 0, %s212
    %s215 = sphi 0, %s214
    %s229 = sphi 0, %s215
    %s233 = sphi 0, %s233
    %s235 = sphi 0, %s233
    %s236 = sphi 0, %s235
    %s250 = sphi 0, %s236
    %s254 = sphi 0, %s254
    %s256 = sphi 0, %s254
    %s257 = sphi 0, %s256
    %s271 = sphi 0, %s257
    %s275 = sphi 0, %s275
    %s277 = sphi 0, %s275
    %s278 = sphi 0, %s277
    %s292 = sphi 0, %s278
    %s300 = sphi 0, %s302
    %s303 = sphi 0, %s300
    %s304 = sphi 0, %s303
    %s320 = sphi 0, %s304
  $region4: #{skip_horizontal_connection.1} parent=0 // loop_header_branch
    %20 = sbr.rel (%p18) target = $region8
  $region5: #{skip_horizontal_connection.1} parent=0 // loop_body
    %s22 = ssub.s32 %s17, 1
    %s23 = ssub.s32 %s17, 2
    %s30 = sadd.s32 1, %s25
    %p31 = scmp.ge.s32.totalorder %s30, 1
    %s32 = scalar_select %p31, 0, %s30
    %s33 = sadd.s32 1, %s24
    %s34 = scalar_select %p31, %s33, %s24
    %p35 = scmp.ge.s32.totalorder %s34, 2
    %s36 = scalar_select %p35, 0, %s34
    %s37 = ssub.s32 %s24, %s36
    %s38 = ssub.s32 %s25, %s32
    %s39 = sor.u32 %s37, %s38
    %p40 = scmp.eq.s32.totalorder %s39, 0
    %s42 = sadd.s32 %s41, 1
    %s43 = scalar_select %p40, %s41, %s42
    %p46 = pneg %p40
    %p47 = scmp.eq.s32.totalorder %s17, 1
    %p48 = por %p46, %p47
    %p49 = scmp.ne.s32.totalorder %s41, %s44
    %p50 = scmp.eq.s32.totalorder %s17, 0
    %p51 = por %p49, %p50
    %p52 = scmp.ne.s32.totalorder %s41, %s44
    %p53 = scmp.eq.s32.totalorder %s22, 1
    %p54 = por %p52, %p53
    %p55 = scmp.ne.s32.totalorder %s44, %s45
    %p56 = scmp.eq.s32.totalorder %s22, 0
    %p57 = por %p55, %p56
    %p58 = scmp.ne.s32.totalorder %s44, %s45
    %p59 = scmp.eq.s32.totalorder %s23, 1
    %p60 = por %p58, %p59
    %p62 = scmp.ne.s32.totalorder %s45, %s61
    %p63 = scmp.eq.s32.totalorder %s23, 0
    %p64 = por %p62, %p63
    %s65 = ssub.s32 %s24, %s36
    %s66 = ssub.s32 %s25, %s32
    %s67 = sor.u32 %s65, %s66
    %p68 = scmp.eq.s32.totalorder %s67, 0
    %s70 = sadd.s32 %s69, 1
    %s71 = scalar_select %p68, %s69, %s70
    %p74 = pneg %p68
    %p75 = scmp.eq.s32.totalorder %s17, 1
    %p76 = por %p74, %p75
    %p77 = scmp.ne.s32.totalorder %s69, %s72
    %p78 = scmp.eq.s32.totalorder %s17, 0
    %p79 = por %p77, %p78
    %p80 = scmp.ne.s32.totalorder %s69, %s72
    %p81 = scmp.eq.s32.totalorder %s22, 1
    %p82 = por %p80, %p81
    %p83 = scmp.ne.s32.totalorder %s72, %s73
    %p84 = scmp.eq.s32.totalorder %s22, 0
    %p85 = por %p83, %p84
    %p86 = scmp.ne.s32.totalorder %s72, %s73
    %p87 = scmp.eq.s32.totalorder %s23, 1
    %p88 = por %p86, %p87
    %p90 = scmp.ne.s32.totalorder %s73, %s89
    %p91 = scmp.eq.s32.totalorder %s23, 0
    %p92 = por %p90, %p91
    %s93 = ssub.s32 %s24, %s36
    %s94 = ssub.s32 %s25, %s32
    %s95 = sor.u32 %s93, %s94
    %p96 = scmp.eq.s32.totalorder %s95, 0
    %s98 = sadd.s32 %s97, 1
    %s99 = scalar_select %p96, %s97, %s98
    %p102 = pneg %p96
    %p103 = scmp.eq.s32.totalorder %s17, 1
    %p104 = por %p102, %p103
    %p105 = scmp.ne.s32.totalorder %s97, %s100
    %p106 = scmp.eq.s32.totalorder %s17, 0
    %p107 = por %p105, %p106
    %p108 = scmp.ne.s32.totalorder %s97, %s100
    %p109 = scmp.eq.s32.totalorder %s22, 1
    %p110 = por %p108, %p109
    %p111 = scmp.ne.s32.totalorder %s100, %s101
    %p112 = scmp.eq.s32.totalorder %s22, 0
    %p113 = por %p111, %p112
    %p114 = scmp.ne.s32.totalorder %s100, %s101
    %p115 = scmp.eq.s32.totalorder %s23, 1
    %p116 = por %p114, %p115
    %p118 = scmp.ne.s32.totalorder %s101, %s117
    %p119 = scmp.eq.s32.totalorder %s23, 0
    %p120 = por %p118, %p119
    %s121 = ssub.s32 %s24, %s36
    %s122 = ssub.s32 %s25, %s32
    %s123 = sor.u32 %s121, %s122
    %p124 = scmp.eq.s32.totalorder %s123, 0
    %s126 = sadd.s32 %s125, 1
    %s127 = scalar_select %p124, %s125, %s126
    %p130 = pneg %p124
    %p131 = scmp.eq.s32.totalorder %s17, 1
    %p132 = por %p130, %p131
    %p133 = scmp.ne.s32.totalorder %s125, %s128
    %p134 = scmp.eq.s32.totalorder %s17, 0
    %p135 = por %p133, %p134
    %p136 = scmp.ne.s32.totalorder %s125, %s128
    %p137 = scmp.eq.s32.totalorder %s22, 1
    %p138 = por %p136, %p137
    %p139 = scmp.ne.s32.totalorder %s128, %s129
    %p140 = scmp.eq.s32.totalorder %s22, 0
    %p141 = por %p139, %p140
    %p142 = scmp.ne.s32.totalorder %s128, %s129
    %p143 = scmp.eq.s32.totalorder %s23, 1
    %p144 = por %p142, %p143
    %p146 = scmp.ne.s32.totalorder %s129, %s145
    %p147 = scmp.eq.s32.totalorder %s23, 0
    %p148 = por %p146, %p147
    %s150 = sadd.s32 %s149, 1
    %p153 = scmp.eq.s32.totalorder %s17, 1
    %p154 = scmp.ne.s32.totalorder %s149, %s151
    %p155 = scmp.eq.s32.totalorder %s17, 0
    %p156 = por %p154, %p155
    %p157 = scmp.ne.s32.totalorder %s149, %s151
    %p158 = scmp.eq.s32.totalorder %s22, 1
    %p159 = por %p157, %p158
    %p160 = scmp.ne.s32.totalorder %s151, %s152
    %p161 = scmp.eq.s32.totalorder %s22, 0
    %p162 = por %p160, %p161
    %p163 = scmp.ne.s32.totalorder %s151, %s152
    %p164 = scmp.eq.s32.totalorder %s23, 1
    %p165 = por %p163, %p164
    %p167 = scmp.ne.s32.totalorder %s152, %s166
    %p168 = scmp.eq.s32.totalorder %s23, 0
    %p169 = por %p167, %p168
    %s171 = sadd.s32 %s170, 1
    %p174 = scmp.eq.s32.totalorder %s17, 1
    %p175 = scmp.ne.s32.totalorder %s170, %s172
    %p176 = scmp.eq.s32.totalorder %s17, 0
    %p177 = por %p175, %p176
    %p178 = scmp.ne.s32.totalorder %s170, %s172
    %p179 = scmp.eq.s32.totalorder %s22, 1
    %p180 = por %p178, %p179
    %p181 = scmp.ne.s32.totalorder %s172, %s173
    %p182 = scmp.eq.s32.totalorder %s22, 0
    %p183 = por %p181, %p182
    %p184 = scmp.ne.s32.totalorder %s172, %s173
    %p185 = scmp.eq.s32.totalorder %s23, 1
    %p186 = por %p184, %p185
    %p188 = scmp.ne.s32.totalorder %s173, %s187
    %p189 = scmp.eq.s32.totalorder %s23, 0
    %p190 = por %p188, %p189
    %s192 = sadd.s32 %s191, 1
    %p195 = scmp.eq.s32.totalorder %s17, 1
    %p196 = scmp.ne.s32.totalorder %s191, %s193
    %p197 = scmp.eq.s32.totalorder %s17, 0
    %p198 = por %p196, %p197
    %p199 = scmp.ne.s32.totalorder %s191, %s193
    %p200 = scmp.eq.s32.totalorder %s22, 1
    %p201 = por %p199, %p200
    %p202 = scmp.ne.s32.totalorder %s193, %s194
    %p203 = scmp.eq.s32.totalorder %s22, 0
    %p204 = por %p202, %p203
    %p205 = scmp.ne.s32.totalorder %s193, %s194
    %p206 = scmp.eq.s32.totalorder %s23, 1
    %p207 = por %p205, %p206
    %p209 = scmp.ne.s32.totalorder %s194, %s208
    %p210 = scmp.eq.s32.totalorder %s23, 0
    %p211 = por %p209, %p210
    %s213 = sadd.s32 %s212, 1
    %p216 = scmp.eq.s32.totalorder %s17, 1
    %p217 = scmp.ne.s32.totalorder %s212, %s214
    %p218 = scmp.eq.s32.totalorder %s17, 0
    %p219 = por %p217, %p218
    %p220 = scmp.ne.s32.totalorder %s212, %s214
    %p221 = scmp.eq.s32.totalorder %s22, 1
    %p222 = por %p220, %p221
    %p223 = scmp.ne.s32.totalorder %s214, %s215
    %p224 = scmp.eq.s32.totalorder %s22, 0
    %p225 = por %p223, %p224
    %p226 = scmp.ne.s32.totalorder %s214, %s215
    %p227 = scmp.eq.s32.totalorder %s23, 1
    %p228 = por %p226, %p227
    %p230 = scmp.ne.s32.totalorder %s215, %s229
    %p231 = scmp.eq.s32.totalorder %s23, 0
    %p232 = por %p230, %p231
    %s234 = sadd.s32 %s233, 1
    %p237 = scmp.eq.s32.totalorder %s17, 1
    %p238 = scmp.ne.s32.totalorder %s233, %s235
    %p239 = scmp.eq.s32.totalorder %s17, 0
    %p240 = por %p238, %p239
    %p241 = scmp.ne.s32.totalorder %s233, %s235
    %p242 = scmp.eq.s32.totalorder %s22, 1
    %p243 = por %p241, %p242
    %p244 = scmp.ne.s32.totalorder %s235, %s236
    %p245 = scmp.eq.s32.totalorder %s22, 0
    %p246 = por %p244, %p245
    %p247 = scmp.ne.s32.totalorder %s235, %s236
    %p248 = scmp.eq.s32.totalorder %s23, 1
    %p249 = por %p247, %p248
    %p251 = scmp.ne.s32.totalorder %s236, %s250
    %p252 = scmp.eq.s32.totalorder %s23, 0
    %p253 = por %p251, %p252
    %s255 = sadd.s32 %s254, 1
    %p258 = scmp.eq.s32.totalorder %s17, 1
    %p259 = scmp.ne.s32.totalorder %s254, %s256
    %p260 = scmp.eq.s32.totalorder %s17, 0
    %p261 = por %p259, %p260
    %p262 = scmp.ne.s32.totalorder %s254, %s256
    %p263 = scmp.eq.s32.totalorder %s22, 1
    %p264 = por %p262, %p263
    %p265 = scmp.ne.s32.totalorder %s256, %s257
    %p266 = scmp.eq.s32.totalorder %s22, 0
    %p267 = por %p265, %p266
    %p268 = scmp.ne.s32.totalorder %s256, %s257
    %p269 = scmp.eq.s32.totalorder %s23, 1
    %p270 = por %p268, %p269
    %p272 = scmp.ne.s32.totalorder %s257, %s271
    %p273 = scmp.eq.s32.totalorder %s23, 0
    %p274 = por %p272, %p273
    %s276 = sadd.s32 %s275, 1
    %p279 = scmp.eq.s32.totalorder %s17, 1
    %p280 = scmp.ne.s32.totalorder %s275, %s277
    %p281 = scmp.eq.s32.totalorder %s17, 0
    %p282 = por %p280, %p281
    %p283 = scmp.ne.s32.totalorder %s275, %s277
    %p284 = scmp.eq.s32.totalorder %s22, 1
    %p285 = por %p283, %p284
    %p286 = scmp.ne.s32.totalorder %s277, %s278
    %p287 = scmp.eq.s32.totalorder %s22, 0
    %p288 = por %p286, %p287
    %p289 = scmp.ne.s32.totalorder %s277, %s278
    %p290 = scmp.eq.s32.totalorder %s23, 1
    %p291 = por %p289, %p290
    %p293 = scmp.ne.s32.totalorder %s278, %s292
    %p294 = scmp.eq.s32.totalorder %s23, 0
    %p295 = por %p293, %p294
    %s296 = ssub.s32 %s24, %s36
    %s297 = ssub.s32 %s25, %s32
    %s298 = sor.u32 %s296, %s297
    %p299 = scmp.eq.s32.totalorder %s298, 0
    %s301 = sadd.s32 %s300, 1
    %s302 = scalar_select %p299, %s300, %s301
    %p305 = pneg %p299
    %p306 = scmp.eq.s32.totalorder %s17, 1
    %p307 = por %p305, %p306
    %p308 = scmp.ne.s32.totalorder %s300, %s303
    %p309 = scmp.eq.s32.totalorder %s17, 0
    %p310 = por %p308, %p309
    %p311 = scmp.ne.s32.totalorder %s300, %s303
    %p312 = scmp.eq.s32.totalorder %s22, 1
    %p313 = por %p311, %p312
    %p314 = scmp.ne.s32.totalorder %s303, %s304
    %p315 = scmp.eq.s32.totalorder %s22, 0
    %p316 = por %p314, %p315
    %p317 = scmp.ne.s32.totalorder %s303, %s304
    %p318 = scmp.eq.s32.totalorder %s23, 1
    %p319 = por %p317, %p318
    %p321 = scmp.ne.s32.totalorder %s304, %s320
    %p322 = scmp.eq.s32.totalorder %s23, 0
    %p323 = por %p321, %p322
    %p324 = scmp.le.s32.totalorder 1, %s17
    %p325 = scmp.lt.s32.totalorder %s17, 3
    %p326 = pnand %p324, %p325
    %p327 = pneg %p326
    // Predicated region
    $region9: #{skip_horizontal_connection.1} parent=5 // pred_check
      _
    $region10: #{skip_horizontal_connection.1} parent=5 // pred_check_branch
      %329 = sbr.rel (%p326) target = $region12
    $region11: #{skip_horizontal_connection.1} parent=5 // pred_region
      %s330 = ssub.s32 %s17, 1
      // Predicated region
      $region13: #{skip_horizontal_connection.1} parent=11 // pred_check
        %p331 = pneg %p162
      $region14: #{skip_horizontal_connection.1} parent=11 // pred_check_branch
        %333 = sbr.rel (%p331) target = $region16
      $region15: #{skip_horizontal_connection.1} parent=11 // pred_region
        _
      $region16: #{skip_horizontal_connection.1} parent=11 // pred_fallthru
        _
      // Predicated region
      $region17: #{skip_horizontal_connection.1} parent=11 // pred_check
        %p334 = pneg %p183
      $region18: #{skip_horizontal_connection.1} parent=11 // pred_check_branch
        %336 = sbr.rel (%p334) target = $region20
      $region19: #{skip_horizontal_connection.1} parent=11 // pred_region
        _
      $region20: #{skip_horizontal_connection.1} parent=11 // pred_fallthru
        _
      // Predicated region
      $region21: #{skip_horizontal_connection.1} parent=11 // pred_check
        %p337 = pneg %p204
      $region22: #{skip_horizontal_connection.1} parent=11 // pred_check_branch
        %339 = sbr.rel (%p337) target = $region24
      $region23: #{skip_horizontal_connection.1} parent=11 // pred_region
        _
      $region24: #{skip_horizontal_connection.1} parent=11 // pred_fallthru
        _
      // Predicated region
      $region25: #{skip_horizontal_connection.1} parent=11 // pred_check
        %p340 = pneg %p225
      $region26: #{skip_horizontal_connection.1} parent=11 // pred_check_branch
        %342 = sbr.rel (%p340) target = $region28
      $region27: #{skip_horizontal_connection.1} parent=11 // pred_region
        _
      $region28: #{skip_horizontal_connection.1} parent=11 // pred_fallthru
        _
      // Predicated region
      $region29: #{skip_horizontal_connection.1} parent=11 // pred_check
        %p343 = pneg %p246
      $region30: #{skip_horizontal_connection.1} parent=11 // pred_check_branch
        %345 = sbr.rel (%p343) target = $region32
      $region31: #{skip_horizontal_connection.1} parent=11 // pred_region
        _
      $region32: #{skip_horizontal_connection.1} parent=11 // pred_fallthru
        _
      // Predicated region
      $region33: #{skip_horizontal_connection.1} parent=11 // pred_check
        %p346 = pneg %p267
      $region34: #{skip_horizontal_connection.1} parent=11 // pred_check_branch
        %348 = sbr.rel (%p346) target = $region36
      $region35: #{skip_horizontal_connection.1} parent=11 // pred_region
        _
      $region36: #{skip_horizontal_connection.1} parent=11 // pred_fallthru
        _
      // Predicated region
      $region37: #{skip_horizontal_connection.1} parent=11 // pred_check
        %p349 = pneg %p288
      $region38: #{skip_horizontal_connection.1} parent=11 // pred_check_branch
        %351 = sbr.rel (%p349) target = $region40
      $region39: #{skip_horizontal_connection.1} parent=11 // pred_region
        _
      $region40: #{skip_horizontal_connection.1} parent=11 // pred_fallthru
        _
    $region12: #{skip_horizontal_connection.1} parent=5 // pred_fallthru
      _
    %p352 = scmp.lt.s32.totalorder %s17, 2
    // Predicated region
    $region41: #{skip_horizontal_connection.1} parent=5 // pred_check
      %p353 = pneg %p352
    $region42: #{skip_horizontal_connection.1} parent=5 // pred_check_branch
      %355 = sbr.rel (%p353) target = $region44
    $region43: #{skip_horizontal_connection.1} parent=5 // pred_region
      // Predicated region
      $region45: #{skip_horizontal_connection.1} parent=43 // pred_check
        %p356 = pneg %p51
      $region46: #{skip_horizontal_connection.1} parent=43 // pred_check_branch
        %358 = sbr.rel (%p356) target = $region48
      $region47: #{skip_horizontal_connection.1} parent=43 // pred_region
        %s359 = smul.u32 8, %s25
        %p360 = scmp.lt.s32.totalorder %s24, 1
        %s361 = scalar_select %p360, %s24, 1
        %p362 = scmp.lt.s32.totalorder %s359, 15
        %s363 = scalar_select %p362, %s359, 15
        %s364 = smul.addr %s363, 2
        %s365 = smul.addr %s361, 32
        %s366 = sadd.s32 %s364, %s365
        %s367 = smul.addr %s366, 8
        %s368 = scalar_lea.vmem %s0, %s367
        %s369 = smul.u32 8, %s25
      $region48: #{skip_horizontal_connection.1} parent=43 // pred_fallthru
        _
      // Predicated region
      $region49: #{skip_horizontal_connection.1} parent=43 // pred_check
        %p370 = pneg %p79
      $region50: #{skip_horizontal_connection.1} parent=43 // pred_check_branch
        %372 = sbr.rel (%p370) target = $region52
      $region51: #{skip_horizontal_connection.1} parent=43 // pred_region
        %s373 = smul.u32 8, %s25
        %p374 = scmp.lt.s32.totalorder %s24, 1
        %s375 = scalar_select %p374, %s24, 1
        %p376 = scmp.lt.s32.totalorder %s373, 7
        %s377 = scalar_select %p376, %s373, 7
        %s378 = smul.addr %s377, 2
        %s379 = smul.addr %s375, 16
        %s380 = sadd.s32 %s378, %s379
        %s381 = smul.addr %s380, 8
        %s382 = scalar_lea.vmem %s1, %s381
        %s383 = smul.u32 8, %s25
      $region52: #{skip_horizontal_connection.1} parent=43 // pred_fallthru
        _
      // Predicated region
      $region53: #{skip_horizontal_connection.1} parent=43 // pred_check
        %p384 = pneg %p107
      $region54: #{skip_horizontal_connection.1} parent=43 // pred_check_branch
        %386 = sbr.rel (%p384) target = $region56
      $region55: #{skip_horizontal_connection.1} parent=43 // pred_region
        %p387 = scmp.lt.s32.totalorder %s24, 1
        %s388 = scalar_select %p387, %s24, 1
        %p389 = scmp.lt.s32.totalorder %s25, 0
        %s390 = scalar_select %p389, %s25, 0
        %s391 = smul.addr %s390, 2
        %s392 = smul.addr %s388, 2
        %s393 = sadd.s32 %s391, %s392
        %s394 = smul.addr %s393, 8
        %s395 = scalar_lea.vmem %s2, %s394
      $region56: #{skip_horizontal_connection.1} parent=43 // pred_fallthru
        _
      // Predicated region
      $region57: #{skip_horizontal_connection.1} parent=43 // pred_check
        %p396 = pneg %p135
      $region58: #{skip_horizontal_connection.1} parent=43 // pred_check_branch
        %398 = sbr.rel (%p396) target = $region60
      $region59: #{skip_horizontal_connection.1} parent=43 // pred_region
        %p399 = scmp.lt.s32.totalorder %s24, 1
        %s400 = scalar_select %p399, %s24, 1
        %p401 = scmp.lt.s32.totalorder %s25, 0
        %s402 = scalar_select %p401, %s25, 0
        %s403 = smul.addr %s402, 2
        %s404 = smul.addr %s400, 2
        %s405 = sadd.s32 %s403, %s404
        %s406 = smul.addr %s405, 8
        %s407 = scalar_lea.vmem %s3, %s406
      $region60: #{skip_horizontal_connection.1} parent=43 // pred_fallthru
        _
    $region44: #{skip_horizontal_connection.1} parent=5 // pred_fallthru
      _
    %p408 = scmp.le.s32.totalorder 1, %s17
    %p409 = scmp.lt.s32.totalorder %s17, 3
    %p410 = pnand %p408, %p409
    %p411 = pneg %p410
    // Predicated region
    $region61: #{skip_horizontal_connection.1} parent=5 // pred_check
      _
    $region62: #{skip_horizontal_connection.1} parent=5 // pred_check_branch
      %413 = sbr.rel (%p410) target = $region64
    $region63: #{skip_horizontal_connection.1} parent=5 // pred_region
      %s414 = ssub.s32 %s17, 1
      %s415 = smul.u32 8, %s27
      %p416 = scmp.lt.s32.totalorder %s26, 1
      %s417 = scalar_select %p416, %s26, 1
      %p418 = scmp.lt.s32.totalorder %s415, 15
      %s419 = scalar_select %p418, %s415, 15
      %s420 = smul.addr %s419, 2
      %s421 = smul.addr %s417, 32
      %s422 = sadd.s32 %s420, %s421
      %s423 = smul.addr %s422, 8
      %s424 = scalar_lea.vmem %s0, %s423
      %p425 = pneg %p57
      %p426 = pneg %p54
      %s427 = smul.u32 8, %s27
      %p428 = scmp.lt.s32.totalorder %s26, 1
      %s429 = scalar_select %p428, %s26, 1
      %p430 = scmp.lt.s32.totalorder %s427, 7
      %s431 = scalar_select %p430, %s427, 7
      %s432 = smul.addr %s431, 2
      %s433 = smul.addr %s429, 16
      %s434 = sadd.s32 %s432, %s433
      %s435 = smul.addr %s434, 8
      %s436 = scalar_lea.vmem %s1, %s435
      %p437 = pneg %p85
      %p438 = pneg %p82
      %p439 = scmp.lt.s32.totalorder %s26, 1
      %s440 = scalar_select %p439, %s26, 1
      %p441 = scmp.lt.s32.totalorder %s27, 0
      %s442 = scalar_select %p441, %s27, 0
      %s443 = smul.addr %s442, 2
      %s444 = smul.addr %s440, 2
      %s445 = sadd.s32 %s443, %s444
      %s446 = smul.addr %s445, 8
      %s447 = scalar_lea.vmem %s2, %s446
      %p448 = pneg %p113
      %p449 = pneg %p110
      %p450 = scmp.lt.s32.totalorder %s26, 1
      %s451 = scalar_select %p450, %s26, 1
      %p452 = scmp.lt.s32.totalorder %s27, 0
      %s453 = scalar_select %p452, %s27, 0
      %s454 = smul.addr %s453, 2
      %s455 = smul.addr %s451, 2
      %s456 = sadd.s32 %s454, %s455
      %s457 = smul.addr %s456, 8
      %s458 = scalar_lea.vmem %s3, %s457
      %p459 = pneg %p141
      %p460 = pneg %p138
      %p461 = pneg %p162
      %p462 = pneg %p159
      %p463 = pneg %p183
      %p464 = pneg %p180
      %p465 = pneg %p204
      %p466 = pneg %p201
      %p467 = pneg %p225
      %p468 = pneg %p222
      %p469 = pneg %p246
      %p470 = pneg %p243
      %p471 = pneg %p267
      %p472 = pneg %p264
      %p473 = pneg %p288
      %p474 = pneg %p285
      %p475 = pneg %p316
      %p476 = pneg %p313
      %s477 = smul.u32 8, %s27
      %p478 = scmp.lt.s32.totalorder %s26, 1
      %s479 = scalar_select %p478, %s26, 1
      %p480 = scmp.lt.s32.totalorder %s477, 15
      %s481 = scalar_select %p480, %s477, 15
      %s482 = smul.addr %s481, 2
      %s483 = smul.addr %s479, 32
      %s484 = sadd.s32 %s482, %s483
      %s485 = smul.addr %s484, 8
      %s486 = scalar_lea.vmem %s11, %s485
      %s487 = smul.u32 8, %s27
      %p488 = scmp.lt.s32.totalorder %s26, 1
      %s489 = scalar_select %p488, %s26, 1
      %p490 = scmp.lt.s32.totalorder %s487, 15
      %s491 = scalar_select %p490, %s487, 15
      %s492 = smul.addr %s491, 2
      %s493 = smul.addr %s489, 32
      %s494 = sadd.s32 %s492, %s493
      %s495 = smul.addr %s494, 8
      %s496 = scalar_lea.vmem %s0, %s495
      %s497 = smul.u32 8, %s27
      %s498 = smul.u32 8, %s27
      %p499 = scmp.lt.s32.totalorder %s26, 1
      %s500 = scalar_select %p499, %s26, 1
      %p501 = scmp.lt.s32.totalorder %s498, 7
      %s502 = scalar_select %p501, %s498, 7
      %s503 = smul.addr %s502, 2
      %s504 = smul.addr %s500, 16
      %s505 = sadd.s32 %s503, %s504
      %s506 = smul.addr %s505, 8
      %s507 = scalar_lea.vmem %s1, %s506
      %s508 = smul.u32 8, %s27
      %p509 = scmp.lt.s32.totalorder %s26, 1
      %s510 = scalar_select %p509, %s26, 1
      %p511 = scmp.lt.s32.totalorder %s27, 0
      %s512 = scalar_select %p511, %s27, 0
      %s513 = smul.addr %s512, 2
      %s514 = smul.addr %s510, 2
      %s515 = sadd.s32 %s513, %s514
      %s516 = smul.addr %s515, 8
      %s517 = scalar_lea.vmem %s2, %s516
      %p518 = scmp.lt.s32.totalorder %s26, 1
      %s519 = scalar_select %p518, %s26, 1
      %p520 = scmp.lt.s32.totalorder %s27, 0
      %s521 = scalar_select %p520, %s27, 0
      %s522 = smul.addr %s521, 2
      %s523 = smul.addr %s519, 2
      %s524 = sadd.s32 %s522, %s523
      %s525 = smul.addr %s524, 8
      %s526 = scalar_lea.vmem %s3, %s525
      %s527 = smul.u32 8, %s27
      %p528 = scmp.lt.s32.totalorder %s26, 1
      %s529 = scalar_select %p528, %s26, 1
      %p530 = scmp.lt.s32.totalorder %s527, 15
      %s531 = scalar_select %p530, %s527, 15
      %s532 = smul.addr %s531, 2
      %s533 = smul.addr %s529, 32
      %s534 = sadd.s32 %s532, %s533
      %s535 = smul.addr %s534, 8
      %s536 = scalar_lea.vmem %s11, %s535
      %s537 = smul.u32 8, %s27
      %v538 = vld [vmem:[%s496] sm:$0xff]
      %v539 = vld [vmem:[%s496 + $0x8] sm:$0xff]
      %v540 = vld [vmem:[%s496 + $0x10] sm:$0xff]
      %v541 = vld [vmem:[%s496 + $0x18] sm:$0xff]
      %v542 = vld [vmem:[%s496 + $0x20] sm:$0xff]
      %v543 = vld [vmem:[%s496 + $0x28] sm:$0xff]
      %v544 = vld [vmem:[%s496 + $0x30] sm:$0xff]
      %v545 = vld [vmem:[%s496 + $0x38] sm:$0xff]
      %v546 = vld [vmem:[%s496 + $0x40] sm:$0xff]
      %v547 = vld [vmem:[%s496 + $0x48] sm:$0xff]
      %v548 = vld [vmem:[%s496 + $0x50] sm:$0xff]
      %v549 = vld [vmem:[%s496 + $0x58] sm:$0xff]
      %v550 = vld [vmem:[%s496 + $0x60] sm:$0xff]
      %v551 = vld [vmem:[%s496 + $0x68] sm:$0xff]
      %v552 = vld [vmem:[%s496 + $0x70] sm:$0xff]
      %v553 = vld [vmem:[%s496 + $0x78] sm:$0xff]
      %v554 = vld [vmem:[%s507] sm:$0xff]
      %v555 = vld [vmem:[%s507 + $0x8] sm:$0xff]
      %v556 = vld [vmem:[%s507 + $0x10] sm:$0xff]
      %v557 = vld [vmem:[%s507 + $0x18] sm:$0xff]
      %v558 = vld [vmem:[%s507 + $0x20] sm:$0xff]
      %v559 = vld [vmem:[%s507 + $0x28] sm:$0xff]
      %v560 = vld [vmem:[%s507 + $0x30] sm:$0xff]
      %v561 = vld [vmem:[%s507 + $0x38] sm:$0xff]
      %v562 = vld [vmem:[%s507 + $0x40] sm:$0xff]
      %v563 = vld [vmem:[%s507 + $0x48] sm:$0xff]
      %v564 = vld [vmem:[%s507 + $0x50] sm:$0xff]
      %v565 = vld [vmem:[%s507 + $0x58] sm:$0xff]
      %v566 = vld [vmem:[%s507 + $0x60] sm:$0xff]
      %v567 = vld [vmem:[%s507 + $0x68] sm:$0xff]
      %v568 = vld [vmem:[%s507 + $0x70] sm:$0xff]
      %v569 = vld [vmem:[%s507 + $0x78] sm:$0xff]
      %v570 = vld [vmem:[%s4] sm:$0xf]
      %v571 = vld [vmem:[%s5] sm:$0xf]
      %v572 = vld [vmem:[%s6] sm:$0x1]
      %vm573 = vcmask 31744
      %v575 = vsel %vm573, %v554, 0
      %v578 = vsel %vm573, %v555, 0
      %v581 = vsel %vm573, %v556, 0
      %v584 = vsel %vm573, %v557, 0
      %v587 = vsel %vm573, %v558, 0
      %v590 = vsel %vm573, %v559, 0
      %v593 = vsel %vm573, %v560, 0
      %v596 = vsel %vm573, %v561, 0
      %v599 = vsel %vm573, %v562, 0
      %v602 = vsel %vm573, %v563, 0
      %v605 = vsel %vm573, %v564, 0
      %v608 = vsel %vm573, %v565, 0
      %v611 = vsel %vm573, %v566, 0
      %v614 = vsel %vm573, %v567, 0
      %v617 = vsel %vm573, %v568, 0
      %v620 = vsel %vm573, %v569, 0
      %vm622 = vcmask 1043456
      %v624 = vsel %vm622, %v571, 0
      %626 = vmatprep.subr.mxu0 0.0
      %627 = vmatpush1.msra.mxu0 %v624
      %628 = vmatprep.subr.mxu0 0.0
      %629 = vmatpush1.msra.mxu0 0.0
      %630 = vmatprep.subr.mxu0 0.0
      %631 = vmatpush1.msra.mxu0 0.0
      %632 = vmatprep.subr.mxu0 0.0
      %633 = vmatpush1.msra.mxu0 0.0
      %634 = vmatprep.subr.mxu0 0.0
      %635 = vmatpush1.msra.mxu0 0.0
      %636 = vmatprep.subr.mxu0 0.0
      %637 = vmatpush1.msra.mxu0 0.0
      %638 = vmatprep.subr.mxu0 0.0
      %639 = vmatpush1.msra.mxu0 0.0
      %640 = vmatprep.subr.mxu0 0.0
      %641 = vmatpush1.msra.mxu0 0.0
      %642 = vmatprep.subr.mxu0 0.0
      %643 = vmatpush1.msra.mxu0 0.0
      %644 = vmatprep.subr.mxu0 0.0
      %645 = vmatpush1.msra.mxu0 0.0
      %646 = vmatprep.subr.mxu0 0.0
      %647 = vmatpush1.msra.mxu0 0.0
      %648 = vmatprep.subr.mxu0 0.0
      %649 = vmatpush1.msra.mxu0 0.0
      %650 = vmatprep.subr.mxu0 0.0
      %651 = vmatpush1.msra.mxu0 0.0
      %652 = vmatprep.subr.mxu0 0.0
      %653 = vmatpush1.msra.mxu0 0.0
      %654 = vmatprep.subr.mxu0 0.0
      %655 = vmatpush1.msra.mxu0 0.0
      %656 = vmatprep.subr.mxu0 0.0
      %657 = vmatpush1.msra.mxu0 0.0
      %658 = vmatprep.subr.mxu0 0.0
      %659 = vmatpush1.msra.mxu0 0.0
      %660 = vmatprep.subr.mxu0 0.0
      %661 = vmatpush1.msra.mxu0 0.0
      %662 = vmatprep.subr.mxu0 0.0
      %663 = vmatpush1.msra.mxu0 0.0
      %664 = vmatprep.subr.mxu0 0.0
      %665 = vmatpush1.msra.mxu0 0.0
      %666 = vmatprep.subr.mxu0 0.0
      %667 = vmatpush1.msra.mxu0 0.0
      %668 = vmatprep.subr.mxu0 0.0
      %669 = vmatpush1.msra.mxu0 0.0
      %670 = vmatprep.subr.mxu0 0.0
      %671 = vmatpush1.msra.mxu0 0.0
      %672 = vmatprep.subr.mxu0 0.0
      %673 = vmatpush1.msra.mxu0 0.0
      %674 = vmatprep.subr.mxu0 0.0
      %675 = vmatpush1.msra.mxu0 0.0
      %676 = vmatprep.subr.mxu0 0.0
      %677 = vmatpush1.msra.mxu0 0.0
      %678 = vmatprep.subr.mxu0 0.0
      %679 = vmatpush1.msra.mxu0 0.0
      %680 = vmatprep.subr.mxu0 0.0
      %681 = vmatpush1.msra.mxu0 0.0
      %682 = vmatprep.subr.mxu0 0.0
      %683 = vmatpush1.msra.mxu0 0.0
      %684 = vmatprep.subr.mxu0 0.0
      %685 = vmatpush1.msra.mxu0 0.0
      %686 = vmatprep.subr.mxu0 0.0
      %687 = vmatpush1.msra.mxu0 0.0
      %688 = vmatprep.subr.mxu0 0.0
      %689 = vmatpush1.msra.mxu0 0.0
      %690 = vmatprep.mubr.f32.mxu0 0.0
      %691 = vmatmul.mubr.f32.gmra.mrb[0].mxu0 %v575
      %v692 = vpop.f32.mrb[0].mxu0
      %v693 = vadd.f32 0.0, %v692
      %v694 = vpop.f32.mrb[0].mxu0
      %695 = vmatprep.mubr.f32.mxu0 0.0
      %696 = vmatmul.mubr.f32.gmra.mrb[0].mxu0 %v578
      %v697 = vpop.f32.mrb[0].mxu0
      %v698 = vadd.f32 0.0, %v697
      %v699 = vpop.f32.mrb[0].mxu0
      %700 = vmatprep.mubr.f32.mxu0 0.0
      %701 = vmatmul.mubr.f32.gmra.mrb[0].mxu0 %v581
      %v702 = vpop.f32.mrb[0].mxu0
      %v703 = vadd.f32 0.0, %v702
      %v704 = vpop.f32.mrb[0].mxu0
      %705 = vmatprep.mubr.f32.mxu0 0.0
      %706 = vmatmul.mubr.f32.gmra.mrb[0].mxu0 %v584
      %v707 = vpop.f32.mrb[0].mxu0
      %v708 = vadd.f32 0.0, %v707
      %v709 = vpop.f32.mrb[0].mxu0
      %710 = vmatprep.mubr.f32.mxu0 0.0
      %711 = vmatmul.mubr.f32.gmra.mrb[0].mxu0 %v587
      %v712 = vpop.f32.mrb[0].mxu0
      %v713 = vadd.f32 0.0, %v712
      %v714 = vpop.f32.mrb[0].mxu0
      %715 = vmatprep.mubr.f32.mxu0 0.0
      %716 = vmatmul.mubr.f32.gmra.mrb[0].mxu0 %v590
      %v717 = vpop.f32.mrb[0].mxu0
      %v718 = vadd.f32 0.0, %v717
      %v719 = vpop.f32.mrb[0].mxu0
      %720 = vmatprep.mubr.f32.mxu0 0.0
      %721 = vmatmul.mubr.f32.gmra.mrb[0].mxu0 %v593
      %v722 = vpop.f32.mrb[0].mxu0
      %v723 = vadd.f32 0.0, %v722
      %v724 = vpop.f32.mrb[0].mxu0
      %725 = vmatprep.mubr.f32.mxu0 0.0
      %726 = vmatmul.mubr.f32.gmra.mrb[0].mxu0 %v596
      %v727 = vpop.f32.mrb[0].mxu0
      %v728 = vadd.f32 0.0, %v727
      %v729 = vpop.f32.mrb[0].mxu0
      %730 = vmatprep.mubr.f32.mxu0 0.0
      %731 = vmatmul.mubr.f32.gmra.mrb[0].mxu0 %v599
      %v732 = vpop.f32.mrb[0].mxu0
      %v733 = vadd.f32 0.0, %v732
      %v734 = vpop.f32.mrb[0].mxu0
      %735 = vmatprep.mubr.f32.mxu0 0.0
      %736 = vmatmul.mubr.f32.gmra.mrb[0].mxu0 %v602
      %v737 = vpop.f32.mrb[0].mxu0
      %v738 = vadd.f32 0.0, %v737
      %v739 = vpop.f32.mrb[0].mxu0
      %740 = vmatprep.mubr.f32.mxu0 0.0
      %741 = vmatmul.mubr.f32.gmra.mrb[0].mxu0 %v605
      %v742 = vpop.f32.mrb[0].mxu0
      %v743 = vadd.f32 0.0, %v742
      %v744 = vpop.f32.mrb[0].mxu0
      %745 = vmatprep.mubr.f32.mxu0 0.0
      %746 = vmatmul.mubr.f32.gmra.mrb[0].mxu0 %v608
      %v747 = vpop.f32.mrb[0].mxu0
      %v748 = vadd.f32 0.0, %v747
      %v749 = vpop.f32.mrb[0].mxu0
      %750 = vmatprep.mubr.f32.mxu0 0.0
      %751 = vmatmul.mubr.f32.gmra.mrb[0].mxu0 %v611
      %v752 = vpop.f32.mrb[0].mxu0
      %v753 = vadd.f32 0.0, %v752
      %v754 = vpop.f32.mrb[0].mxu0
      %755 = vmatprep.mubr.f32.mxu0 0.0
      %756 = vmatmul.mubr.f32.gmra.mrb[0].mxu0 %v614
      %v757 = vpop.f32.mrb[0].mxu0
      %v758 = vadd.f32 0.0, %v757
      %v759 = vpop.f32.mrb[0].mxu0
      %760 = vmatprep.mubr.f32.mxu0 0.0
      %761 = vmatmul.mubr.f32.gmra.mrb[0].mxu0 %v617
      %v762 = vpop.f32.mrb[0].mxu0
      %v763 = vadd.f32 0.0, %v762
      %v764 = vpop.f32.mrb[0].mxu0
      %765 = vmatprep.mubr.f32.mxu0 0.0
      %766 = vmatmul.mubr.f32.gmra.mrb[0].mxu0 %v620
      %v767 = vpop.f32.mrb[0].mxu0
      %v768 = vadd.f32 0.0, %v767
      %v769 = vpop.f32.mrb[0].mxu0
      %770 = vdwg.mxu0
      %v772 = vsel %vm573, %v538, 0
      %v775 = vsel %vm573, %v539, 0
      %v778 = vsel %vm573, %v540, 0
      %v781 = vsel %vm573, %v541, 0
      %v784 = vsel %vm573, %v542, 0
      %v787 = vsel %vm573, %v543, 0
      %v790 = vsel %vm573, %v544, 0
      %v793 = vsel %vm573, %v545, 0
      %v796 = vsel %vm573, %v546, 0
      %v799 = vsel %vm573, %v547, 0
      %v802 = vsel %vm573, %v548, 0
      %v805 = vsel %vm573, %v549, 0
      %v808 = vsel %vm573, %v550, 0
      %v811 = vsel %vm573, %v551, 0
      %v814 = vsel %vm573, %v552, 0
      %v817 = vsel %vm573, %v553, 0
      %v820 = vsel %vm622, %v570, 0
      %822 = vmatprep.subr.mxu0 0.0
      %823 = vmatpush1.msra.mxu0 %v820
      %824 = vmatprep.subr.mxu0 0.0
      %825 = vmatpush1.msra.mxu0 0.0
      %826 = vmatprep.subr.mxu0 0.0
      %827 = vmatpush1.msra.mxu0 0.0
      %828 = vmatprep.subr.mxu0 0.0
      %829 = vmatpush1.msra.mxu0 0.0
      %830 = vmatprep.subr.mxu0 0.0
      %831 = vmatpush1.msra.mxu0 0.0
      %832 = vmatprep.subr.mxu0 0.0
      %833 = vmatpush1.msra.mxu0 0.0
      %834 = vmatprep.subr.mxu0 0.0
      %835 = vmatpush1.msra.mxu0 0.0
      %836 = vmatprep.subr.mxu0 0.0
      %837 = vmatpush1.msra.mxu0 0.0
      %838 = vmatprep.subr.mxu0 0.0
      %839 = vmatpush1.msra.mxu0 0.0
      %840 = vmatprep.subr.mxu0 0.0
      %841 = vmatpush1.msra.mxu0 0.0
      %842 = vmatprep.subr.mxu0 0.0
      %843 = vmatpush1.msra.mxu0 0.0
      %844 = vmatprep.subr.mxu0 0.0
      %845 = vmatpush1.msra.mxu0 0.0
      %846 = vmatprep.subr.mxu0 0.0
      %847 = vmatpush1.msra.mxu0 0.0
      %848 = vmatprep.subr.mxu0 0.0
      %849 = vmatpush1.msra.mxu0 0.0
      %850 = vmatprep.subr.mxu0 0.0
      %851 = vmatpush1.msra.mxu0 0.0
      %852 = vmatprep.subr.mxu0 0.0
      %853 = vmatpush1.msra.mxu0 0.0
      %854 = vmatprep.subr.mxu0 0.0
      %855 = vmatpush1.msra.mxu0 0.0
      %856 = vmatprep.subr.mxu0 0.0
      %857 = vmatpush1.msra.mxu0 0.0
      %858 = vmatprep.subr.mxu0 0.0
      %859 = vmatpush1.msra.mxu0 0.0
      %860 = vmatprep.subr.mxu0 0.0
      %861 = vmatpush1.msra.mxu0 0.0
      %862 = vmatprep.subr.mxu0 0.0
      %863 = vmatpush1.msra.mxu0 0.0
      %864 = vmatprep.subr.mxu0 0.0
      %865 = vmatpush1.msra.mxu0 0.0
      %866 = vmatprep.subr.mxu0 0.0
      %867 = vmatpush1.msra.mxu0 0.0
      %868 = vmatprep.subr.mxu0 0.0
      %869 = vmatpush1.msra.mxu0 0.0
      %870 = vmatprep.subr.mxu0 0.0
      %871 = vmatpush1.msra.mxu0 0.0
      %872 = vmatprep.subr.mxu0 0.0
      %873 = vmatpush1.msra.mxu0 0.0
      %874 = vmatprep.subr.mxu0 0.0
      %875 = vmatpush1.msra.mxu0 0.0
      %876 = vmatprep.subr.mxu0 0.0
      %877 = vmatpush1.msra.mxu0 0.0
      %878 = vmatprep.subr.mxu0 0.0
      %879 = vmatpush1.msra.mxu0 0.0
      %880 = vmatprep.subr.mxu0 0.0
      %881 = vmatpush1.msra.mxu0 0.0
      %882 = vmatprep.subr.mxu0 0.0
      %883 = vmatpush1.msra.mxu0 0.0
      %884 = vmatprep.subr.mxu0 0.0
      %885 = vmatpush1.msra.mxu0 0.0
      %886 = vmatprep.mubr.f32.mxu0 0.0
      %887 = vmatmul.mubr.f32.gmra.mrb[0].mxu0 %v772
      %v888 = vpop.f32.mrb[0].mxu0
      %v889 = vadd.f32 %v693, %v888
      %v890 = vpop.f32.mrb[0].mxu0
      %891 = vmatprep.mubr.f32.mxu0 0.0
      %892 = vmatmul.mubr.f32.gmra.mrb[0].mxu0 %v775
      %v893 = vpop.f32.mrb[0].mxu0
      %v894 = vadd.f32 %v698, %v893
      %v895 = vpop.f32.mrb[0].mxu0
      %896 = vmatprep.mubr.f32.mxu0 0.0
      %897 = vmatmul.mubr.f32.gmra.mrb[0].mxu0 %v778
      %v898 = vpop.f32.mrb[0].mxu0
      %v899 = vadd.f32 %v703, %v898
      %v900 = vpop.f32.mrb[0].mxu0
      %901 = vmatprep.mubr.f32.mxu0 0.0
      %902 = vmatmul.mubr.f32.gmra.mrb[0].mxu0 %v781
      %v903 = vpop.f32.mrb[0].mxu0
      %v904 = vadd.f32 %v708, %v903
      %v905 = vpop.f32.mrb[0].mxu0
      %906 = vmatprep.mubr.f32.mxu0 0.0
      %907 = vmatmul.mubr.f32.gmra.mrb[0].mxu0 %v784
      %v908 = vpop.f32.mrb[0].mxu0
      %v909 = vadd.f32 %v713, %v908
      %v910 = vpop.f32.mrb[0].mxu0
      %911 = vmatprep.mubr.f32.mxu0 0.0
      %912 = vmatmul.mubr.f32.gmra.mrb[0].mxu0 %v787
      %v913 = vpop.f32.mrb[0].mxu0
      %v914 = vadd.f32 %v718, %v913
      %v915 = vpop.f32.mrb[0].mxu0
      %916 = vmatprep.mubr.f32.mxu0 0.0
      %917 = vmatmul.mubr.f32.gmra.mrb[0].mxu0 %v790
      %v918 = vpop.f32.mrb[0].mxu0
      %v919 = vadd.f32 %v723, %v918
      %v920 = vpop.f32.mrb[0].mxu0
      %921 = vmatprep.mubr.f32.mxu0 0.0
      %922 = vmatmul.mubr.f32.gmra.mrb[0].mxu0 %v793
      %v923 = vpop.f32.mrb[0].mxu0
      %v924 = vadd.f32 %v728, %v923
      %v925 = vpop.f32.mrb[0].mxu0
      %926 = vmatprep.mubr.f32.mxu0 0.0
      %927 = vmatmul.mubr.f32.gmra.mrb[0].mxu0 %v796
      %v928 = vpop.f32.mrb[0].mxu0
      %v929 = vadd.f32 %v733, %v928
      %v930 = vpop.f32.mrb[0].mxu0
      %931 = vmatprep.mubr.f32.mxu0 0.0
      %932 = vmatmul.mubr.f32.gmra.mrb[0].mxu0 %v799
      %v933 = vpop.f32.mrb[0].mxu0
      %v934 = vadd.f32 %v738, %v933
      %v935 = vpop.f32.mrb[0].mxu0
      %936 = vmatprep.mubr.f32.mxu0 0.0
      %937 = vmatmul.mubr.f32.gmra.mrb[0].mxu0 %v802
      %v938 = vpop.f32.mrb[0].mxu0
      %v939 = vadd.f32 %v743, %v938
      %v940 = vpop.f32.mrb[0].mxu0
      %941 = vmatprep.mubr.f32.mxu0 0.0
      %942 = vmatmul.mubr.f32.gmra.mrb[0].mxu0 %v805
      %v943 = vpop.f32.mrb[0].mxu0
      %v944 = vadd.f32 %v748, %v943
      %v945 = vpop.f32.mrb[0].mxu0
      %946 = vmatprep.mubr.f32.mxu0 0.0
      %947 = vmatmul.mubr.f32.gmra.mrb[0].mxu0 %v808
      %v948 = vpop.f32.mrb[0].mxu0
      %v949 = vadd.f32 %v753, %v948
      %v950 = vpop.f32.mrb[0].mxu0
      %951 = vmatprep.mubr.f32.mxu0 0.0
      %952 = vmatmul.mubr.f32.gmra.mrb[0].mxu0 %v811
      %v953 = vpop.f32.mrb[0].mxu0
      %v954 = vadd.f32 %v758, %v953
      %v955 = vpop.f32.mrb[0].mxu0
      %956 = vmatprep.mubr.f32.mxu0 0.0
      %957 = vmatmul.mubr.f32.gmra.mrb[0].mxu0 %v814
      %v958 = vpop.f32.mrb[0].mxu0
      %v959 = vadd.f32 %v763, %v958
      %v960 = vpop.f32.mrb[0].mxu0
      %961 = vmatprep.mubr.f32.mxu0 0.0
      %962 = vmatmul.mubr.f32.gmra.mrb[0].mxu0 %v817
      %v963 = vpop.f32.mrb[0].mxu0
      %v964 = vadd.f32 %v768, %v963
      %v965 = vpop.f32.mrb[0].mxu0
      %966 = vdwg.mxu0
      %v968 = vlaneseq
      %v969 = vshrl.u32 %v968, 7
      %v970 = vsub.s32 0, %v969
      %v971 = vrot.slane %v572, %v970
      %v973 = vadd.f32 %v889, %v971
      %v974 = vadd.f32 %v894, %v971
      %v975 = vadd.f32 %v899, %v971
      %v976 = vadd.f32 %v904, %v971
      %v977 = vadd.f32 %v909, %v971
      %v978 = vadd.f32 %v914, %v971
      %v979 = vadd.f32 %v919, %v971
      %v980 = vadd.f32 %v924, %v971
      %v981 = vadd.f32 %v929, %v971
      %v982 = vadd.f32 %v934, %v971
      %v983 = vadd.f32 %v939, %v971
      %v984 = vadd.f32 %v944, %v971
      %v985 = vadd.f32 %v949, %v971
      %v986 = vadd.f32 %v954, %v971
      %v987 = vadd.f32 %v959, %v971
      %v988 = vadd.f32 %v964, %v971
      %p989 = scmp.eq.s32.totalorder %s27, 0
      // Predicated region
      $region65: #{skip_horizontal_connection.1} parent=63 // pred_check
        %p990 = pneg %p989
      $region66: #{skip_horizontal_connection.1} parent=63 // pred_check_branch
        %992 = sbr.rel (%p990) target = $region68
      $region67: #{skip_horizontal_connection.1} parent=63 // pred_region
        %vm993 = vcmask 15360
        %994 = vst.msk [vmem:[#allocation3] sm:$0xff] %vm993, 0.0
        %995 = vst.msk [vmem:[#allocation3 + $0x8] sm:$0xff] %vm993, 0.0
      $region68: #{skip_horizontal_connection.1} parent=63 // pred_fallthru
        _
      %v996 = vld [vmem:[#allocation3] sm:$0xff]
      %v997 = vld [vmem:[#allocation3 + $0x8] sm:$0xff]
      %v998 = vld [vmem:[%s517] sm:$0xff]
      %v999 = vld [vmem:[%s517 + $0x8] sm:$0xff]
      %v1000 = vld [vmem:[%s526] sm:$0xff]
      %v1001 = vld [vmem:[%s526 + $0x8] sm:$0xff]
      %v1003 = vsel %vm573, %v1000, 0
      %v1006 = vsel %vm573, %v1001, 0
      %1008 = vmatprep.subr.mxu0 0.0
      %1009 = vmatpush1.msra.mxu0 %v624
      %1010 = vmatprep.subr.mxu0 0.0
      %1011 = vmatpush1.msra.mxu0 0.0
      %1012 = vmatprep.subr.mxu0 0.0
      %1013 = vmatpush1.msra.mxu0 0.0
      %1014 = vmatprep.subr.mxu0 0.0
      %1015 = vmatpush1.msra.mxu0 0.0
      %1016 = vmatprep.subr.mxu0 0.0
      %1017 = vmatpush1.msra.mxu0 0.0
      %1018 = vmatprep.subr.mxu0 0.0
      %1019 = vmatpush1.msra.mxu0 0.0
      %1020 = vmatprep.subr.mxu0 0.0
      %1021 = vmatpush1.msra.mxu0 0.0
      %1022 = vmatprep.subr.mxu0 0.0
      %1023 = vmatpush1.msra.mxu0 0.0
      %1024 = vmatprep.subr.mxu0 0.0
      %1025 = vmatpush1.msra.mxu0 0.0
      %1026 = vmatprep.subr.mxu0 0.0
      %1027 = vmatpush1.msra.mxu0 0.0
      %1028 = vmatprep.subr.mxu0 0.0
      %1029 = vmatpush1.msra.mxu0 0.0
      %1030 = vmatprep.subr.mxu0 0.0
      %1031 = vmatpush1.msra.mxu0 0.0
      %1032 = vmatprep.subr.mxu0 0.0
      %1033 = vmatpush1.msra.mxu0 0.0
      %1034 = vmatprep.subr.mxu0 0.0
      %1035 = vmatpush1.msra.mxu0 0.0
      %1036 = vmatprep.subr.mxu0 0.0
      %1037 = vmatpush1.msra.mxu0 0.0
      %1038 = vmatprep.subr.mxu0 0.0
      %1039 = vmatpush1.msra.mxu0 0.0
      %1040 = vmatprep.subr.mxu0 0.0
      %1041 = vmatpush1.msra.mxu0 0.0
      %1042 = vmatprep.subr.mxu0 0.0
      %1043 = vmatpush1.msra.mxu0 0.0
      %1044 = vmatprep.subr.mxu0 0.0
      %1045 = vmatpush1.msra.mxu0 0.0
      %1046 = vmatprep.subr.mxu0 0.0
      %1047 = vmatpush1.msra.mxu0 0.0
      %1048 = vmatprep.subr.mxu0 0.0
      %1049 = vmatpush1.msra.mxu0 0.0
      %1050 = vmatprep.subr.mxu0 0.0
      %1051 = vmatpush1.msra.mxu0 0.0
      %1052 = vmatprep.subr.mxu0 0.0
      %1053 = vmatpush1.msra.mxu0 0.0
      %1054 = vmatprep.subr.mxu0 0.0
      %1055 = vmatpush1.msra.mxu0 0.0
      %1056 = vmatprep.subr.mxu0 0.0
      %1057 = vmatpush1.msra.mxu0 0.0
      %1058 = vmatprep.subr.mxu0 0.0
      %1059 = vmatpush1.msra.mxu0 0.0
      %1060 = vmatprep.subr.mxu0 0.0
      %1061 = vmatpush1.msra.mxu0 0.0
      %1062 = vmatprep.subr.mxu0 0.0
      %1063 = vmatpush1.msra.mxu0 0.0
      %1064 = vmatprep.subr.mxu0 0.0
      %1065 = vmatpush1.msra.mxu0 0.0
      %1066 = vmatprep.subr.mxu0 0.0
      %1067 = vmatpush1.msra.mxu0 0.0
      %1068 = vmatprep.subr.mxu0 0.0
      %1069 = vmatpush1.msra.mxu0 0.0
      %1070 = vmatprep.subr.mxu0 0.0
      %1071 = vmatpush1.msra.mxu0 0.0
      %1072 = vmatprep.mubr.f32.mxu0 0.0
      %1073 = vmatmul.mubr.f32.gmra.mrb[0].mxu0 %v1003
      %v1074 = vpop.f32.mrb[0].mxu0
      %v1075 = vadd.f32 0.0, %v1074
      %v1076 = vpop.f32.mrb[0].mxu0
      %1077 = vmatprep.mubr.f32.mxu0 0.0
      %1078 = vmatmul.mubr.f32.gmra.mrb[0].mxu0 %v1006
      %v1079 = vpop.f32.mrb[0].mxu0
      %v1080 = vadd.f32 0.0, %v1079
      %v1081 = vpop.f32.mrb[0].mxu0
      %1082 = vdwg.mxu0
      %v1084 = vsel %vm573, %v998, 0
      %v1087 = vsel %vm573, %v999, 0
      %1089 = vmatprep.subr.mxu0 0.0
      %1090 = vmatpush1.msra.mxu0 %v820
      %1091 = vmatprep.subr.mxu0 0.0
      %1092 = vmatpush1.msra.mxu0 0.0
      %1093 = vmatprep.subr.mxu0 0.0
      %1094 = vmatpush1.msra.mxu0 0.0
      %1095 = vmatprep.subr.mxu0 0.0
      %1096 = vmatpush1.msra.mxu0 0.0
      %1097 = vmatprep.subr.mxu0 0.0
      %1098 = vmatpush1.msra.mxu0 0.0
      %1099 = vmatprep.subr.mxu0 0.0
      %1100 = vmatpush1.msra.mxu0 0.0
      %1101 = vmatprep.subr.mxu0 0.0
      %1102 = vmatpush1.msra.mxu0 0.0
      %1103 = vmatprep.subr.mxu0 0.0
      %1104 = vmatpush1.msra.mxu0 0.0
      %1105 = vmatprep.subr.mxu0 0.0
      %1106 = vmatpush1.msra.mxu0 0.0
      %1107 = vmatprep.subr.mxu0 0.0
      %1108 = vmatpush1.msra.mxu0 0.0
      %1109 = vmatprep.subr.mxu0 0.0
      %1110 = vmatpush1.msra.mxu0 0.0
      %1111 = vmatprep.subr.mxu0 0.0
      %1112 = vmatpush1.msra.mxu0 0.0
      %1113 = vmatprep.subr.mxu0 0.0
      %1114 = vmatpush1.msra.mxu0 0.0
      %1115 = vmatprep.subr.mxu0 0.0
      %1116 = vmatpush1.msra.mxu0 0.0
      %1117 = vmatprep.subr.mxu0 0.0
      %1118 = vmatpush1.msra.mxu0 0.0
      %1119 = vmatprep.subr.mxu0 0.0
      %1120 = vmatpush1.msra.mxu0 0.0
      %1121 = vmatprep.subr.mxu0 0.0
      %1122 = vmatpush1.msra.mxu0 0.0
      %1123 = vmatprep.subr.mxu0 0.0
      %1124 = vmatpush1.msra.mxu0 0.0
      %1125 = vmatprep.subr.mxu0 0.0
      %1126 = vmatpush1.msra.mxu0 0.0
      %1127 = vmatprep.subr.mxu0 0.0
      %1128 = vmatpush1.msra.mxu0 0.0
      %1129 = vmatprep.subr.mxu0 0.0
      %1130 = vmatpush1.msra.mxu0 0.0
      %1131 = vmatprep.subr.mxu0 0.0
      %1132 = vmatpush1.msra.mxu0 0.0
      %1133 = vmatprep.subr.mxu0 0.0
      %1134 = vmatpush1.msra.mxu0 0.0
      %1135 = vmatprep.subr.mxu0 0.0
      %1136 = vmatpush1.msra.mxu0 0.0
      %1137 = vmatprep.subr.mxu0 0.0
      %1138 = vmatpush1.msra.mxu0 0.0
      %1139 = vmatprep.subr.mxu0 0.0
      %1140 = vmatpush1.msra.mxu0 0.0
      %1141 = vmatprep.subr.mxu0 0.0
      %1142 = vmatpush1.msra.mxu0 0.0
      %1143 = vmatprep.subr.mxu0 0.0
      %1144 = vmatpush1.msra.mxu0 0.0
      %1145 = vmatprep.subr.mxu0 0.0
      %1146 = vmatpush1.msra.mxu0 0.0
      %1147 = vmatprep.subr.mxu0 0.0
      %1148 = vmatpush1.msra.mxu0 0.0
      %1149 = vmatprep.subr.mxu0 0.0
      %1150 = vmatpush1.msra.mxu0 0.0
      %1151 = vmatprep.subr.mxu0 0.0
      %1152 = vmatpush1.msra.mxu0 0.0
      %1153 = vmatprep.mubr.f32.mxu0 0.0
      %1154 = vmatmul.mubr.f32.gmra.mrb[0].mxu0 %v1084
      %v1155 = vpop.f32.mrb[0].mxu0
      %v1156 = vadd.f32 %v1075, %v1155
      %v1157 = vpop.f32.mrb[0].mxu0
      %1158 = vmatprep.mubr.f32.mxu0 0.0
      %1159 = vmatmul.mubr.f32.gmra.mrb[0].mxu0 %v1087
      %v1160 = vpop.f32.mrb[0].mxu0
      %v1161 = vadd.f32 %v1080, %v1160
      %v1162 = vpop.f32.mrb[0].mxu0
      %1163 = vdwg.mxu0
      %v1164 = vadd.f32 %v1156, %v971
      %v1165 = vadd.f32 %v1161, %v971
      %p1166 = scmp.lt.s32.totalorder %s27, 0
      %s1167 = scalar_select %p1166, 1, 0
      %v1168 = vstv %s1167
      %vm1169 = vcmp.eq.s32.totalorder %v1168, 1
      %v1170 = vsel %vm1169, %v1164, 0.0
      %v1171 = vsel %vm1169, %v1165, 0.0
      %vm1172 = vcmask 15360
      %1173 = vst.msk [vmem:[#allocation3] sm:$0xff] %vm1172, %v987
      %1174 = vst.msk [vmem:[#allocation3 + $0x8] sm:$0xff] %vm1172, %v988
      %vm1175 = vcmask 8192
      %1176 = vst.msk [vmem:[#allocation2] sm:$0x1] %vm1175, 0.0
      %1177 = vst.msk [vmem:[#allocation2 + $0x18] sm:$0x1] %vm1175, 0.0
      %1178 = vst.msk [vmem:[#allocation2 + $0x30] sm:$0x1] %vm1175, 0.0
      %1179 = vst.msk [vmem:[#allocation2 + $0x48] sm:$0x1] %vm1175, 0.0
      %1180 = vst.msk [vmem:[#allocation2 + $0x60] sm:$0x1] %vm1175, 0.0
      %1181 = vst.msk [vmem:[#allocation2 + $0x78] sm:$0x1] %vm1175, 0.0
      %1182 = vst.msk [vmem:[#allocation2 + $0x90] sm:$0x1] %vm1175, 0.0
      %1183 = vst.msk [vmem:[#allocation2 + $0xa8] sm:$0x1] %vm1175, 0.0
      %1184 = vst.msk [vmem:[#allocation2 + $0xc0] sm:$0x1] %vm1175, 0.0
      %1185 = vst.msk [vmem:[#allocation2 + $0xd8] sm:$0x1] %vm1175, 0.0
      %1186 = vst.msk [vmem:[#allocation2 + $0x11] sm:$0x1] %vm1175, 0.0
      %1187 = vst.msk [vmem:[#allocation2 + $0x29] sm:$0x1] %vm1175, 0.0
      %1188 = vst.msk [vmem:[#allocation2 + $0x41] sm:$0x1] %vm1175, 0.0
      %1189 = vst.msk [vmem:[#allocation2 + $0x59] sm:$0x1] %vm1175, 0.0
      %1190 = vst.msk [vmem:[#allocation2 + $0x71] sm:$0x1] %vm1175, 0.0
      %1191 = vst.msk [vmem:[#allocation2 + $0x89] sm:$0x1] %vm1175, 0.0
      %1192 = vst.msk [vmem:[#allocation2 + $0xa1] sm:$0x1] %vm1175, 0.0
      %1193 = vst.msk [vmem:[#allocation2 + $0xb9] sm:$0x1] %vm1175, 0.0
      %1194 = vst.msk [vmem:[#allocation2 + $0xd1] sm:$0x1] %vm1175, 0.0
      %1195 = vst.msk [vmem:[#allocation2 + $0xe9] sm:$0x1] %vm1175, 0.0
      %1196 = vst.msk [vmem:[#allocation2 + $0x1] sm:$0xff] %vm1172, %v996
      %1197 = vst.msk [vmem:[#allocation2 + $0x9] sm:$0xff] %vm1172, %v997
      %s1198 = scalar_lea.vmem [#allocation2], 24
      %1199 = vst.msk [vmem:[%s1198 + $0x1] sm:$0xff] %vm1172, %v973
      %1200 = vst.msk [vmem:[%s1198 + $0x9] sm:$0xff] %vm1172, %v974
      %1201 = vst.msk [vmem:[%s1198 + $0x19] sm:$0xff] %vm1172, %v975
      %1202 = vst.msk [vmem:[%s1198 + $0x21] sm:$0xff] %vm1172, %v976
      %1203 = vst.msk [vmem:[%s1198 + $0x31] sm:$0xff] %vm1172, %v977
      %1204 = vst.msk [vmem:[%s1198 + $0x39] sm:$0xff] %vm1172, %v978
      %1205 = vst.msk [vmem:[%s1198 + $0x49] sm:$0xff] %vm1172, %v979
      %1206 = vst.msk [vmem:[%s1198 + $0x51] sm:$0xff] %vm1172, %v980
      %1207 = vst.msk [vmem:[%s1198 + $0x61] sm:$0xff] %vm1172, %v981
      %1208 = vst.msk [vmem:[%s1198 + $0x69] sm:$0xff] %vm1172, %v982
      %1209 = vst.msk [vmem:[%s1198 + $0x79] sm:$0xff] %vm1172, %v983
      %1210 = vst.msk [vmem:[%s1198 + $0x81] sm:$0xff] %vm1172, %v984
      %1211 = vst.msk [vmem:[%s1198 + $0x91] sm:$0xff] %vm1172, %v985
      %1212 = vst.msk [vmem:[%s1198 + $0x99] sm:$0xff] %vm1172, %v986
      %1213 = vst.msk [vmem:[%s1198 + $0xa9] sm:$0xff] %vm1172, %v987
      %1214 = vst.msk [vmem:[%s1198 + $0xb1] sm:$0xff] %vm1172, %v988
      %s1215 = scalar_lea.vmem [#allocation2], 216
      %1216 = vst.msk [vmem:[%s1215 + $0x1] sm:$0xff] %vm1172, %v1170
      %1217 = vst.msk [vmem:[%s1215 + $0x9] sm:$0xff] %vm1172, %v1171
      %v1218 = vld [vmem:[#allocation2] sm:$0xff]
      %v1219 = vld [vmem:[#allocation2 + $0x8] sm:$0xff]
      %v1220 = vld [vmem:[#allocation2 + $0x18] sm:$0xff]
      %v1221 = vld [vmem:[#allocation2 + $0x20] sm:$0xff]
      %v1222 = vld [vmem:[#allocation2 + $0x30] sm:$0xff]
      %v1223 = vld [vmem:[#allocation2 + $0x38] sm:$0xff]
      %v1224 = vld [vmem:[#allocation2 + $0x48] sm:$0xff]
      %v1225 = vld [vmem:[#allocation2 + $0x50] sm:$0xff]
      %v1226 = vld [vmem:[#allocation2 + $0x60] sm:$0xff]
      %v1227 = vld [vmem:[#allocation2 + $0x68] sm:$0xff]
      %v1228 = vld [vmem:[#allocation2 + $0x78] sm:$0xff]
      %v1229 = vld [vmem:[#allocation2 + $0x80] sm:$0xff]
      %v1230 = vld [vmem:[#allocation2 + $0x90] sm:$0xff]
      %v1231 = vld [vmem:[#allocation2 + $0x98] sm:$0xff]
      %v1232 = vld [vmem:[#allocation2 + $0xa8] sm:$0xff]
      %v1233 = vld [vmem:[#allocation2 + $0xb0] sm:$0xff]
      %v1234 = vld [vmem:[%s7] sm:$0x3]
      %v1235 = vld [vmem:[#allocation2 + $0x1] sm:$0xff]
      %v1236 = vld [vmem:[#allocation2 + $0x9] sm:$0xff]
      %v1237 = vld [vmem:[#allocation2 + $0x19] sm:$0xff]
      %v1238 = vld [vmem:[#allocation2 + $0x21] sm:$0xff]
      %v1239 = vld [vmem:[#allocation2 + $0x31] sm:$0xff]
      %v1240 = vld [vmem:[#allocation2 + $0x39] sm:$0xff]
      %v1241 = vld [vmem:[#allocation2 + $0x49] sm:$0xff]
      %v1242 = vld [vmem:[#allocation2 + $0x51] sm:$0xff]
      %v1243 = vld [vmem:[#allocation2 + $0x61] sm:$0xff]
      %v1244 = vld [vmem:[#allocation2 + $0x69] sm:$0xff]
      %v1245 = vld [vmem:[#allocation2 + $0x79] sm:$0xff]
      %v1246 = vld [vmem:[#allocation2 + $0x81] sm:$0xff]
      %v1247 = vld [vmem:[#allocation2 + $0x91] sm:$0xff]
      %v1248 = vld [vmem:[#allocation2 + $0x99] sm:$0xff]
      %v1249 = vld [vmem:[#allocation2 + $0xa9] sm:$0xff]
      %v1250 = vld [vmem:[#allocation2 + $0xb1] sm:$0xff]
      %s1251 = scalar_lea.vmem %s7, 2
      %v1252 = vld [vmem:[%s1251] sm:$0x3]
      %v1254 = vsel %vm1172, %v1235, 0
      %v1257 = vsel %vm1172, %v1236, 0
      %v1260 = vsel %vm1172, %v1237, 0
      %v1263 = vsel %vm1172, %v1238, 0
      %v1266 = vsel %vm1172, %v1239, 0
      %v1269 = vsel %vm1172, %v1240, 0
      %v1272 = vsel %vm1172, %v1241, 0
      %v1275 = vsel %vm1172, %v1242, 0
      %v1278 = vsel %vm1172, %v1243, 0
      %v1281 = vsel %vm1172, %v1244, 0
      %v1284 = vsel %vm1172, %v1245, 0
      %v1287 = vsel %vm1172, %v1246, 0
      %v1290 = vsel %vm1172, %v1247, 0
      %v1293 = vsel %vm1172, %v1248, 0
      %v1296 = vsel %vm1172, %v1249, 0
      %v1299 = vsel %vm1172, %v1250, 0
      %vm1301 = vcmask 1041408
      %v1303 = vsel %vm1301, %v1252, 0
      %1305 = vmatprep.subr.mxu0 0.0
      %1306 = vmatpush1.msra.mxu0 %v1303
      %1307 = vmatprep.subr.mxu0 0.0
      %1308 = vmatpush1.msra.mxu0 0.0
      %1309 = vmatprep.subr.mxu0 0.0
      %1310 = vmatpush1.msra.mxu0 0.0
      %1311 = vmatprep.subr.mxu0 0.0
      %1312 = vmatpush1.msra.mxu0 0.0
      %1313 = vmatprep.subr.mxu0 0.0
      %1314 = vmatpush1.msra.mxu0 0.0
      %1315 = vmatprep.subr.mxu0 0.0
      %1316 = vmatpush1.msra.mxu0 0.0
      %1317 = vmatprep.subr.mxu0 0.0
      %1318 = vmatpush1.msra.mxu0 0.0
      %1319 = vmatprep.subr.mxu0 0.0
      %1320 = vmatpush1.msra.mxu0 0.0
      %1321 = vmatprep.subr.mxu0 0.0
      %1322 = vmatpush1.msra.mxu0 0.0
      %1323 = vmatprep.subr.mxu0 0.0
      %1324 = vmatpush1.msra.mxu0 0.0
      %1325 = vmatprep.subr.mxu0 0.0
      %1326 = vmatpush1.msra.mxu0 0.0
      %1327 = vmatprep.subr.mxu0 0.0
      %1328 = vmatpush1.msra.mxu0 0.0
      %1329 = vmatprep.subr.mxu0 0.0
      %1330 = vmatpush1.msra.mxu0 0.0
      %1331 = vmatprep.subr.mxu0 0.0
      %1332 = vmatpush1.msra.mxu0 0.0
      %1333 = vmatprep.subr.mxu0 0.0
      %1334 = vmatpush1.msra.mxu0 0.0
      %1335 = vmatprep.subr.mxu0 0.0
      %1336 = vmatpush1.msra.mxu0 0.0
      %1337 = vmatprep.subr.mxu0 0.0
      %1338 = vmatpush1.msra.mxu0 0.0
      %1339 = vmatprep.subr.mxu0 0.0
      %1340 = vmatpush1.msra.mxu0 0.0
      %1341 = vmatprep.subr.mxu0 0.0
      %1342 = vmatpush1.msra.mxu0 0.0
      %1343 = vmatprep.subr.mxu0 0.0
      %1344 = vmatpush1.msra.mxu0 0.0
      %1345 = vmatprep.subr.mxu0 0.0
      %1346 = vmatpush1.msra.mxu0 0.0
      %1347 = vmatprep.subr.mxu0 0.0
      %1348 = vmatpush1.msra.mxu0 0.0
      %1349 = vmatprep.subr.mxu0 0.0
      %1350 = vmatpush1.msra.mxu0 0.0
      %1351 = vmatprep.subr.mxu0 0.0
      %1352 = vmatpush1.msra.mxu0 0.0
      %1353 = vmatprep.subr.mxu0 0.0
      %1354 = vmatpush1.msra.mxu0 0.0
      %1355 = vmatprep.subr.mxu0 0.0
      %1356 = vmatpush1.msra.mxu0 0.0
      %1357 = vmatprep.subr.mxu0 0.0
      %1358 = vmatpush1.msra.mxu0 0.0
      %1359 = vmatprep.subr.mxu0 0.0
      %1360 = vmatpush1.msra.mxu0 0.0
      %1361 = vmatprep.subr.mxu0 0.0
      %1362 = vmatpush1.msra.mxu0 0.0
      %1363 = vmatprep.subr.mxu0 0.0
      %1364 = vmatpush1.msra.mxu0 0.0
      %1365 = vmatprep.subr.mxu0 0.0
      %1366 = vmatpush1.msra.mxu0 0.0
      %1367 = vmatprep.subr.mxu0 0.0
      %1368 = vmatpush1.msra.mxu0 0.0
      %1369 = vmatprep.mubr.f32.mxu0 0.0
      %1370 = vmatmul.mubr.f32.gmra.mrb[0].mxu0 %v1254
      %v1371 = vpop.f32.mrb[0].mxu0
      %v1372 = vadd.f32 0.0, %v1371
      %v1373 = vpop.f32.mrb[0].mxu0
      %1374 = vmatprep.mubr.f32.mxu0 0.0
      %1375 = vmatmul.mubr.f32.gmra.mrb[0].mxu0 %v1257
      %v1376 = vpop.f32.mrb[0].mxu0
      %v1377 = vadd.f32 0.0, %v1376
      %v1378 = vpop.f32.mrb[0].mxu0
      %1379 = vmatprep.mubr.f32.mxu0 0.0
      %1380 = vmatmul.mubr.f32.gmra.mrb[0].mxu0 %v1260
      %v1381 = vpop.f32.mrb[0].mxu0
      %v1382 = vadd.f32 0.0, %v1381
      %v1383 = vpop.f32.mrb[0].mxu0
      %1384 = vmatprep.mubr.f32.mxu0 0.0
      %1385 = vmatmul.mubr.f32.gmra.mrb[0].mxu0 %v1263
      %v1386 = vpop.f32.mrb[0].mxu0
      %v1387 = vadd.f32 0.0, %v1386
      %v1388 = vpop.f32.mrb[0].mxu0
      %1389 = vmatprep.mubr.f32.mxu0 0.0
      %1390 = vmatmul.mubr.f32.gmra.mrb[0].mxu0 %v1266
      %v1391 = vpop.f32.mrb[0].mxu0
      %v1392 = vadd.f32 0.0, %v1391
      %v1393 = vpop.f32.mrb[0].mxu0
      %1394 = vmatprep.mubr.f32.mxu0 0.0
      %1395 = vmatmul.mubr.f32.gmra.mrb[0].mxu0 %v1269
      %v1396 = vpop.f32.mrb[0].mxu0
      %v1397 = vadd.f32 0.0, %v1396
      %v1398 = vpop.f32.mrb[0].mxu0
      %1399 = vmatprep.mubr.f32.mxu0 0.0
      %1400 = vmatmul.mubr.f32.gmra.mrb[0].mxu0 %v1272
      %v1401 = vpop.f32.mrb[0].mxu0
      %v1402 = vadd.f32 0.0, %v1401
      %v1403 = vpop.f32.mrb[0].mxu0
      %1404 = vmatprep.mubr.f32.mxu0 0.0
      %1405 = vmatmul.mubr.f32.gmra.mrb[0].mxu0 %v1275
      %v1406 = vpop.f32.mrb[0].mxu0
      %v1407 = vadd.f32 0.0, %v1406
      %v1408 = vpop.f32.mrb[0].mxu0
      %1409 = vmatprep.mubr.f32.mxu0 0.0
      %1410 = vmatmul.mubr.f32.gmra.mrb[0].mxu0 %v1278
      %v1411 = vpop.f32.mrb[0].mxu0
      %v1412 = vadd.f32 0.0, %v1411
      %v1413 = vpop.f32.mrb[0].mxu0
      %1414 = vmatprep.mubr.f32.mxu0 0.0
      %1415 = vmatmul.mubr.f32.gmra.mrb[0].mxu0 %v1281
      %v1416 = vpop.f32.mrb[0].mxu0
      %v1417 = vadd.f32 0.0, %v1416
      %v1418 = vpop.f32.mrb[0].mxu0
      %1419 = vmatprep.mubr.f32.mxu0 0.0
      %1420 = vmatmul.mubr.f32.gmra.mrb[0].mxu0 %v1284
      %v1421 = vpop.f32.mrb[0].mxu0
      %v1422 = vadd.f32 0.0, %v1421
      %v1423 = vpop.f32.mrb[0].mxu0
      %1424 = vmatprep.mubr.f32.mxu0 0.0
      %1425 = vmatmul.mubr.f32.gmra.mrb[0].mxu0 %v1287
      %v1426 = vpop.f32.mrb[0].mxu0
      %v1427 = vadd.f32 0.0, %v1426
      %v1428 = vpop.f32.mrb[0].mxu0
      %1429 = vmatprep.mubr.f32.mxu0 0.0
      %1430 = vmatmul.mubr.f32.gmra.mrb[0].mxu0 %v1290
      %v1431 = vpop.f32.mrb[0].mxu0
      %v1432 = vadd.f32 0.0, %v1431
      %v1433 = vpop.f32.mrb[0].mxu0
      %1434 = vmatprep.mubr.f32.mxu0 0.0
      %1435 = vmatmul.mubr.f32.gmra.mrb[0].mxu0 %v1293
      %v1436 = vpop.f32.mrb[0].mxu0
      %v1437 = vadd.f32 0.0, %v1436
      %v1438 = vpop.f32.mrb[0].mxu0
      %1439 = vmatprep.mubr.f32.mxu0 0.0
      %1440 = vmatmul.mubr.f32.gmra.mrb[0].mxu0 %v1296
      %v1441 = vpop.f32.mrb[0].mxu0
      %v1442 = vadd.f32 0.0, %v1441
      %v1443 = vpop.f32.mrb[0].mxu0
      %1444 = vmatprep.mubr.f32.mxu0 0.0
      %1445 = vmatmul.mubr.f32.gmra.mrb[0].mxu0 %v1299
      %v1446 = vpop.f32.mrb[0].mxu0
      %v1447 = vadd.f32 0.0, %v1446
      %v1448 = vpop.f32.mrb[0].mxu0
      %1449 = vdwg.mxu0
      %v1451 = vsel %vm1172, %v1218, 0
      %v1454 = vsel %vm1172, %v1219, 0
      %v1457 = vsel %vm1172, %v1220, 0
      %v1460 = vsel %vm1172, %v1221, 0
      %v1463 = vsel %vm1172, %v1222, 0
      %v1466 = vsel %vm1172, %v1223, 0
      %v1469 = vsel %vm1172, %v1224, 0
      %v1472 = vsel %vm1172, %v1225, 0
      %v1475 = vsel %vm1172, %v1226, 0
      %v1478 = vsel %vm1172, %v1227, 0
      %v1481 = vsel %vm1172, %v1228, 0
      %v1484 = vsel %vm1172, %v1229, 0
      %v1487 = vsel %vm1172, %v1230, 0
      %v1490 = vsel %vm1172, %v1231, 0
      %v1493 = vsel %vm1172, %v1232, 0
      %v1496 = vsel %vm1172, %v1233, 0
      %v1499 = vsel %vm1301, %v1234, 0
      %1501 = vmatprep.subr.mxu0 0.0
      %1502 = vmatpush1.msra.mxu0 %v1499
      %1503 = vmatprep.subr.mxu0 0.0
      %1504 = vmatpush1.msra.mxu0 0.0
      %1505 = vmatprep.subr.mxu0 0.0
      %1506 = vmatpush1.msra.mxu0 0.0
      %1507 = vmatprep.subr.mxu0 0.0
      %1508 = vmatpush1.msra.mxu0 0.0
      %1509 = vmatprep.subr.mxu0 0.0
      %1510 = vmatpush1.msra.mxu0 0.0
      %1511 = vmatprep.subr.mxu0 0.0
      %1512 = vmatpush1.msra.mxu0 0.0
      %1513 = vmatprep.subr.mxu0 0.0
      %1514 = vmatpush1.msra.mxu0 0.0
      %1515 = vmatprep.subr.mxu0 0.0
      %1516 = vmatpush1.msra.mxu0 0.0
      %1517 = vmatprep.subr.mxu0 0.0
      %1518 = vmatpush1.msra.mxu0 0.0
      %1519 = vmatprep.subr.mxu0 0.0
      %1520 = vmatpush1.msra.mxu0 0.0
      %1521 = vmatprep.subr.mxu0 0.0
      %1522 = vmatpush1.msra.mxu0 0.0
      %1523 = vmatprep.subr.mxu0 0.0
      %1524 = vmatpush1.msra.mxu0 0.0
      %1525 = vmatprep.subr.mxu0 0.0
      %1526 = vmatpush1.msra.mxu0 0.0
      %1527 = vmatprep.subr.mxu0 0.0
      %1528 = vmatpush1.msra.mxu0 0.0
      %1529 = vmatprep.subr.mxu0 0.0
      %1530 = vmatpush1.msra.mxu0 0.0
      %1531 = vmatprep.subr.mxu0 0.0
      %1532 = vmatpush1.msra.mxu0 0.0
      %1533 = vmatprep.subr.mxu0 0.0
      %1534 = vmatpush1.msra.mxu0 0.0
      %1535 = vmatprep.subr.mxu0 0.0
      %1536 = vmatpush1.msra.mxu0 0.0
      %1537 = vmatprep.subr.mxu0 0.0
      %1538 = vmatpush1.msra.mxu0 0.0
      %1539 = vmatprep.subr.mxu0 0.0
      %1540 = vmatpush1.msra.mxu0 0.0
      %1541 = vmatprep.subr.mxu0 0.0
      %1542 = vmatpush1.msra.mxu0 0.0
      %1543 = vmatprep.subr.mxu0 0.0
      %1544 = vmatpush1.msra.mxu0 0.0
      %1545 = vmatprep.subr.mxu0 0.0
      %1546 = vmatpush1.msra.mxu0 0.0
      %1547 = vmatprep.subr.mxu0 0.0
      %1548 = vmatpush1.msra.mxu0 0.0
      %1549 = vmatprep.subr.mxu0 0.0
      %1550 = vmatpush1.msra.mxu0 0.0
      %1551 = vmatprep.subr.mxu0 0.0
      %1552 = vmatpush1.msra.mxu0 0.0
      %1553 = vmatprep.subr.mxu0 0.0
      %1554 = vmatpush1.msra.mxu0 0.0
      %1555 = vmatprep.subr.mxu0 0.0
      %1556 = vmatpush1.msra.mxu0 0.0
      %1557 = vmatprep.subr.mxu0 0.0
      %1558 = vmatpush1.msra.mxu0 0.0
      %1559 = vmatprep.subr.mxu0 0.0
      %1560 = vmatpush1.msra.mxu0 0.0
      %1561 = vmatprep.subr.mxu0 0.0
      %1562 = vmatpush1.msra.mxu0 0.0
      %1563 = vmatprep.subr.mxu0 0.0
      %1564 = vmatpush1.msra.mxu0 0.0
      %1565 = vmatprep.mubr.f32.mxu0 0.0
      %1566 = vmatmul.mubr.f32.gmra.mrb[0].mxu0 %v1451
      %v1567 = vpop.f32.mrb[0].mxu0
      %v1568 = vadd.f32 %v1372, %v1567
      %v1569 = vpop.f32.mrb[0].mxu0
      %1570 = vmatprep.mubr.f32.mxu0 0.0
      %1571 = vmatmul.mubr.f32.gmra.mrb[0].mxu0 %v1454
      %v1572 = vpop.f32.mrb[0].mxu0
      %v1573 = vadd.f32 %v1377, %v1572
      %v1574 = vpop.f32.mrb[0].mxu0
      %1575 = vmatprep.mubr.f32.mxu0 0.0
      %1576 = vmatmul.mubr.f32.gmra.mrb[0].mxu0 %v1457
      %v1577 = vpop.f32.mrb[0].mxu0
      %v1578 = vadd.f32 %v1382, %v1577
      %v1579 = vpop.f32.mrb[0].mxu0
      %1580 = vmatprep.mubr.f32.mxu0 0.0
      %1581 = vmatmul.mubr.f32.gmra.mrb[0].mxu0 %v1460
      %v1582 = vpop.f32.mrb[0].mxu0
      %v1583 = vadd.f32 %v1387, %v1582
      %v1584 = vpop.f32.mrb[0].mxu0
      %1585 = vmatprep.mubr.f32.mxu0 0.0
      %1586 = vmatmul.mubr.f32.gmra.mrb[0].mxu0 %v1463
      %v1587 = vpop.f32.mrb[0].mxu0
      %v1588 = vadd.f32 %v1392, %v1587
      %v1589 = vpop.f32.mrb[0].mxu0
      %1590 = vmatprep.mubr.f32.mxu0 0.0
      %1591 = vmatmul.mubr.f32.gmra.mrb[0].mxu0 %v1466
      %v1592 = vpop.f32.mrb[0].mxu0
      %v1593 = vadd.f32 %v1397, %v1592
      %v1594 = vpop.f32.mrb[0].mxu0
      %1595 = vmatprep.mubr.f32.mxu0 0.0
      %1596 = vmatmul.mubr.f32.gmra.mrb[0].mxu0 %v1469
      %v1597 = vpop.f32.mrb[0].mxu0
      %v1598 = vadd.f32 %v1402, %v1597
      %v1599 = vpop.f32.mrb[0].mxu0
      %1600 = vmatprep.mubr.f32.mxu0 0.0
      %1601 = vmatmul.mubr.f32.gmra.mrb[0].mxu0 %v1472
      %v1602 = vpop.f32.mrb[0].mxu0
      %v1603 = vadd.f32 %v1407, %v1602
      %v1604 = vpop.f32.mrb[0].mxu0
      %1605 = vmatprep.mubr.f32.mxu0 0.0
      %1606 = vmatmul.mubr.f32.gmra.mrb[0].mxu0 %v1475
      %v1607 = vpop.f32.mrb[0].mxu0
      %v1608 = vadd.f32 %v1412, %v1607
      %v1609 = vpop.f32.mrb[0].mxu0
      %1610 = vmatprep.mubr.f32.mxu0 0.0
      %1611 = vmatmul.mubr.f32.gmra.mrb[0].mxu0 %v1478
      %v1612 = vpop.f32.mrb[0].mxu0
      %v1613 = vadd.f32 %v1417, %v1612
      %v1614 = vpop.f32.mrb[0].mxu0
      %1615 = vmatprep.mubr.f32.mxu0 0.0
      %1616 = vmatmul.mubr.f32.gmra.mrb[0].mxu0 %v1481
      %v1617 = vpop.f32.mrb[0].mxu0
      %v1618 = vadd.f32 %v1422, %v1617
      %v1619 = vpop.f32.mrb[0].mxu0
      %1620 = vmatprep.mubr.f32.mxu0 0.0
      %1621 = vmatmul.mubr.f32.gmra.mrb[0].mxu0 %v1484
      %v1622 = vpop.f32.mrb[0].mxu0
      %v1623 = vadd.f32 %v1427, %v1622
      %v1624 = vpop.f32.mrb[0].mxu0
      %1625 = vmatprep.mubr.f32.mxu0 0.0
      %1626 = vmatmul.mubr.f32.gmra.mrb[0].mxu0 %v1487
      %v1627 = vpop.f32.mrb[0].mxu0
      %v1628 = vadd.f32 %v1432, %v1627
      %v1629 = vpop.f32.mrb[0].mxu0
      %1630 = vmatprep.mubr.f32.mxu0 0.0
      %1631 = vmatmul.mubr.f32.gmra.mrb[0].mxu0 %v1490
      %v1632 = vpop.f32.mrb[0].mxu0
      %v1633 = vadd.f32 %v1437, %v1632
      %v1634 = vpop.f32.mrb[0].mxu0
      %1635 = vmatprep.mubr.f32.mxu0 0.0
      %1636 = vmatmul.mubr.f32.gmra.mrb[0].mxu0 %v1493
      %v1637 = vpop.f32.mrb[0].mxu0
      %v1638 = vadd.f32 %v1442, %v1637
      %v1639 = vpop.f32.mrb[0].mxu0
      %1640 = vmatprep.mubr.f32.mxu0 0.0
      %1641 = vmatmul.mubr.f32.gmra.mrb[0].mxu0 %v1496
      %v1642 = vpop.f32.mrb[0].mxu0
      %v1643 = vadd.f32 %v1447, %v1642
      %v1644 = vpop.f32.mrb[0].mxu0
      %1645 = vdwg.mxu0
      %v1646 = vld [vmem:[#allocation2 + $0x2] sm:$0xff]
      %v1647 = vld [vmem:[#allocation2 + $0xa] sm:$0xff]
      %v1648 = vld [vmem:[#allocation2 + $0x1a] sm:$0xff]
      %v1649 = vld [vmem:[#allocation2 + $0x22] sm:$0xff]
      %v1650 = vld [vmem:[#allocation2 + $0x32] sm:$0xff]
      %v1651 = vld [vmem:[#allocation2 + $0x3a] sm:$0xff]
      %v1652 = vld [vmem:[#allocation2 + $0x4a] sm:$0xff]
      %v1653 = vld [vmem:[#allocation2 + $0x52] sm:$0xff]
      %v1654 = vld [vmem:[#allocation2 + $0x62] sm:$0xff]
      %v1655 = vld [vmem:[#allocation2 + $0x6a] sm:$0xff]
      %v1656 = vld [vmem:[#allocation2 + $0x7a] sm:$0xff]
      %v1657 = vld [vmem:[#allocation2 + $0x82] sm:$0xff]
      %v1658 = vld [vmem:[#allocation2 + $0x92] sm:$0xff]
      %v1659 = vld [vmem:[#allocation2 + $0x9a] sm:$0xff]
      %v1660 = vld [vmem:[#allocation2 + $0xaa] sm:$0xff]
      %v1661 = vld [vmem:[#allocation2 + $0xb2] sm:$0xff]
      %s1662 = scalar_lea.vmem %s7, 4
      %v1663 = vld [vmem:[%s1662] sm:$0x3]
      %v1665 = vsel %vm1172, %v1646, 0
      %v1668 = vsel %vm1172, %v1647, 0
      %v1671 = vsel %vm1172, %v1648, 0
      %v1674 = vsel %vm1172, %v1649, 0
      %v1677 = vsel %vm1172, %v1650, 0
      %v1680 = vsel %vm1172, %v1651, 0
      %v1683 = vsel %vm1172, %v1652, 0
      %v1686 = vsel %vm1172, %v1653, 0
      %v1689 = vsel %vm1172, %v1654, 0
      %v1692 = vsel %vm1172, %v1655, 0
      %v1695 = vsel %vm1172, %v1656, 0
      %v1698 = vsel %vm1172, %v1657, 0
      %v1701 = vsel %vm1172, %v1658, 0
      %v1704 = vsel %vm1172, %v1659, 0
      %v1707 = vsel %vm1172, %v1660, 0
      %v1710 = vsel %vm1172, %v1661, 0
      %v1713 = vsel %vm1301, %v1663, 0
      %1715 = vmatprep.subr.mxu0 0.0
      %1716 = vmatpush1.msra.mxu0 %v1713
      %1717 = vmatprep.subr.mxu0 0.0
      %1718 = vmatpush1.msra.mxu0 0.0
      %1719 = vmatprep.subr.mxu0 0.0
      %1720 = vmatpush1.msra.mxu0 0.0
      %1721 = vmatprep.subr.mxu0 0.0
      %1722 = vmatpush1.msra.mxu0 0.0
      %1723 = vmatprep.subr.mxu0 0.0
      %1724 = vmatpush1.msra.mxu0 0.0
      %1725 = vmatprep.subr.mxu0 0.0
      %1726 = vmatpush1.msra.mxu0 0.0
      %1727 = vmatprep.subr.mxu0 0.0
      %1728 = vmatpush1.msra.mxu0 0.0
      %1729 = vmatprep.subr.mxu0 0.0
      %1730 = vmatpush1.msra.mxu0 0.0
      %1731 = vmatprep.subr.mxu0 0.0
      %1732 = vmatpush1.msra.mxu0 0.0
      %1733 = vmatprep.subr.mxu0 0.0
      %1734 = vmatpush1.msra.mxu0 0.0
      %1735 = vmatprep.subr.mxu0 0.0
      %1736 = vmatpush1.msra.mxu0 0.0
      %1737 = vmatprep.subr.mxu0 0.0
      %1738 = vmatpush1.msra.mxu0 0.0
      %1739 = vmatprep.subr.mxu0 0.0
      %1740 = vmatpush1.msra.mxu0 0.0
      %1741 = vmatprep.subr.mxu0 0.0
      %1742 = vmatpush1.msra.mxu0 0.0
      %1743 = vmatprep.subr.mxu0 0.0
      %1744 = vmatpush1.msra.mxu0 0.0
      %1745 = vmatprep.subr.mxu0 0.0
      %1746 = vmatpush1.msra.mxu0 0.0
      %1747 = vmatprep.subr.mxu0 0.0
      %1748 = vmatpush1.msra.mxu0 0.0
      %1749 = vmatprep.subr.mxu0 0.0
      %1750 = vmatpush1.msra.mxu0 0.0
      %1751 = vmatprep.subr.mxu0 0.0
      %1752 = vmatpush1.msra.mxu0 0.0
      %1753 = vmatprep.subr.mxu0 0.0
      %1754 = vmatpush1.msra.mxu0 0.0
      %1755 = vmatprep.subr.mxu0 0.0
      %1756 = vmatpush1.msra.mxu0 0.0
      %1757 = vmatprep.subr.mxu0 0.0
      %1758 = vmatpush1.msra.mxu0 0.0
      %1759 = vmatprep.subr.mxu0 0.0
      %1760 = vmatpush1.msra.mxu0 0.0
      %1761 = vmatprep.subr.mxu0 0.0
      %1762 = vmatpush1.msra.mxu0 0.0
      %1763 = vmatprep.subr.mxu0 0.0
      %1764 = vmatpush1.msra.mxu0 0.0
      %1765 = vmatprep.subr.mxu0 0.0
      %1766 = vmatpush1.msra.mxu0 0.0
      %1767 = vmatprep.subr.mxu0 0.0
      %1768 = vmatpush1.msra.mxu0 0.0
      %1769 = vmatprep.subr.mxu0 0.0
      %1770 = vmatpush1.msra.mxu0 0.0
      %1771 = vmatprep.subr.mxu0 0.0
      %1772 = vmatpush1.msra.mxu0 0.0
      %1773 = vmatprep.subr.mxu0 0.0
      %1774 = vmatpush1.msra.mxu0 0.0
      %1775 = vmatprep.subr.mxu0 0.0
      %1776 = vmatpush1.msra.mxu0 0.0
      %1777 = vmatprep.subr.mxu0 0.0
      %1778 = vmatpush1.msra.mxu0 0.0
      %1779 = vmatprep.mubr.f32.mxu0 0.0
      %1780 = vmatmul.mubr.f32.gmra.mrb[0].mxu0 %v1665
      %v1781 = vpop.f32.mrb[0].mxu0
      %v1782 = vadd.f32 0.0, %v1781
      %v1783 = vpop.f32.mrb[0].mxu0
      %1784 = vmatprep.mubr.f32.mxu0 0.0
      %1785 = vmatmul.mubr.f32.gmra.mrb[0].mxu0 %v1668
      %v1786 = vpop.f32.mrb[0].mxu0
      %v1787 = vadd.f32 0.0, %v1786
      %v1788 = vpop.f32.mrb[0].mxu0
      %1789 = vmatprep.mubr.f32.mxu0 0.0
      %1790 = vmatmul.mubr.f32.gmra.mrb[0].mxu0 %v1671
      %v1791 = vpop.f32.mrb[0].mxu0
      %v1792 = vadd.f32 0.0, %v1791
      %v1793 = vpop.f32.mrb[0].mxu0
      %1794 = vmatprep.mubr.f32.mxu0 0.0
      %1795 = vmatmul.mubr.f32.gmra.mrb[0].mxu0 %v1674
      %v1796 = vpop.f32.mrb[0].mxu0
      %v1797 = vadd.f32 0.0, %v1796
      %v1798 = vpop.f32.mrb[0].mxu0
      %1799 = vmatprep.mubr.f32.mxu0 0.0
      %1800 = vmatmul.mubr.f32.gmra.mrb[0].mxu0 %v1677
      %v1801 = vpop.f32.mrb[0].mxu0
      %v1802 = vadd.f32 0.0, %v1801
      %v1803 = vpop.f32.mrb[0].mxu0
      %1804 = vmatprep.mubr.f32.mxu0 0.0
      %1805 = vmatmul.mubr.f32.gmra.mrb[0].mxu0 %v1680
      %v1806 = vpop.f32.mrb[0].mxu0
      %v1807 = vadd.f32 0.0, %v1806
      %v1808 = vpop.f32.mrb[0].mxu0
      %1809 = vmatprep.mubr.f32.mxu0 0.0
      %1810 = vmatmul.mubr.f32.gmra.mrb[0].mxu0 %v1683
      %v1811 = vpop.f32.mrb[0].mxu0
      %v1812 = vadd.f32 0.0, %v1811
      %v1813 = vpop.f32.mrb[0].mxu0
      %1814 = vmatprep.mubr.f32.mxu0 0.0
      %1815 = vmatmul.mubr.f32.gmra.mrb[0].mxu0 %v1686
      %v1816 = vpop.f32.mrb[0].mxu0
      %v1817 = vadd.f32 0.0, %v1816
      %v1818 = vpop.f32.mrb[0].mxu0
      %1819 = vmatprep.mubr.f32.mxu0 0.0
      %1820 = vmatmul.mubr.f32.gmra.mrb[0].mxu0 %v1689
      %v1821 = vpop.f32.mrb[0].mxu0
      %v1822 = vadd.f32 0.0, %v1821
      %v1823 = vpop.f32.mrb[0].mxu0
      %1824 = vmatprep.mubr.f32.mxu0 0.0
      %1825 = vmatmul.mubr.f32.gmra.mrb[0].mxu0 %v1692
      %v1826 = vpop.f32.mrb[0].mxu0
      %v1827 = vadd.f32 0.0, %v1826
      %v1828 = vpop.f32.mrb[0].mxu0
      %1829 = vmatprep.mubr.f32.mxu0 0.0
      %1830 = vmatmul.mubr.f32.gmra.mrb[0].mxu0 %v1695
      %v1831 = vpop.f32.mrb[0].mxu0
      %v1832 = vadd.f32 0.0, %v1831
      %v1833 = vpop.f32.mrb[0].mxu0
      %1834 = vmatprep.mubr.f32.mxu0 0.0
      %1835 = vmatmul.mubr.f32.gmra.mrb[0].mxu0 %v1698
      %v1836 = vpop.f32.mrb[0].mxu0
      %v1837 = vadd.f32 0.0, %v1836
      %v1838 = vpop.f32.mrb[0].mxu0
      %1839 = vmatprep.mubr.f32.mxu0 0.0
      %1840 = vmatmul.mubr.f32.gmra.mrb[0].mxu0 %v1701
      %v1841 = vpop.f32.mrb[0].mxu0
      %v1842 = vadd.f32 0.0, %v1841
      %v1843 = vpop.f32.mrb[0].mxu0
      %1844 = vmatprep.mubr.f32.mxu0 0.0
      %1845 = vmatmul.mubr.f32.gmra.mrb[0].mxu0 %v1704
      %v1846 = vpop.f32.mrb[0].mxu0
      %v1847 = vadd.f32 0.0, %v1846
      %v1848 = vpop.f32.mrb[0].mxu0
      %1849 = vmatprep.mubr.f32.mxu0 0.0
      %1850 = vmatmul.mubr.f32.gmra.mrb[0].mxu0 %v1707
      %v1851 = vpop.f32.mrb[0].mxu0
      %v1852 = vadd.f32 0.0, %v1851
      %v1853 = vpop.f32.mrb[0].mxu0
      %1854 = vmatprep.mubr.f32.mxu0 0.0
      %1855 = vmatmul.mubr.f32.gmra.mrb[0].mxu0 %v1710
      %v1856 = vpop.f32.mrb[0].mxu0
      %v1857 = vadd.f32 0.0, %v1856
      %v1858 = vpop.f32.mrb[0].mxu0
      %1859 = vdwg.mxu0
      %v1860 = vadd.f32 %v1568, %v1782
      %v1861 = vadd.f32 %v1573, %v1787
      %v1862 = vadd.f32 %v1578, %v1792
      %v1863 = vadd.f32 %v1583, %v1797
      %v1864 = vadd.f32 %v1588, %v1802
      %v1865 = vadd.f32 %v1593, %v1807
      %v1866 = vadd.f32 %v1598, %v1812
      %v1867 = vadd.f32 %v1603, %v1817
      %v1868 = vadd.f32 %v1608, %v1822
      %v1869 = vadd.f32 %v1613, %v1827
      %v1870 = vadd.f32 %v1618, %v1832
      %v1871 = vadd.f32 %v1623, %v1837
      %v1872 = vadd.f32 %v1628, %v1842
      %v1873 = vadd.f32 %v1633, %v1847
      %v1874 = vadd.f32 %v1638, %v1852
      %v1875 = vadd.f32 %v1643, %v1857
      %v1876 = vld [vmem:[%s1198] sm:$0xff]
      %v1877 = vld [vmem:[%s1198 + $0x8] sm:$0xff]
      %v1878 = vld [vmem:[%s1198 + $0x18] sm:$0xff]
      %v1879 = vld [vmem:[%s1198 + $0x20] sm:$0xff]
      %v1880 = vld [vmem:[%s1198 + $0x30] sm:$0xff]
      %v1881 = vld [vmem:[%s1198 + $0x38] sm:$0xff]
      %v1882 = vld [vmem:[%s1198 + $0x48] sm:$0xff]
      %v1883 = vld [vmem:[%s1198 + $0x50] sm:$0xff]
      %v1884 = vld [vmem:[%s1198 + $0x60] sm:$0xff]
      %v1885 = vld [vmem:[%s1198 + $0x68] sm:$0xff]
      %v1886 = vld [vmem:[%s1198 + $0x78] sm:$0xff]
      %v1887 = vld [vmem:[%s1198 + $0x80] sm:$0xff]
      %v1888 = vld [vmem:[%s1198 + $0x90] sm:$0xff]
      %v1889 = vld [vmem:[%s1198 + $0x98] sm:$0xff]
      %v1890 = vld [vmem:[%s1198 + $0xa8] sm:$0xff]
      %v1891 = vld [vmem:[%s1198 + $0xb0] sm:$0xff]
      %s1892 = scalar_lea.vmem %s7, 6
      %v1893 = vld [vmem:[%s1892] sm:$0x3]
      %v1895 = vsel %vm1172, %v1876, 0
      %v1898 = vsel %vm1172, %v1877, 0
      %v1901 = vsel %vm1172, %v1878, 0
      %v1904 = vsel %vm1172, %v1879, 0
      %v1907 = vsel %vm1172, %v1880, 0
      %v1910 = vsel %vm1172, %v1881, 0
      %v1913 = vsel %vm1172, %v1882, 0
      %v1916 = vsel %vm1172, %v1883, 0
      %v1919 = vsel %vm1172, %v1884, 0
      %v1922 = vsel %vm1172, %v1885, 0
      %v1925 = vsel %vm1172, %v1886, 0
      %v1928 = vsel %vm1172, %v1887, 0
      %v1931 = vsel %vm1172, %v1888, 0
      %v1934 = vsel %vm1172, %v1889, 0
      %v1937 = vsel %vm1172, %v1890, 0
      %v1940 = vsel %vm1172, %v1891, 0
      %v1943 = vsel %vm1301, %v1893, 0
      %1945 = vmatprep.subr.mxu0 0.0
      %1946 = vmatpush1.msra.mxu0 %v1943
      %1947 = vmatprep.subr.mxu0 0.0
      %1948 = vmatpush1.msra.mxu0 0.0
      %1949 = vmatprep.subr.mxu0 0.0
      %1950 = vmatpush1.msra.mxu0 0.0
      %1951 = vmatprep.subr.mxu0 0.0
      %1952 = vmatpush1.msra.mxu0 0.0
      %1953 = vmatprep.subr.mxu0 0.0
      %1954 = vmatpush1.msra.mxu0 0.0
      %1955 = vmatprep.subr.mxu0 0.0
      %1956 = vmatpush1.msra.mxu0 0.0
      %1957 = vmatprep.subr.mxu0 0.0
      %1958 = vmatpush1.msra.mxu0 0.0
      %1959 = vmatprep.subr.mxu0 0.0
      %1960 = vmatpush1.msra.mxu0 0.0
      %1961 = vmatprep.subr.mxu0 0.0
      %1962 = vmatpush1.msra.mxu0 0.0
      %1963 = vmatprep.subr.mxu0 0.0
      %1964 = vmatpush1.msra.mxu0 0.0
      %1965 = vmatprep.subr.mxu0 0.0
      %1966 = vmatpush1.msra.mxu0 0.0
      %1967 = vmatprep.subr.mxu0 0.0
      %1968 = vmatpush1.msra.mxu0 0.0
      %1969 = vmatprep.subr.mxu0 0.0
      %1970 = vmatpush1.msra.mxu0 0.0
      %1971 = vmatprep.subr.mxu0 0.0
      %1972 = vmatpush1.msra.mxu0 0.0
      %1973 = vmatprep.subr.mxu0 0.0
      %1974 = vmatpush1.msra.mxu0 0.0
      %1975 = vmatprep.subr.mxu0 0.0
      %1976 = vmatpush1.msra.mxu0 0.0
      %1977 = vmatprep.subr.mxu0 0.0
      %1978 = vmatpush1.msra.mxu0 0.0
      %1979 = vmatprep.subr.mxu0 0.0
      %1980 = vmatpush1.msra.mxu0 0.0
      %1981 = vmatprep.subr.mxu0 0.0
      %1982 = vmatpush1.msra.mxu0 0.0
      %1983 = vmatprep.subr.mxu0 0.0
      %1984 = vmatpush1.msra.mxu0 0.0
      %1985 = vmatprep.subr.mxu0 0.0
      %1986 = vmatpush1.msra.mxu0 0.0
      %1987 = vmatprep.subr.mxu0 0.0
      %1988 = vmatpush1.msra.mxu0 0.0
      %1989 = vmatprep.subr.mxu0 0.0
      %1990 = vmatpush1.msra.mxu0 0.0
      %1991 = vmatprep.subr.mxu0 0.0
      %1992 = vmatpush1.msra.mxu0 0.0
      %1993 = vmatprep.subr.mxu0 0.0
      %1994 = vmatpush1.msra.mxu0 0.0
      %1995 = vmatprep.subr.mxu0 0.0
      %1996 = vmatpush1.msra.mxu0 0.0
      %1997 = vmatprep.subr.mxu0 0.0
      %1998 = vmatpush1.msra.mxu0 0.0
      %1999 = vmatprep.subr.mxu0 0.0
      %2000 = vmatpush1.msra.mxu0 0.0
      %2001 = vmatprep.subr.mxu0 0.0
      %2002 = vmatpush1.msra.mxu0 0.0
      %2003 = vmatprep.subr.mxu0 0.0
      %2004 = vmatpush1.msra.mxu0 0.0
      %2005 = vmatprep.subr.mxu0 0.0
      %2006 = vmatpush1.msra.mxu0 0.0
      %2007 = vmatprep.subr.mxu0 0.0
      %2008 = vmatpush1.msra.mxu0 0.0
      %2009 = vmatprep.mubr.f32.mxu0 0.0
      %2010 = vmatmul.mubr.f32.gmra.mrb[0].mxu0 %v1895
      %v2011 = vpop.f32.mrb[0].mxu0
      %v2012 = vadd.f32 0.0, %v2011
      %v2013 = vpop.f32.mrb[0].mxu0
      %2014 = vmatprep.mubr.f32.mxu0 0.0
      %2015 = vmatmul.mubr.f32.gmra.mrb[0].mxu0 %v1898
      %v2016 = vpop.f32.mrb[0].mxu0
      %v2017 = vadd.f32 0.0, %v2016
      %v2018 = vpop.f32.mrb[0].mxu0
      %2019 = vmatprep.mubr.f32.mxu0 0.0
      %2020 = vmatmul.mubr.f32.gmra.mrb[0].mxu0 %v1901
      %v2021 = vpop.f32.mrb[0].mxu0
      %v2022 = vadd.f32 0.0, %v2021
      %v2023 = vpop.f32.mrb[0].mxu0
      %2024 = vmatprep.mubr.f32.mxu0 0.0
      %2025 = vmatmul.mubr.f32.gmra.mrb[0].mxu0 %v1904
      %v2026 = vpop.f32.mrb[0].mxu0
      %v2027 = vadd.f32 0.0, %v2026
      %v2028 = vpop.f32.mrb[0].mxu0
      %2029 = vmatprep.mubr.f32.mxu0 0.0
      %2030 = vmatmul.mubr.f32.gmra.mrb[0].mxu0 %v1907
      %v2031 = vpop.f32.mrb[0].mxu0
      %v2032 = vadd.f32 0.0, %v2031
      %v2033 = vpop.f32.mrb[0].mxu0
      %2034 = vmatprep.mubr.f32.mxu0 0.0
      %2035 = vmatmul.mubr.f32.gmra.mrb[0].mxu0 %v1910
      %v2036 = vpop.f32.mrb[0].mxu0
      %v2037 = vadd.f32 0.0, %v2036
      %v2038 = vpop.f32.mrb[0].mxu0
      %2039 = vmatprep.mubr.f32.mxu0 0.0
      %2040 = vmatmul.mubr.f32.gmra.mrb[0].mxu0 %v1913
      %v2041 = vpop.f32.mrb[0].mxu0
      %v2042 = vadd.f32 0.0, %v2041
      %v2043 = vpop.f32.mrb[0].mxu0
      %2044 = vmatprep.mubr.f32.mxu0 0.0
      %2045 = vmatmul.mubr.f32.gmra.mrb[0].mxu0 %v1916
      %v2046 = vpop.f32.mrb[0].mxu0
      %v2047 = vadd.f32 0.0, %v2046
      %v2048 = vpop.f32.mrb[0].mxu0
      %2049 = vmatprep.mubr.f32.mxu0 0.0
      %2050 = vmatmul.mubr.f32.gmra.mrb[0].mxu0 %v1919
      %v2051 = vpop.f32.mrb[0].mxu0
      %v2052 = vadd.f32 0.0, %v2051
      %v2053 = vpop.f32.mrb[0].mxu0
      %2054 = vmatprep.mubr.f32.mxu0 0.0
      %2055 = vmatmul.mubr.f32.gmra.mrb[0].mxu0 %v1922
      %v2056 = vpop.f32.mrb[0].mxu0
      %v2057 = vadd.f32 0.0, %v2056
      %v2058 = vpop.f32.mrb[0].mxu0
      %2059 = vmatprep.mubr.f32.mxu0 0.0
      %2060 = vmatmul.mubr.f32.gmra.mrb[0].mxu0 %v1925
      %v2061 = vpop.f32.mrb[0].mxu0
      %v2062 = vadd.f32 0.0, %v2061
      %v2063 = vpop.f32.mrb[0].mxu0
      %2064 = vmatprep.mubr.f32.mxu0 0.0
      %2065 = vmatmul.mubr.f32.gmra.mrb[0].mxu0 %v1928
      %v2066 = vpop.f32.mrb[0].mxu0
      %v2067 = vadd.f32 0.0, %v2066
      %v2068 = vpop.f32.mrb[0].mxu0
      %2069 = vmatprep.mubr.f32.mxu0 0.0
      %2070 = vmatmul.mubr.f32.gmra.mrb[0].mxu0 %v1931
      %v2071 = vpop.f32.mrb[0].mxu0
      %v2072 = vadd.f32 0.0, %v2071
      %v2073 = vpop.f32.mrb[0].mxu0
      %2074 = vmatprep.mubr.f32.mxu0 0.0
      %2075 = vmatmul.mubr.f32.gmra.mrb[0].mxu0 %v1934
      %v2076 = vpop.f32.mrb[0].mxu0
      %v2077 = vadd.f32 0.0, %v2076
      %v2078 = vpop.f32.mrb[0].mxu0
      %2079 = vmatprep.mubr.f32.mxu0 0.0
      %2080 = vmatmul.mubr.f32.gmra.mrb[0].mxu0 %v1937
      %v2081 = vpop.f32.mrb[0].mxu0
      %v2082 = vadd.f32 0.0, %v2081
      %v2083 = vpop.f32.mrb[0].mxu0
      %2084 = vmatprep.mubr.f32.mxu0 0.0
      %2085 = vmatmul.mubr.f32.gmra.mrb[0].mxu0 %v1940
      %v2086 = vpop.f32.mrb[0].mxu0
      %v2087 = vadd.f32 0.0, %v2086
      %v2088 = vpop.f32.mrb[0].mxu0
      %2089 = vdwg.mxu0
      %v2090 = vadd.f32 %v1860, %v2012
      %v2091 = vadd.f32 %v1861, %v2017
      %v2092 = vadd.f32 %v1862, %v2022
      %v2093 = vadd.f32 %v1863, %v2027
      %v2094 = vadd.f32 %v1864, %v2032
      %v2095 = vadd.f32 %v1865, %v2037
      %v2096 = vadd.f32 %v1866, %v2042
      %v2097 = vadd.f32 %v1867, %v2047
      %v2098 = vadd.f32 %v1868, %v2052
      %v2099 = vadd.f32 %v1869, %v2057
      %v2100 = vadd.f32 %v1870, %v2062
      %v2101 = vadd.f32 %v1871, %v2067
      %v2102 = vadd.f32 %v1872, %v2072
      %v2103 = vadd.f32 %v1873, %v2077
      %v2104 = vadd.f32 %v1874, %v2082
      %v2105 = vadd.f32 %v1875, %v2087
      %v2106 = vld [vmem:[%s1198 + $0x1] sm:$0xff]
      %v2107 = vld [vmem:[%s1198 + $0x9] sm:$0xff]
      %v2108 = vld [vmem:[%s1198 + $0x19] sm:$0xff]
      %v2109 = vld [vmem:[%s1198 + $0x21] sm:$0xff]
      %v2110 = vld [vmem:[%s1198 + $0x31] sm:$0xff]
      %v2111 = vld [vmem:[%s1198 + $0x39] sm:$0xff]
      %v2112 = vld [vmem:[%s1198 + $0x49] sm:$0xff]
      %v2113 = vld [vmem:[%s1198 + $0x51] sm:$0xff]
      %v2114 = vld [vmem:[%s1198 + $0x61] sm:$0xff]
      %v2115 = vld [vmem:[%s1198 + $0x69] sm:$0xff]
      %v2116 = vld [vmem:[%s1198 + $0x79] sm:$0xff]
      %v2117 = vld [vmem:[%s1198 + $0x81] sm:$0xff]
      %v2118 = vld [vmem:[%s1198 + $0x91] sm:$0xff]
      %v2119 = vld [vmem:[%s1198 + $0x99] sm:$0xff]
      %v2120 = vld [vmem:[%s1198 + $0xa9] sm:$0xff]
      %v2121 = vld [vmem:[%s1198 + $0xb1] sm:$0xff]
      %s2122 = scalar_lea.vmem %s7, 8
      %v2123 = vld [vmem:[%s2122] sm:$0x3]
      %v2125 = vsel %vm1172, %v2106, 0
      %v2128 = vsel %vm1172, %v2107, 0
      %v2131 = vsel %vm1172, %v2108, 0
      %v2134 = vsel %vm1172, %v2109, 0
      %v2137 = vsel %vm1172, %v2110, 0
      %v2140 = vsel %vm1172, %v2111, 0
      %v2143 = vsel %vm1172, %v2112, 0
      %v2146 = vsel %vm1172, %v2113, 0
      %v2149 = vsel %vm1172, %v2114, 0
      %v2152 = vsel %vm1172, %v2115, 0
      %v2155 = vsel %vm1172, %v2116, 0
      %v2158 = vsel %vm1172, %v2117, 0
      %v2161 = vsel %vm1172, %v2118, 0
      %v2164 = vsel %vm1172, %v2119, 0
      %v2167 = vsel %vm1172, %v2120, 0
      %v2170 = vsel %vm1172, %v2121, 0
      %v2173 = vsel %vm1301, %v2123, 0
      %2175 = vmatprep.subr.mxu0 0.0
      %2176 = vmatpush1.msra.mxu0 %v2173
      %2177 = vmatprep.subr.mxu0 0.0
      %2178 = vmatpush1.msra.mxu0 0.0
      %2179 = vmatprep.subr.mxu0 0.0
      %2180 = vmatpush1.msra.mxu0 0.0
      %2181 = vmatprep.subr.mxu0 0.0
      %2182 = vmatpush1.msra.mxu0 0.0
      %2183 = vmatprep.subr.mxu0 0.0
      %2184 = vmatpush1.msra.mxu0 0.0
      %2185 = vmatprep.subr.mxu0 0.0
      %2186 = vmatpush1.msra.mxu0 0.0
      %2187 = vmatprep.subr.mxu0 0.0
      %2188 = vmatpush1.msra.mxu0 0.0
      %2189 = vmatprep.subr.mxu0 0.0
      %2190 = vmatpush1.msra.mxu0 0.0
      %2191 = vmatprep.subr.mxu0 0.0
      %2192 = vmatpush1.msra.mxu0 0.0
      %2193 = vmatprep.subr.mxu0 0.0
      %2194 = vmatpush1.msra.mxu0 0.0
      %2195 = vmatprep.subr.mxu0 0.0
      %2196 = vmatpush1.msra.mxu0 0.0
      %2197 = vmatprep.subr.mxu0 0.0
      %2198 = vmatpush1.msra.mxu0 0.0
      %2199 = vmatprep.subr.mxu0 0.0
      %2200 = vmatpush1.msra.mxu0 0.0
      %2201 = vmatprep.subr.mxu0 0.0
      %2202 = vmatpush1.msra.mxu0 0.0
      %2203 = vmatprep.subr.mxu0 0.0
      %2204 = vmatpush1.msra.mxu0 0.0
      %2205 = vmatprep.subr.mxu0 0.0
      %2206 = vmatpush1.msra.mxu0 0.0
      %2207 = vmatprep.subr.mxu0 0.0
      %2208 = vmatpush1.msra.mxu0 0.0
      %2209 = vmatprep.subr.mxu0 0.0
      %2210 = vmatpush1.msra.mxu0 0.0
      %2211 = vmatprep.subr.mxu0 0.0
      %2212 = vmatpush1.msra.mxu0 0.0
      %2213 = vmatprep.subr.mxu0 0.0
      %2214 = vmatpush1.msra.mxu0 0.0
      %2215 = vmatprep.subr.mxu0 0.0
      %2216 = vmatpush1.msra.mxu0 0.0
      %2217 = vmatprep.subr.mxu0 0.0
      %2218 = vmatpush1.msra.mxu0 0.0
      %2219 = vmatprep.subr.mxu0 0.0
      %2220 = vmatpush1.msra.mxu0 0.0
      %2221 = vmatprep.subr.mxu0 0.0
      %2222 = vmatpush1.msra.mxu0 0.0
      %2223 = vmatprep.subr.mxu0 0.0
      %2224 = vmatpush1.msra.mxu0 0.0
      %2225 = vmatprep.subr.mxu0 0.0
      %2226 = vmatpush1.msra.mxu0 0.0
      %2227 = vmatprep.subr.mxu0 0.0
      %2228 = vmatpush1.msra.mxu0 0.0
      %2229 = vmatprep.subr.mxu0 0.0
      %2230 = vmatpush1.msra.mxu0 0.0
      %2231 = vmatprep.subr.mxu0 0.0
      %2232 = vmatpush1.msra.mxu0 0.0
      %2233 = vmatprep.subr.mxu0 0.0
      %2234 = vmatpush1.msra.mxu0 0.0
      %2235 = vmatprep.subr.mxu0 0.0
      %2236 = vmatpush1.msra.mxu0 0.0
      %2237 = vmatprep.subr.mxu0 0.0
      %2238 = vmatpush1.msra.mxu0 0.0
      %2239 = vmatprep.mubr.f32.mxu0 0.0
      %2240 = vmatmul.mubr.f32.gmra.mrb[0].mxu0 %v2125
      %v2241 = vpop.f32.mrb[0].mxu0
      %v2242 = vadd.f32 0.0, %v2241
      %v2243 = vpop.f32.mrb[0].mxu0
      %2244 = vmatprep.mubr.f32.mxu0 0.0
      %2245 = vmatmul.mubr.f32.gmra.mrb[0].mxu0 %v2128
      %v2246 = vpop.f32.mrb[0].mxu0
      %v2247 = vadd.f32 0.0, %v2246
      %v2248 = vpop.f32.mrb[0].mxu0
      %2249 = vmatprep.mubr.f32.mxu0 0.0
      %2250 = vmatmul.mubr.f32.gmra.mrb[0].mxu0 %v2131
      %v2251 = vpop.f32.mrb[0].mxu0
      %v2252 = vadd.f32 0.0, %v2251
      %v2253 = vpop.f32.mrb[0].mxu0
      %2254 = vmatprep.mubr.f32.mxu0 0.0
      %2255 = vmatmul.mubr.f32.gmra.mrb[0].mxu0 %v2134
      %v2256 = vpop.f32.mrb[0].mxu0
      %v2257 = vadd.f32 0.0, %v2256
      %v2258 = vpop.f32.mrb[0].mxu0
      %2259 = vmatprep.mubr.f32.mxu0 0.0
      %2260 = vmatmul.mubr.f32.gmra.mrb[0].mxu0 %v2137
      %v2261 = vpop.f32.mrb[0].mxu0
      %v2262 = vadd.f32 0.0, %v2261
      %v2263 = vpop.f32.mrb[0].mxu0
      %2264 = vmatprep.mubr.f32.mxu0 0.0
      %2265 = vmatmul.mubr.f32.gmra.mrb[0].mxu0 %v2140
      %v2266 = vpop.f32.mrb[0].mxu0
      %v2267 = vadd.f32 0.0, %v2266
      %v2268 = vpop.f32.mrb[0].mxu0
      %2269 = vmatprep.mubr.f32.mxu0 0.0
      %2270 = vmatmul.mubr.f32.gmra.mrb[0].mxu0 %v2143
      %v2271 = vpop.f32.mrb[0].mxu0
      %v2272 = vadd.f32 0.0, %v2271
      %v2273 = vpop.f32.mrb[0].mxu0
      %2274 = vmatprep.mubr.f32.mxu0 0.0
      %2275 = vmatmul.mubr.f32.gmra.mrb[0].mxu0 %v2146
      %v2276 = vpop.f32.mrb[0].mxu0
      %v2277 = vadd.f32 0.0, %v2276
      %v2278 = vpop.f32.mrb[0].mxu0
      %2279 = vmatprep.mubr.f32.mxu0 0.0
      %2280 = vmatmul.mubr.f32.gmra.mrb[0].mxu0 %v2149
      %v2281 = vpop.f32.mrb[0].mxu0
      %v2282 = vadd.f32 0.0, %v2281
      %v2283 = vpop.f32.mrb[0].mxu0
      %2284 = vmatprep.mubr.f32.mxu0 0.0
      %2285 = vmatmul.mubr.f32.gmra.mrb[0].mxu0 %v2152
      %v2286 = vpop.f32.mrb[0].mxu0
      %v2287 = vadd.f32 0.0, %v2286
      %v2288 = vpop.f32.mrb[0].mxu0
      %2289 = vmatprep.mubr.f32.mxu0 0.0
      %2290 = vmatmul.mubr.f32.gmra.mrb[0].mxu0 %v2155
      %v2291 = vpop.f32.mrb[0].mxu0
      %v2292 = vadd.f32 0.0, %v2291
      %v2293 = vpop.f32.mrb[0].mxu0
      %2294 = vmatprep.mubr.f32.mxu0 0.0
      %2295 = vmatmul.mubr.f32.gmra.mrb[0].mxu0 %v2158
      %v2296 = vpop.f32.mrb[0].mxu0
      %v2297 = vadd.f32 0.0, %v2296
      %v2298 = vpop.f32.mrb[0].mxu0
      %2299 = vmatprep.mubr.f32.mxu0 0.0
      %2300 = vmatmul.mubr.f32.gmra.mrb[0].mxu0 %v2161
      %v2301 = vpop.f32.mrb[0].mxu0
      %v2302 = vadd.f32 0.0, %v2301
      %v2303 = vpop.f32.mrb[0].mxu0
      %2304 = vmatprep.mubr.f32.mxu0 0.0
      %2305 = vmatmul.mubr.f32.gmra.mrb[0].mxu0 %v2164
      %v2306 = vpop.f32.mrb[0].mxu0
      %v2307 = vadd.f32 0.0, %v2306
      %v2308 = vpop.f32.mrb[0].mxu0
      %2309 = vmatprep.mubr.f32.mxu0 0.0
      %2310 = vmatmul.mubr.f32.gmra.mrb[0].mxu0 %v2167
      %v2311 = vpop.f32.mrb[0].mxu0
      %v2312 = vadd.f32 0.0, %v2311
      %v2313 = vpop.f32.mrb[0].mxu0
      %2314 = vmatprep.mubr.f32.mxu0 0.0
      %2315 = vmatmul.mubr.f32.gmra.mrb[0].mxu0 %v2170
      %v2316 = vpop.f32.mrb[0].mxu0
      %v2317 = vadd.f32 0.0, %v2316
      %v2318 = vpop.f32.mrb[0].mxu0
      %2319 = vdwg.mxu0
      %v2320 = vadd.f32 %v2090, %v2242
      %v2321 = vadd.f32 %v2091, %v2247
      %v2322 = vadd.f32 %v2092, %v2252
      %v2323 = vadd.f32 %v2093, %v2257
      %v2324 = vadd.f32 %v2094, %v2262
      %v2325 = vadd.f32 %v2095, %v2267
      %v2326 = vadd.f32 %v2096, %v2272
      %v2327 = vadd.f32 %v2097, %v2277
      %v2328 = vadd.f32 %v2098, %v2282
      %v2329 = vadd.f32 %v2099, %v2287
      %v2330 = vadd.f32 %v2100, %v2292
      %v2331 = vadd.f32 %v2101, %v2297
      %v2332 = vadd.f32 %v2102, %v2302
      %v2333 = vadd.f32 %v2103, %v2307
      %v2334 = vadd.f32 %v2104, %v2312
      %v2335 = vadd.f32 %v2105, %v2317
      %v2336 = vld [vmem:[%s1198 + $0x2] sm:$0xff]
      %v2337 = vld [vmem:[%s1198 + $0xa] sm:$0xff]
      %v2338 = vld [vmem:[%s1198 + $0x1a] sm:$0xff]
      %v2339 = vld [vmem:[%s1198 + $0x22] sm:$0xff]
      %v2340 = vld [vmem:[%s1198 + $0x32] sm:$0xff]
      %v2341 = vld [vmem:[%s1198 + $0x3a] sm:$0xff]
      %v2342 = vld [vmem:[%s1198 + $0x4a] sm:$0xff]
      %v2343 = vld [vmem:[%s1198 + $0x52] sm:$0xff]
      %v2344 = vld [vmem:[%s1198 + $0x62] sm:$0xff]
      %v2345 = vld [vmem:[%s1198 + $0x6a] sm:$0xff]
      %v2346 = vld [vmem:[%s1198 + $0x7a] sm:$0xff]
      %v2347 = vld [vmem:[%s1198 + $0x82] sm:$0xff]
      %v2348 = vld [vmem:[%s1198 + $0x92] sm:$0xff]
      %v2349 = vld [vmem:[%s1198 + $0x9a] sm:$0xff]
      %v2350 = vld [vmem:[%s1198 + $0xaa] sm:$0xff]
      %v2351 = vld [vmem:[%s1198 + $0xb2] sm:$0xff]
      %s2352 = scalar_lea.vmem %s7, 10
      %v2353 = vld [vmem:[%s2352] sm:$0x3]
      %v2355 = vsel %vm1172, %v2336, 0
      %v2358 = vsel %vm1172, %v2337, 0
      %v2361 = vsel %vm1172, %v2338, 0
      %v2364 = vsel %vm1172, %v2339, 0
      %v2367 = vsel %vm1172, %v2340, 0
      %v2370 = vsel %vm1172, %v2341, 0
      %v2373 = vsel %vm1172, %v2342, 0
      %v2376 = vsel %vm1172, %v2343, 0
      %v2379 = vsel %vm1172, %v2344, 0
      %v2382 = vsel %vm1172, %v2345, 0
      %v2385 = vsel %vm1172, %v2346, 0
      %v2388 = vsel %vm1172, %v2347, 0
      %v2391 = vsel %vm1172, %v2348, 0
      %v2394 = vsel %vm1172, %v2349, 0
      %v2397 = vsel %vm1172, %v2350, 0
      %v2400 = vsel %vm1172, %v2351, 0
      %v2403 = vsel %vm1301, %v2353, 0
      %2405 = vmatprep.subr.mxu0 0.0
      %2406 = vmatpush1.msra.mxu0 %v2403
      %2407 = vmatprep.subr.mxu0 0.0
      %2408 = vmatpush1.msra.mxu0 0.0
      %2409 = vmatprep.subr.mxu0 0.0
      %2410 = vmatpush1.msra.mxu0 0.0
      %2411 = vmatprep.subr.mxu0 0.0
      %2412 = vmatpush1.msra.mxu0 0.0
      %2413 = vmatprep.subr.mxu0 0.0
      %2414 = vmatpush1.msra.mxu0 0.0
      %2415 = vmatprep.subr.mxu0 0.0
      %2416 = vmatpush1.msra.mxu0 0.0
      %2417 = vmatprep.subr.mxu0 0.0
      %2418 = vmatpush1.msra.mxu0 0.0
      %2419 = vmatprep.subr.mxu0 0.0
      %2420 = vmatpush1.msra.mxu0 0.0
      %2421 = vmatprep.subr.mxu0 0.0
      %2422 = vmatpush1.msra.mxu0 0.0
      %2423 = vmatprep.subr.mxu0 0.0
      %2424 = vmatpush1.msra.mxu0 0.0
      %2425 = vmatprep.subr.mxu0 0.0
      %2426 = vmatpush1.msra.mxu0 0.0
      %2427 = vmatprep.subr.mxu0 0.0
      %2428 = vmatpush1.msra.mxu0 0.0
      %2429 = vmatprep.subr.mxu0 0.0
      %2430 = vmatpush1.msra.mxu0 0.0
      %2431 = vmatprep.subr.mxu0 0.0
      %2432 = vmatpush1.msra.mxu0 0.0
      %2433 = vmatprep.subr.mxu0 0.0
      %2434 = vmatpush1.msra.mxu0 0.0
      %2435 = vmatprep.subr.mxu0 0.0
      %2436 = vmatpush1.msra.mxu0 0.0
      %2437 = vmatprep.subr.mxu0 0.0
      %2438 = vmatpush1.msra.mxu0 0.0
      %2439 = vmatprep.subr.mxu0 0.0
      %2440 = vmatpush1.msra.mxu0 0.0
      %2441 = vmatprep.subr.mxu0 0.0
      %2442 = vmatpush1.msra.mxu0 0.0
      %2443 = vmatprep.subr.mxu0 0.0
      %2444 = vmatpush1.msra.mxu0 0.0
      %2445 = vmatprep.subr.mxu0 0.0
      %2446 = vmatpush1.msra.mxu0 0.0
      %2447 = vmatprep.subr.mxu0 0.0
      %2448 = vmatpush1.msra.mxu0 0.0
      %2449 = vmatprep.subr.mxu0 0.0
      %2450 = vmatpush1.msra.mxu0 0.0
      %2451 = vmatprep.subr.mxu0 0.0
      %2452 = vmatpush1.msra.mxu0 0.0
      %2453 = vmatprep.subr.mxu0 0.0
      %2454 = vmatpush1.msra.mxu0 0.0
      %2455 = vmatprep.subr.mxu0 0.0
      %2456 = vmatpush1.msra.mxu0 0.0
      %2457 = vmatprep.subr.mxu0 0.0
      %2458 = vmatpush1.msra.mxu0 0.0
      %2459 = vmatprep.subr.mxu0 0.0
      %2460 = vmatpush1.msra.mxu0 0.0
      %2461 = vmatprep.subr.mxu0 0.0
      %2462 = vmatpush1.msra.mxu0 0.0
      %2463 = vmatprep.subr.mxu0 0.0
      %2464 = vmatpush1.msra.mxu0 0.0
      %2465 = vmatprep.subr.mxu0 0.0
      %2466 = vmatpush1.msra.mxu0 0.0
      %2467 = vmatprep.subr.mxu0 0.0
      %2468 = vmatpush1.msra.mxu0 0.0
      %2469 = vmatprep.mubr.f32.mxu0 0.0
      %2470 = vmatmul.mubr.f32.gmra.mrb[0].mxu0 %v2355
      %v2471 = vpop.f32.mrb[0].mxu0
      %v2472 = vadd.f32 0.0, %v2471
      %v2473 = vpop.f32.mrb[0].mxu0
      %2474 = vmatprep.mubr.f32.mxu0 0.0
      %2475 = vmatmul.mubr.f32.gmra.mrb[0].mxu0 %v2358
      %v2476 = vpop.f32.mrb[0].mxu0
      %v2477 = vadd.f32 0.0, %v2476
      %v2478 = vpop.f32.mrb[0].mxu0
      %2479 = vmatprep.mubr.f32.mxu0 0.0
      %2480 = vmatmul.mubr.f32.gmra.mrb[0].mxu0 %v2361
      %v2481 = vpop.f32.mrb[0].mxu0
      %v2482 = vadd.f32 0.0, %v2481
      %v2483 = vpop.f32.mrb[0].mxu0
      %2484 = vmatprep.mubr.f32.mxu0 0.0
      %2485 = vmatmul.mubr.f32.gmra.mrb[0].mxu0 %v2364
      %v2486 = vpop.f32.mrb[0].mxu0
      %v2487 = vadd.f32 0.0, %v2486
      %v2488 = vpop.f32.mrb[0].mxu0
      %2489 = vmatprep.mubr.f32.mxu0 0.0
      %2490 = vmatmul.mubr.f32.gmra.mrb[0].mxu0 %v2367
      %v2491 = vpop.f32.mrb[0].mxu0
      %v2492 = vadd.f32 0.0, %v2491
      %v2493 = vpop.f32.mrb[0].mxu0
      %2494 = vmatprep.mubr.f32.mxu0 0.0
      %2495 = vmatmul.mubr.f32.gmra.mrb[0].mxu0 %v2370
      %v2496 = vpop.f32.mrb[0].mxu0
      %v2497 = vadd.f32 0.0, %v2496
      %v2498 = vpop.f32.mrb[0].mxu0
      %2499 = vmatprep.mubr.f32.mxu0 0.0
      %2500 = vmatmul.mubr.f32.gmra.mrb[0].mxu0 %v2373
      %v2501 = vpop.f32.mrb[0].mxu0
      %v2502 = vadd.f32 0.0, %v2501
      %v2503 = vpop.f32.mrb[0].mxu0
      %2504 = vmatprep.mubr.f32.mxu0 0.0
      %2505 = vmatmul.mubr.f32.gmra.mrb[0].mxu0 %v2376
      %v2506 = vpop.f32.mrb[0].mxu0
      %v2507 = vadd.f32 0.0, %v2506
      %v2508 = vpop.f32.mrb[0].mxu0
      %2509 = vmatprep.mubr.f32.mxu0 0.0
      %2510 = vmatmul.mubr.f32.gmra.mrb[0].mxu0 %v2379
      %v2511 = vpop.f32.mrb[0].mxu0
      %v2512 = vadd.f32 0.0, %v2511
      %v2513 = vpop.f32.mrb[0].mxu0
      %2514 = vmatprep.mubr.f32.mxu0 0.0
      %2515 = vmatmul.mubr.f32.gmra.mrb[0].mxu0 %v2382
      %v2516 = vpop.f32.mrb[0].mxu0
      %v2517 = vadd.f32 0.0, %v2516
      %v2518 = vpop.f32.mrb[0].mxu0
      %2519 = vmatprep.mubr.f32.mxu0 0.0
      %2520 = vmatmul.mubr.f32.gmra.mrb[0].mxu0 %v2385
      %v2521 = vpop.f32.mrb[0].mxu0
      %v2522 = vadd.f32 0.0, %v2521
      %v2523 = vpop.f32.mrb[0].mxu0
      %2524 = vmatprep.mubr.f32.mxu0 0.0
      %2525 = vmatmul.mubr.f32.gmra.mrb[0].mxu0 %v2388
      %v2526 = vpop.f32.mrb[0].mxu0
      %v2527 = vadd.f32 0.0, %v2526
      %v2528 = vpop.f32.mrb[0].mxu0
      %2529 = vmatprep.mubr.f32.mxu0 0.0
      %2530 = vmatmul.mubr.f32.gmra.mrb[0].mxu0 %v2391
      %v2531 = vpop.f32.mrb[0].mxu0
      %v2532 = vadd.f32 0.0, %v2531
      %v2533 = vpop.f32.mrb[0].mxu0
      %2534 = vmatprep.mubr.f32.mxu0 0.0
      %2535 = vmatmul.mubr.f32.gmra.mrb[0].mxu0 %v2394
      %v2536 = vpop.f32.mrb[0].mxu0
      %v2537 = vadd.f32 0.0, %v2536
      %v2538 = vpop.f32.mrb[0].mxu0
      %2539 = vmatprep.mubr.f32.mxu0 0.0
      %2540 = vmatmul.mubr.f32.gmra.mrb[0].mxu0 %v2397
      %v2541 = vpop.f32.mrb[0].mxu0
      %v2542 = vadd.f32 0.0, %v2541
      %v2543 = vpop.f32.mrb[0].mxu0
      %2544 = vmatprep.mubr.f32.mxu0 0.0
      %2545 = vmatmul.mubr.f32.gmra.mrb[0].mxu0 %v2400
      %v2546 = vpop.f32.mrb[0].mxu0
      %v2547 = vadd.f32 0.0, %v2546
      %v2548 = vpop.f32.mrb[0].mxu0
      %2549 = vdwg.mxu0
      %v2550 = vadd.f32 %v2320, %v2472
      %v2551 = vadd.f32 %v2321, %v2477
      %v2552 = vadd.f32 %v2322, %v2482
      %v2553 = vadd.f32 %v2323, %v2487
      %v2554 = vadd.f32 %v2324, %v2492
      %v2555 = vadd.f32 %v2325, %v2497
      %v2556 = vadd.f32 %v2326, %v2502
      %v2557 = vadd.f32 %v2327, %v2507
      %v2558 = vadd.f32 %v2328, %v2512
      %v2559 = vadd.f32 %v2329, %v2517
      %v2560 = vadd.f32 %v2330, %v2522
      %v2561 = vadd.f32 %v2331, %v2527
      %v2562 = vadd.f32 %v2332, %v2532
      %v2563 = vadd.f32 %v2333, %v2537
      %v2564 = vadd.f32 %v2334, %v2542
      %v2565 = vadd.f32 %v2335, %v2547
      %s2566 = scalar_lea.vmem [#allocation2], 48
      %v2567 = vld [vmem:[%s2566] sm:$0xff]
      %v2568 = vld [vmem:[%s2566 + $0x8] sm:$0xff]
      %v2569 = vld [vmem:[%s2566 + $0x18] sm:$0xff]
      %v2570 = vld [vmem:[%s2566 + $0x20] sm:$0xff]
      %v2571 = vld [vmem:[%s2566 + $0x30] sm:$0xff]
      %v2572 = vld [vmem:[%s2566 + $0x38] sm:$0xff]
      %v2573 = vld [vmem:[%s2566 + $0x48] sm:$0xff]
      %v2574 = vld [vmem:[%s2566 + $0x50] sm:$0xff]
      %v2575 = vld [vmem:[%s2566 + $0x60] sm:$0xff]
      %v2576 = vld [vmem:[%s2566 + $0x68] sm:$0xff]
      %v2577 = vld [vmem:[%s2566 + $0x78] sm:$0xff]
      %v2578 = vld [vmem:[%s2566 + $0x80] sm:$0xff]
      %v2579 = vld [vmem:[%s2566 + $0x90] sm:$0xff]
      %v2580 = vld [vmem:[%s2566 + $0x98] sm:$0xff]
      %v2581 = vld [vmem:[%s2566 + $0xa8] sm:$0xff]
      %v2582 = vld [vmem:[%s2566 + $0xb0] sm:$0xff]
      %s2583 = scalar_lea.vmem %s7, 12
      %v2584 = vld [vmem:[%s2583] sm:$0x3]
      %v2586 = vsel %vm1172, %v2567, 0
      %v2589 = vsel %vm1172, %v2568, 0
      %v2592 = vsel %vm1172, %v2569, 0
      %v2595 = vsel %vm1172, %v2570, 0
      %v2598 = vsel %vm1172, %v2571, 0
      %v2601 = vsel %vm1172, %v2572, 0
      %v2604 = vsel %vm1172, %v2573, 0
      %v2607 = vsel %vm1172, %v2574, 0
      %v2610 = vsel %vm1172, %v2575, 0
      %v2613 = vsel %vm1172, %v2576, 0
      %v2616 = vsel %vm1172, %v2577, 0
      %v2619 = vsel %vm1172, %v2578, 0
      %v2622 = vsel %vm1172, %v2579, 0
      %v2625 = vsel %vm1172, %v2580, 0
      %v2628 = vsel %vm1172, %v2581, 0
      %v2631 = vsel %vm1172, %v2582, 0
      %v2634 = vsel %vm1301, %v2584, 0
      %2636 = vmatprep.subr.mxu0 0.0
      %2637 = vmatpush1.msra.mxu0 %v2634
      %2638 = vmatprep.subr.mxu0 0.0
      %2639 = vmatpush1.msra.mxu0 0.0
      %2640 = vmatprep.subr.mxu0 0.0
      %2641 = vmatpush1.msra.mxu0 0.0
      %2642 = vmatprep.subr.mxu0 0.0
      %2643 = vmatpush1.msra.mxu0 0.0
      %2644 = vmatprep.subr.mxu0 0.0
      %2645 = vmatpush1.msra.mxu0 0.0
      %2646 = vmatprep.subr.mxu0 0.0
      %2647 = vmatpush1.msra.mxu0 0.0
      %2648 = vmatprep.subr.mxu0 0.0
      %2649 = vmatpush1.msra.mxu0 0.0
      %2650 = vmatprep.subr.mxu0 0.0
      %2651 = vmatpush1.msra.mxu0 0.0
      %2652 = vmatprep.subr.mxu0 0.0
      %2653 = vmatpush1.msra.mxu0 0.0
      %2654 = vmatprep.subr.mxu0 0.0
      %2655 = vmatpush1.msra.mxu0 0.0
      %2656 = vmatprep.subr.mxu0 0.0
      %2657 = vmatpush1.msra.mxu0 0.0
      %2658 = vmatprep.subr.mxu0 0.0
      %2659 = vmatpush1.msra.mxu0 0.0
      %2660 = vmatprep.subr.mxu0 0.0
      %2661 = vmatpush1.msra.mxu0 0.0
      %2662 = vmatprep.subr.mxu0 0.0
      %2663 = vmatpush1.msra.mxu0 0.0
      %2664 = vmatprep.subr.mxu0 0.0
      %2665 = vmatpush1.msra.mxu0 0.0
      %2666 = vmatprep.subr.mxu0 0.0
      %2667 = vmatpush1.msra.mxu0 0.0
      %2668 = vmatprep.subr.mxu0 0.0
      %2669 = vmatpush1.msra.mxu0 0.0
      %2670 = vmatprep.subr.mxu0 0.0
      %2671 = vmatpush1.msra.mxu0 0.0
      %2672 = vmatprep.subr.mxu0 0.0
      %2673 = vmatpush1.msra.mxu0 0.0
      %2674 = vmatprep.subr.mxu0 0.0
      %2675 = vmatpush1.msra.mxu0 0.0
      %2676 = vmatprep.subr.mxu0 0.0
      %2677 = vmatpush1.msra.mxu0 0.0
      %2678 = vmatprep.subr.mxu0 0.0
      %2679 = vmatpush1.msra.mxu0 0.0
      %2680 = vmatprep.subr.mxu0 0.0
      %2681 = vmatpush1.msra.mxu0 0.0
      %2682 = vmatprep.subr.mxu0 0.0
      %2683 = vmatpush1.msra.mxu0 0.0
      %2684 = vmatprep.subr.mxu0 0.0
      %2685 = vmatpush1.msra.mxu0 0.0
      %2686 = vmatprep.subr.mxu0 0.0
      %2687 = vmatpush1.msra.mxu0 0.0
      %2688 = vmatprep.subr.mxu0 0.0
      %2689 = vmatpush1.msra.mxu0 0.0
      %2690 = vmatprep.subr.mxu0 0.0
      %2691 = vmatpush1.msra.mxu0 0.0
      %2692 = vmatprep.subr.mxu0 0.0
      %2693 = vmatpush1.msra.mxu0 0.0
      %2694 = vmatprep.subr.mxu0 0.0
      %2695 = vmatpush1.msra.mxu0 0.0
      %2696 = vmatprep.subr.mxu0 0.0
      %2697 = vmatpush1.msra.mxu0 0.0
      %2698 = vmatprep.subr.mxu0 0.0
      %2699 = vmatpush1.msra.mxu0 0.0
      %2700 = vmatprep.mubr.f32.mxu0 0.0
      %2701 = vmatmul.mubr.f32.gmra.mrb[0].mxu0 %v2586
      %v2702 = vpop.f32.mrb[0].mxu0
      %v2703 = vadd.f32 0.0, %v2702
      %v2704 = vpop.f32.mrb[0].mxu0
      %2705 = vmatprep.mubr.f32.mxu0 0.0
      %2706 = vmatmul.mubr.f32.gmra.mrb[0].mxu0 %v2589
      %v2707 = vpop.f32.mrb[0].mxu0
      %v2708 = vadd.f32 0.0, %v2707
      %v2709 = vpop.f32.mrb[0].mxu0
      %2710 = vmatprep.mubr.f32.mxu0 0.0
      %2711 = vmatmul.mubr.f32.gmra.mrb[0].mxu0 %v2592
      %v2712 = vpop.f32.mrb[0].mxu0
      %v2713 = vadd.f32 0.0, %v2712
      %v2714 = vpop.f32.mrb[0].mxu0
      %2715 = vmatprep.mubr.f32.mxu0 0.0
      %2716 = vmatmul.mubr.f32.gmra.mrb[0].mxu0 %v2595
      %v2717 = vpop.f32.mrb[0].mxu0
      %v2718 = vadd.f32 0.0, %v2717
      %v2719 = vpop.f32.mrb[0].mxu0
      %2720 = vmatprep.mubr.f32.mxu0 0.0
      %2721 = vmatmul.mubr.f32.gmra.mrb[0].mxu0 %v2598
      %v2722 = vpop.f32.mrb[0].mxu0
      %v2723 = vadd.f32 0.0, %v2722
      %v2724 = vpop.f32.mrb[0].mxu0
      %2725 = vmatprep.mubr.f32.mxu0 0.0
      %2726 = vmatmul.mubr.f32.gmra.mrb[0].mxu0 %v2601
      %v2727 = vpop.f32.mrb[0].mxu0
      %v2728 = vadd.f32 0.0, %v2727
      %v2729 = vpop.f32.mrb[0].mxu0
      %2730 = vmatprep.mubr.f32.mxu0 0.0
      %2731 = vmatmul.mubr.f32.gmra.mrb[0].mxu0 %v2604
      %v2732 = vpop.f32.mrb[0].mxu0
      %v2733 = vadd.f32 0.0, %v2732
      %v2734 = vpop.f32.mrb[0].mxu0
      %2735 = vmatprep.mubr.f32.mxu0 0.0
      %2736 = vmatmul.mubr.f32.gmra.mrb[0].mxu0 %v2607
      %v2737 = vpop.f32.mrb[0].mxu0
      %v2738 = vadd.f32 0.0, %v2737
      %v2739 = vpop.f32.mrb[0].mxu0
      %2740 = vmatprep.mubr.f32.mxu0 0.0
      %2741 = vmatmul.mubr.f32.gmra.mrb[0].mxu0 %v2610
      %v2742 = vpop.f32.mrb[0].mxu0
      %v2743 = vadd.f32 0.0, %v2742
      %v2744 = vpop.f32.mrb[0].mxu0
      %2745 = vmatprep.mubr.f32.mxu0 0.0
      %2746 = vmatmul.mubr.f32.gmra.mrb[0].mxu0 %v2613
      %v2747 = vpop.f32.mrb[0].mxu0
      %v2748 = vadd.f32 0.0, %v2747
      %v2749 = vpop.f32.mrb[0].mxu0
      %2750 = vmatprep.mubr.f32.mxu0 0.0
      %2751 = vmatmul.mubr.f32.gmra.mrb[0].mxu0 %v2616
      %v2752 = vpop.f32.mrb[0].mxu0
      %v2753 = vadd.f32 0.0, %v2752
      %v2754 = vpop.f32.mrb[0].mxu0
      %2755 = vmatprep.mubr.f32.mxu0 0.0
      %2756 = vmatmul.mubr.f32.gmra.mrb[0].mxu0 %v2619
      %v2757 = vpop.f32.mrb[0].mxu0
      %v2758 = vadd.f32 0.0, %v2757
      %v2759 = vpop.f32.mrb[0].mxu0
      %2760 = vmatprep.mubr.f32.mxu0 0.0
      %2761 = vmatmul.mubr.f32.gmra.mrb[0].mxu0 %v2622
      %v2762 = vpop.f32.mrb[0].mxu0
      %v2763 = vadd.f32 0.0, %v2762
      %v2764 = vpop.f32.mrb[0].mxu0
      %2765 = vmatprep.mubr.f32.mxu0 0.0
      %2766 = vmatmul.mubr.f32.gmra.mrb[0].mxu0 %v2625
      %v2767 = vpop.f32.mrb[0].mxu0
      %v2768 = vadd.f32 0.0, %v2767
      %v2769 = vpop.f32.mrb[0].mxu0
      %2770 = vmatprep.mubr.f32.mxu0 0.0
      %2771 = vmatmul.mubr.f32.gmra.mrb[0].mxu0 %v2628
      %v2772 = vpop.f32.mrb[0].mxu0
      %v2773 = vadd.f32 0.0, %v2772
      %v2774 = vpop.f32.mrb[0].mxu0
      %2775 = vmatprep.mubr.f32.mxu0 0.0
      %2776 = vmatmul.mubr.f32.gmra.mrb[0].mxu0 %v2631
      %v2777 = vpop.f32.mrb[0].mxu0
      %v2778 = vadd.f32 0.0, %v2777
      %v2779 = vpop.f32.mrb[0].mxu0
      %2780 = vdwg.mxu0
      %v2781 = vadd.f32 %v2550, %v2703
      %v2782 = vadd.f32 %v2551, %v2708
      %v2783 = vadd.f32 %v2552, %v2713
      %v2784 = vadd.f32 %v2553, %v2718
      %v2785 = vadd.f32 %v2554, %v2723
      %v2786 = vadd.f32 %v2555, %v2728
      %v2787 = vadd.f32 %v2556, %v2733
      %v2788 = vadd.f32 %v2557, %v2738
      %v2789 = vadd.f32 %v2558, %v2743
      %v2790 = vadd.f32 %v2559, %v2748
      %v2791 = vadd.f32 %v2560, %v2753
      %v2792 = vadd.f32 %v2561, %v2758
      %v2793 = vadd.f32 %v2562, %v2763
      %v2794 = vadd.f32 %v2563, %v2768
      %v2795 = vadd.f32 %v2564, %v2773
      %v2796 = vadd.f32 %v2565, %v2778
      %v2797 = vld [vmem:[%s2566 + $0x1] sm:$0xff]
      %v2798 = vld [vmem:[%s2566 + $0x9] sm:$0xff]
      %v2799 = vld [vmem:[%s2566 + $0x19] sm:$0xff]
      %v2800 = vld [vmem:[%s2566 + $0x21] sm:$0xff]
      %v2801 = vld [vmem:[%s2566 + $0x31] sm:$0xff]
      %v2802 = vld [vmem:[%s2566 + $0x39] sm:$0xff]
      %v2803 = vld [vmem:[%s2566 + $0x49] sm:$0xff]
      %v2804 = vld [vmem:[%s2566 + $0x51] sm:$0xff]
      %v2805 = vld [vmem:[%s2566 + $0x61] sm:$0xff]
      %v2806 = vld [vmem:[%s2566 + $0x69] sm:$0xff]
      %v2807 = vld [vmem:[%s2566 + $0x79] sm:$0xff]
      %v2808 = vld [vmem:[%s2566 + $0x81] sm:$0xff]
      %v2809 = vld [vmem:[%s2566 + $0x91] sm:$0xff]
      %v2810 = vld [vmem:[%s2566 + $0x99] sm:$0xff]
      %v2811 = vld [vmem:[%s2566 + $0xa9] sm:$0xff]
      %v2812 = vld [vmem:[%s2566 + $0xb1] sm:$0xff]
      %s2813 = scalar_lea.vmem %s7, 14
      %v2814 = vld [vmem:[%s2813] sm:$0x3]
      %v2816 = vsel %vm1172, %v2797, 0
      %v2819 = vsel %vm1172, %v2798, 0
      %v2822 = vsel %vm1172, %v2799, 0
      %v2825 = vsel %vm1172, %v2800, 0
      %v2828 = vsel %vm1172, %v2801, 0
      %v2831 = vsel %vm1172, %v2802, 0
      %v2834 = vsel %vm1172, %v2803, 0
      %v2837 = vsel %vm1172, %v2804, 0
      %v2840 = vsel %vm1172, %v2805, 0
      %v2843 = vsel %vm1172, %v2806, 0
      %v2846 = vsel %vm1172, %v2807, 0
      %v2849 = vsel %vm1172, %v2808, 0
      %v2852 = vsel %vm1172, %v2809, 0
      %v2855 = vsel %vm1172, %v2810, 0
      %v2858 = vsel %vm1172, %v2811, 0
      %v2861 = vsel %vm1172, %v2812, 0
      %v2864 = vsel %vm1301, %v2814, 0
      %2866 = vmatprep.subr.mxu0 0.0
      %2867 = vmatpush1.msra.mxu0 %v2864
      %2868 = vmatprep.subr.mxu0 0.0
      %2869 = vmatpush1.msra.mxu0 0.0
      %2870 = vmatprep.subr.mxu0 0.0
      %2871 = vmatpush1.msra.mxu0 0.0
      %2872 = vmatprep.subr.mxu0 0.0
      %2873 = vmatpush1.msra.mxu0 0.0
      %2874 = vmatprep.subr.mxu0 0.0
      %2875 = vmatpush1.msra.mxu0 0.0
      %2876 = vmatprep.subr.mxu0 0.0
      %2877 = vmatpush1.msra.mxu0 0.0
      %2878 = vmatprep.subr.mxu0 0.0
      %2879 = vmatpush1.msra.mxu0 0.0
      %2880 = vmatprep.subr.mxu0 0.0
      %2881 = vmatpush1.msra.mxu0 0.0
      %2882 = vmatprep.subr.mxu0 0.0
      %2883 = vmatpush1.msra.mxu0 0.0
      %2884 = vmatprep.subr.mxu0 0.0
      %2885 = vmatpush1.msra.mxu0 0.0
      %2886 = vmatprep.subr.mxu0 0.0
      %2887 = vmatpush1.msra.mxu0 0.0
      %2888 = vmatprep.subr.mxu0 0.0
      %2889 = vmatpush1.msra.mxu0 0.0
      %2890 = vmatprep.subr.mxu0 0.0
      %2891 = vmatpush1.msra.mxu0 0.0
      %2892 = vmatprep.subr.mxu0 0.0
      %2893 = vmatpush1.msra.mxu0 0.0
      %2894 = vmatprep.subr.mxu0 0.0
      %2895 = vmatpush1.msra.mxu0 0.0
      %2896 = vmatprep.subr.mxu0 0.0
      %2897 = vmatpush1.msra.mxu0 0.0
      %2898 = vmatprep.subr.mxu0 0.0
      %2899 = vmatpush1.msra.mxu0 0.0
      %2900 = vmatprep.subr.mxu0 0.0
      %2901 = vmatpush1.msra.mxu0 0.0
      %2902 = vmatprep.subr.mxu0 0.0
      %2903 = vmatpush1.msra.mxu0 0.0
      %2904 = vmatprep.subr.mxu0 0.0
      %2905 = vmatpush1.msra.mxu0 0.0
      %2906 = vmatprep.subr.mxu0 0.0
      %2907 = vmatpush1.msra.mxu0 0.0
      %2908 = vmatprep.subr.mxu0 0.0
      %2909 = vmatpush1.msra.mxu0 0.0
      %2910 = vmatprep.subr.mxu0 0.0
      %2911 = vmatpush1.msra.mxu0 0.0
      %2912 = vmatprep.subr.mxu0 0.0
      %2913 = vmatpush1.msra.mxu0 0.0
      %2914 = vmatprep.subr.mxu0 0.0
      %2915 = vmatpush1.msra.mxu0 0.0
      %2916 = vmatprep.subr.mxu0 0.0
      %2917 = vmatpush1.msra.mxu0 0.0
      %2918 = vmatprep.subr.mxu0 0.0
      %2919 = vmatpush1.msra.mxu0 0.0
      %2920 = vmatprep.subr.mxu0 0.0
      %2921 = vmatpush1.msra.mxu0 0.0
      %2922 = vmatprep.subr.mxu0 0.0
      %2923 = vmatpush1.msra.mxu0 0.0
      %2924 = vmatprep.subr.mxu0 0.0
      %2925 = vmatpush1.msra.mxu0 0.0
      %2926 = vmatprep.subr.mxu0 0.0
      %2927 = vmatpush1.msra.mxu0 0.0
      %2928 = vmatprep.subr.mxu0 0.0
      %2929 = vmatpush1.msra.mxu0 0.0
      %2930 = vmatprep.mubr.f32.mxu0 0.0
      %2931 = vmatmul.mubr.f32.gmra.mrb[0].mxu0 %v2816
      %v2932 = vpop.f32.mrb[0].mxu0
      %v2933 = vadd.f32 0.0, %v2932
      %v2934 = vpop.f32.mrb[0].mxu0
      %2935 = vmatprep.mubr.f32.mxu0 0.0
      %2936 = vmatmul.mubr.f32.gmra.mrb[0].mxu0 %v2819
      %v2937 = vpop.f32.mrb[0].mxu0
      %v2938 = vadd.f32 0.0, %v2937
      %v2939 = vpop.f32.mrb[0].mxu0
      %2940 = vmatprep.mubr.f32.mxu0 0.0
      %2941 = vmatmul.mubr.f32.gmra.mrb[0].mxu0 %v2822
      %v2942 = vpop.f32.mrb[0].mxu0
      %v2943 = vadd.f32 0.0, %v2942
      %v2944 = vpop.f32.mrb[0].mxu0
      %2945 = vmatprep.mubr.f32.mxu0 0.0
      %2946 = vmatmul.mubr.f32.gmra.mrb[0].mxu0 %v2825
      %v2947 = vpop.f32.mrb[0].mxu0
      %v2948 = vadd.f32 0.0, %v2947
      %v2949 = vpop.f32.mrb[0].mxu0
      %2950 = vmatprep.mubr.f32.mxu0 0.0
      %2951 = vmatmul.mubr.f32.gmra.mrb[0].mxu0 %v2828
      %v2952 = vpop.f32.mrb[0].mxu0
      %v2953 = vadd.f32 0.0, %v2952
      %v2954 = vpop.f32.mrb[0].mxu0
      %2955 = vmatprep.mubr.f32.mxu0 0.0
      %2956 = vmatmul.mubr.f32.gmra.mrb[0].mxu0 %v2831
      %v2957 = vpop.f32.mrb[0].mxu0
      %v2958 = vadd.f32 0.0, %v2957
      %v2959 = vpop.f32.mrb[0].mxu0
      %2960 = vmatprep.mubr.f32.mxu0 0.0
      %2961 = vmatmul.mubr.f32.gmra.mrb[0].mxu0 %v2834
      %v2962 = vpop.f32.mrb[0].mxu0
      %v2963 = vadd.f32 0.0, %v2962
      %v2964 = vpop.f32.mrb[0].mxu0
      %2965 = vmatprep.mubr.f32.mxu0 0.0
      %2966 = vmatmul.mubr.f32.gmra.mrb[0].mxu0 %v2837
      %v2967 = vpop.f32.mrb[0].mxu0
      %v2968 = vadd.f32 0.0, %v2967
      %v2969 = vpop.f32.mrb[0].mxu0
      %2970 = vmatprep.mubr.f32.mxu0 0.0
      %2971 = vmatmul.mubr.f32.gmra.mrb[0].mxu0 %v2840
      %v2972 = vpop.f32.mrb[0].mxu0
      %v2973 = vadd.f32 0.0, %v2972
      %v2974 = vpop.f32.mrb[0].mxu0
      %2975 = vmatprep.mubr.f32.mxu0 0.0
      %2976 = vmatmul.mubr.f32.gmra.mrb[0].mxu0 %v2843
      %v2977 = vpop.f32.mrb[0].mxu0
      %v2978 = vadd.f32 0.0, %v2977
      %v2979 = vpop.f32.mrb[0].mxu0
      %2980 = vmatprep.mubr.f32.mxu0 0.0
      %2981 = vmatmul.mubr.f32.gmra.mrb[0].mxu0 %v2846
      %v2982 = vpop.f32.mrb[0].mxu0
      %v2983 = vadd.f32 0.0, %v2982
      %v2984 = vpop.f32.mrb[0].mxu0
      %2985 = vmatprep.mubr.f32.mxu0 0.0
      %2986 = vmatmul.mubr.f32.gmra.mrb[0].mxu0 %v2849
      %v2987 = vpop.f32.mrb[0].mxu0
      %v2988 = vadd.f32 0.0, %v2987
      %v2989 = vpop.f32.mrb[0].mxu0
      %2990 = vmatprep.mubr.f32.mxu0 0.0
      %2991 = vmatmul.mubr.f32.gmra.mrb[0].mxu0 %v2852
      %v2992 = vpop.f32.mrb[0].mxu0
      %v2993 = vadd.f32 0.0, %v2992
      %v2994 = vpop.f32.mrb[0].mxu0
      %2995 = vmatprep.mubr.f32.mxu0 0.0
      %2996 = vmatmul.mubr.f32.gmra.mrb[0].mxu0 %v2855
      %v2997 = vpop.f32.mrb[0].mxu0
      %v2998 = vadd.f32 0.0, %v2997
      %v2999 = vpop.f32.mrb[0].mxu0
      %3000 = vmatprep.mubr.f32.mxu0 0.0
      %3001 = vmatmul.mubr.f32.gmra.mrb[0].mxu0 %v2858
      %v3002 = vpop.f32.mrb[0].mxu0
      %v3003 = vadd.f32 0.0, %v3002
      %v3004 = vpop.f32.mrb[0].mxu0
      %3005 = vmatprep.mubr.f32.mxu0 0.0
      %3006 = vmatmul.mubr.f32.gmra.mrb[0].mxu0 %v2861
      %v3007 = vpop.f32.mrb[0].mxu0
      %v3008 = vadd.f32 0.0, %v3007
      %v3009 = vpop.f32.mrb[0].mxu0
      %3010 = vdwg.mxu0
      %v3011 = vadd.f32 %v2781, %v2933
      %v3012 = vadd.f32 %v2782, %v2938
      %v3013 = vadd.f32 %v2783, %v2943
      %v3014 = vadd.f32 %v2784, %v2948
      %v3015 = vadd.f32 %v2785, %v2953
      %v3016 = vadd.f32 %v2786, %v2958
      %v3017 = vadd.f32 %v2787, %v2963
      %v3018 = vadd.f32 %v2788, %v2968
      %v3019 = vadd.f32 %v2789, %v2973
      %v3020 = vadd.f32 %v2790, %v2978
      %v3021 = vadd.f32 %v2791, %v2983
      %v3022 = vadd.f32 %v2792, %v2988
      %v3023 = vadd.f32 %v2793, %v2993
      %v3024 = vadd.f32 %v2794, %v2998
      %v3025 = vadd.f32 %v2795, %v3003
      %v3026 = vadd.f32 %v2796, %v3008
      %v3027 = vld [vmem:[%s2566 + $0x2] sm:$0xff]
      %v3028 = vld [vmem:[%s2566 + $0xa] sm:$0xff]
      %v3029 = vld [vmem:[%s2566 + $0x1a] sm:$0xff]
      %v3030 = vld [vmem:[%s2566 + $0x22] sm:$0xff]
      %v3031 = vld [vmem:[%s2566 + $0x32] sm:$0xff]
      %v3032 = vld [vmem:[%s2566 + $0x3a] sm:$0xff]
      %v3033 = vld [vmem:[%s2566 + $0x4a] sm:$0xff]
      %v3034 = vld [vmem:[%s2566 + $0x52] sm:$0xff]
      %v3035 = vld [vmem:[%s2566 + $0x62] sm:$0xff]
      %v3036 = vld [vmem:[%s2566 + $0x6a] sm:$0xff]
      %v3037 = vld [vmem:[%s2566 + $0x7a] sm:$0xff]
      %v3038 = vld [vmem:[%s2566 + $0x82] sm:$0xff]
      %v3039 = vld [vmem:[%s2566 + $0x92] sm:$0xff]
      %v3040 = vld [vmem:[%s2566 + $0x9a] sm:$0xff]
      %v3041 = vld [vmem:[%s2566 + $0xaa] sm:$0xff]
      %v3042 = vld [vmem:[%s2566 + $0xb2] sm:$0xff]
      %s3043 = scalar_lea.vmem %s7, 16
      %v3044 = vld [vmem:[%s3043] sm:$0x3]
      %v3046 = vsel %vm1172, %v3027, 0
      %v3049 = vsel %vm1172, %v3028, 0
      %v3052 = vsel %vm1172, %v3029, 0
      %v3055 = vsel %vm1172, %v3030, 0
      %v3058 = vsel %vm1172, %v3031, 0
      %v3061 = vsel %vm1172, %v3032, 0
      %v3064 = vsel %vm1172, %v3033, 0
      %v3067 = vsel %vm1172, %v3034, 0
      %v3070 = vsel %vm1172, %v3035, 0
      %v3073 = vsel %vm1172, %v3036, 0
      %v3076 = vsel %vm1172, %v3037, 0
      %v3079 = vsel %vm1172, %v3038, 0
      %v3082 = vsel %vm1172, %v3039, 0
      %v3085 = vsel %vm1172, %v3040, 0
      %v3088 = vsel %vm1172, %v3041, 0
      %v3091 = vsel %vm1172, %v3042, 0
      %v3094 = vsel %vm1301, %v3044, 0
      %3096 = vmatprep.subr.mxu0 0.0
      %3097 = vmatpush1.msra.mxu0 %v3094
      %3098 = vmatprep.subr.mxu0 0.0
      %3099 = vmatpush1.msra.mxu0 0.0
      %3100 = vmatprep.subr.mxu0 0.0
      %3101 = vmatpush1.msra.mxu0 0.0
      %3102 = vmatprep.subr.mxu0 0.0
      %3103 = vmatpush1.msra.mxu0 0.0
      %3104 = vmatprep.subr.mxu0 0.0
      %3105 = vmatpush1.msra.mxu0 0.0
      %3106 = vmatprep.subr.mxu0 0.0
      %3107 = vmatpush1.msra.mxu0 0.0
      %3108 = vmatprep.subr.mxu0 0.0
      %3109 = vmatpush1.msra.mxu0 0.0
      %3110 = vmatprep.subr.mxu0 0.0
      %3111 = vmatpush1.msra.mxu0 0.0
      %3112 = vmatprep.subr.mxu0 0.0
      %3113 = vmatpush1.msra.mxu0 0.0
      %3114 = vmatprep.subr.mxu0 0.0
      %3115 = vmatpush1.msra.mxu0 0.0
      %3116 = vmatprep.subr.mxu0 0.0
      %3117 = vmatpush1.msra.mxu0 0.0
      %3118 = vmatprep.subr.mxu0 0.0
      %3119 = vmatpush1.msra.mxu0 0.0
      %3120 = vmatprep.subr.mxu0 0.0
      %3121 = vmatpush1.msra.mxu0 0.0
      %3122 = vmatprep.subr.mxu0 0.0
      %3123 = vmatpush1.msra.mxu0 0.0
      %3124 = vmatprep.subr.mxu0 0.0
      %3125 = vmatpush1.msra.mxu0 0.0
      %3126 = vmatprep.subr.mxu0 0.0
      %3127 = vmatpush1.msra.mxu0 0.0
      %3128 = vmatprep.subr.mxu0 0.0
      %3129 = vmatpush1.msra.mxu0 0.0
      %3130 = vmatprep.subr.mxu0 0.0
      %3131 = vmatpush1.msra.mxu0 0.0
      %3132 = vmatprep.subr.mxu0 0.0
      %3133 = vmatpush1.msra.mxu0 0.0
      %3134 = vmatprep.subr.mxu0 0.0
      %3135 = vmatpush1.msra.mxu0 0.0
      %3136 = vmatprep.subr.mxu0 0.0
      %3137 = vmatpush1.msra.mxu0 0.0
      %3138 = vmatprep.subr.mxu0 0.0
      %3139 = vmatpush1.msra.mxu0 0.0
      %3140 = vmatprep.subr.mxu0 0.0
      %3141 = vmatpush1.msra.mxu0 0.0
      %3142 = vmatprep.subr.mxu0 0.0
      %3143 = vmatpush1.msra.mxu0 0.0
      %3144 = vmatprep.subr.mxu0 0.0
      %3145 = vmatpush1.msra.mxu0 0.0
      %3146 = vmatprep.subr.mxu0 0.0
      %3147 = vmatpush1.msra.mxu0 0.0
      %3148 = vmatprep.subr.mxu0 0.0
      %3149 = vmatpush1.msra.mxu0 0.0
      %3150 = vmatprep.subr.mxu0 0.0
      %3151 = vmatpush1.msra.mxu0 0.0
      %3152 = vmatprep.subr.mxu0 0.0
      %3153 = vmatpush1.msra.mxu0 0.0
      %3154 = vmatprep.subr.mxu0 0.0
      %3155 = vmatpush1.msra.mxu0 0.0
      %3156 = vmatprep.subr.mxu0 0.0
      %3157 = vmatpush1.msra.mxu0 0.0
      %3158 = vmatprep.subr.mxu0 0.0
      %3159 = vmatpush1.msra.mxu0 0.0
      %3160 = vmatprep.mubr.f32.mxu0 0.0
      %3161 = vmatmul.mubr.f32.gmra.mrb[0].mxu0 %v3046
      %v3162 = vpop.f32.mrb[0].mxu0
      %v3163 = vadd.f32 0.0, %v3162
      %v3164 = vpop.f32.mrb[0].mxu0
      %3165 = vmatprep.mubr.f32.mxu0 0.0
      %3166 = vmatmul.mubr.f32.gmra.mrb[0].mxu0 %v3049
      %v3167 = vpop.f32.mrb[0].mxu0
      %v3168 = vadd.f32 0.0, %v3167
      %v3169 = vpop.f32.mrb[0].mxu0
      %3170 = vmatprep.mubr.f32.mxu0 0.0
      %3171 = vmatmul.mubr.f32.gmra.mrb[0].mxu0 %v3052
      %v3172 = vpop.f32.mrb[0].mxu0
      %v3173 = vadd.f32 0.0, %v3172
      %v3174 = vpop.f32.mrb[0].mxu0
      %3175 = vmatprep.mubr.f32.mxu0 0.0
      %3176 = vmatmul.mubr.f32.gmra.mrb[0].mxu0 %v3055
      %v3177 = vpop.f32.mrb[0].mxu0
      %v3178 = vadd.f32 0.0, %v3177
      %v3179 = vpop.f32.mrb[0].mxu0
      %3180 = vmatprep.mubr.f32.mxu0 0.0
      %3181 = vmatmul.mubr.f32.gmra.mrb[0].mxu0 %v3058
      %v3182 = vpop.f32.mrb[0].mxu0
      %v3183 = vadd.f32 0.0, %v3182
      %v3184 = vpop.f32.mrb[0].mxu0
      %3185 = vmatprep.mubr.f32.mxu0 0.0
      %3186 = vmatmul.mubr.f32.gmra.mrb[0].mxu0 %v3061
      %v3187 = vpop.f32.mrb[0].mxu0
      %v3188 = vadd.f32 0.0, %v3187
      %v3189 = vpop.f32.mrb[0].mxu0
      %3190 = vmatprep.mubr.f32.mxu0 0.0
      %3191 = vmatmul.mubr.f32.gmra.mrb[0].mxu0 %v3064
      %v3192 = vpop.f32.mrb[0].mxu0
      %v3193 = vadd.f32 0.0, %v3192
      %v3194 = vpop.f32.mrb[0].mxu0
      %3195 = vmatprep.mubr.f32.mxu0 0.0
      %3196 = vmatmul.mubr.f32.gmra.mrb[0].mxu0 %v3067
      %v3197 = vpop.f32.mrb[0].mxu0
      %v3198 = vadd.f32 0.0, %v3197
      %v3199 = vpop.f32.mrb[0].mxu0
      %3200 = vmatprep.mubr.f32.mxu0 0.0
      %3201 = vmatmul.mubr.f32.gmra.mrb[0].mxu0 %v3070
      %v3202 = vpop.f32.mrb[0].mxu0
      %v3203 = vadd.f32 0.0, %v3202
      %v3204 = vpop.f32.mrb[0].mxu0
      %3205 = vmatprep.mubr.f32.mxu0 0.0
      %3206 = vmatmul.mubr.f32.gmra.mrb[0].mxu0 %v3073
      %v3207 = vpop.f32.mrb[0].mxu0
      %v3208 = vadd.f32 0.0, %v3207
      %v3209 = vpop.f32.mrb[0].mxu0
      %3210 = vmatprep.mubr.f32.mxu0 0.0
      %3211 = vmatmul.mubr.f32.gmra.mrb[0].mxu0 %v3076
      %v3212 = vpop.f32.mrb[0].mxu0
      %v3213 = vadd.f32 0.0, %v3212
      %v3214 = vpop.f32.mrb[0].mxu0
      %3215 = vmatprep.mubr.f32.mxu0 0.0
      %3216 = vmatmul.mubr.f32.gmra.mrb[0].mxu0 %v3079
      %v3217 = vpop.f32.mrb[0].mxu0
      %v3218 = vadd.f32 0.0, %v3217
      %v3219 = vpop.f32.mrb[0].mxu0
      %3220 = vmatprep.mubr.f32.mxu0 0.0
      %3221 = vmatmul.mubr.f32.gmra.mrb[0].mxu0 %v3082
      %v3222 = vpop.f32.mrb[0].mxu0
      %v3223 = vadd.f32 0.0, %v3222
      %v3224 = vpop.f32.mrb[0].mxu0
      %3225 = vmatprep.mubr.f32.mxu0 0.0
      %3226 = vmatmul.mubr.f32.gmra.mrb[0].mxu0 %v3085
      %v3227 = vpop.f32.mrb[0].mxu0
      %v3228 = vadd.f32 0.0, %v3227
      %v3229 = vpop.f32.mrb[0].mxu0
      %3230 = vmatprep.mubr.f32.mxu0 0.0
      %3231 = vmatmul.mubr.f32.gmra.mrb[0].mxu0 %v3088
      %v3232 = vpop.f32.mrb[0].mxu0
      %v3233 = vadd.f32 0.0, %v3232
      %v3234 = vpop.f32.mrb[0].mxu0
      %3235 = vmatprep.mubr.f32.mxu0 0.0
      %3236 = vmatmul.mubr.f32.gmra.mrb[0].mxu0 %v3091
      %v3237 = vpop.f32.mrb[0].mxu0
      %v3238 = vadd.f32 0.0, %v3237
      %v3239 = vpop.f32.mrb[0].mxu0
      %3240 = vdwg.mxu0
      %v3241 = vadd.f32 %v3011, %v3163
      %v3242 = vadd.f32 %v3012, %v3168
      %v3243 = vadd.f32 %v3013, %v3173
      %v3244 = vadd.f32 %v3014, %v3178
      %v3245 = vadd.f32 %v3015, %v3183
      %v3246 = vadd.f32 %v3016, %v3188
      %v3247 = vadd.f32 %v3017, %v3193
      %v3248 = vadd.f32 %v3018, %v3198
      %v3249 = vadd.f32 %v3019, %v3203
      %v3250 = vadd.f32 %v3020, %v3208
      %v3251 = vadd.f32 %v3021, %v3213
      %v3252 = vadd.f32 %v3022, %v3218
      %v3253 = vadd.f32 %v3023, %v3223
      %v3254 = vadd.f32 %v3024, %v3228
      %v3255 = vadd.f32 %v3025, %v3233
      %v3256 = vadd.f32 %v3026, %v3238
      %v3257 = vld [vmem:[%s8] sm:$0x1]
      %v3259 = vlaneseq
      %v3260 = vshrl.u32 %v3259, 7
      %v3261 = vsub.s32 0, %v3260
      %v3262 = vrot.slane %v3257, %v3261
      %v3264 = vadd.f32 %v3241, %v3262
      %v3265 = vadd.f32 %v3242, %v3262
      %v3266 = vadd.f32 %v3243, %v3262
      %v3267 = vadd.f32 %v3244, %v3262
      %v3268 = vadd.f32 %v3245, %v3262
      %v3269 = vadd.f32 %v3246, %v3262
      %v3270 = vadd.f32 %v3247, %v3262
      %v3271 = vadd.f32 %v3248, %v3262
      %v3272 = vadd.f32 %v3249, %v3262
      %v3273 = vadd.f32 %v3250, %v3262
      %v3274 = vadd.f32 %v3251, %v3262
      %v3275 = vadd.f32 %v3252, %v3262
      %v3276 = vadd.f32 %v3253, %v3262
      %v3277 = vadd.f32 %v3254, %v3262
      %v3278 = vadd.f32 %v3255, %v3262
      %v3279 = vadd.f32 %v3256, %v3262
      %v3280 = vld [vmem:[%s9] sm:$0x3]
      %v3281 = vld [vmem:[%s10] sm:$0x1]
      %v3283 = vlaneseq
      %v3284 = vshrl.u32 %v3283, 7
      %v3285 = vsub.s32 0, %v3284
      %v3286 = vrot.slane %v3281, %v3285
      %v3289 = vsel %vm1172, %v3264, 0
      %v3292 = vsel %vm1172, %v3265, 0
      %v3295 = vsel %vm1172, %v3266, 0
      %v3298 = vsel %vm1172, %v3267, 0
      %v3301 = vsel %vm1172, %v3268, 0
      %v3304 = vsel %vm1172, %v3269, 0
      %v3307 = vsel %vm1172, %v3270, 0
      %v3310 = vsel %vm1172, %v3271, 0
      %v3313 = vsel %vm1172, %v3272, 0
      %v3316 = vsel %vm1172, %v3273, 0
      %v3319 = vsel %vm1172, %v3274, 0
      %v3322 = vsel %vm1172, %v3275, 0
      %v3325 = vsel %vm1172, %v3276, 0
      %v3328 = vsel %vm1172, %v3277, 0
      %v3331 = vsel %vm1172, %v3278, 0
      %v3334 = vsel %vm1172, %v3279, 0
      %v3337 = vsel %vm1301, %v3280, 0
      %3339 = vmatprep.subr.mxu0 0.0
      %3340 = vmatpush1.msra.mxu0 %v3337
      %3341 = vmatprep.subr.mxu0 0.0
      %3342 = vmatpush1.msra.mxu0 0.0
      %3343 = vmatprep.subr.mxu0 0.0
      %3344 = vmatpush1.msra.mxu0 0.0
      %3345 = vmatprep.subr.mxu0 0.0
      %3346 = vmatpush1.msra.mxu0 0.0
      %3347 = vmatprep.subr.mxu0 0.0
      %3348 = vmatpush1.msra.mxu0 0.0
      %3349 = vmatprep.subr.mxu0 0.0
      %3350 = vmatpush1.msra.mxu0 0.0
      %3351 = vmatprep.subr.mxu0 0.0
      %3352 = vmatpush1.msra.mxu0 0.0
      %3353 = vmatprep.subr.mxu0 0.0
      %3354 = vmatpush1.msra.mxu0 0.0
      %3355 = vmatprep.subr.mxu0 0.0
      %3356 = vmatpush1.msra.mxu0 0.0
      %3357 = vmatprep.subr.mxu0 0.0
      %3358 = vmatpush1.msra.mxu0 0.0
      %3359 = vmatprep.subr.mxu0 0.0
      %3360 = vmatpush1.msra.mxu0 0.0
      %3361 = vmatprep.subr.mxu0 0.0
      %3362 = vmatpush1.msra.mxu0 0.0
      %3363 = vmatprep.subr.mxu0 0.0
      %3364 = vmatpush1.msra.mxu0 0.0
      %3365 = vmatprep.subr.mxu0 0.0
      %3366 = vmatpush1.msra.mxu0 0.0
      %3367 = vmatprep.subr.mxu0 0.0
      %3368 = vmatpush1.msra.mxu0 0.0
      %3369 = vmatprep.subr.mxu0 0.0
      %3370 = vmatpush1.msra.mxu0 0.0
      %3371 = vmatprep.subr.mxu0 0.0
      %3372 = vmatpush1.msra.mxu0 0.0
      %3373 = vmatprep.subr.mxu0 0.0
      %3374 = vmatpush1.msra.mxu0 0.0
      %3375 = vmatprep.subr.mxu0 0.0
      %3376 = vmatpush1.msra.mxu0 0.0
      %3377 = vmatprep.subr.mxu0 0.0
      %3378 = vmatpush1.msra.mxu0 0.0
      %3379 = vmatprep.subr.mxu0 0.0
      %3380 = vmatpush1.msra.mxu0 0.0
      %3381 = vmatprep.subr.mxu0 0.0
      %3382 = vmatpush1.msra.mxu0 0.0
      %3383 = vmatprep.subr.mxu0 0.0
      %3384 = vmatpush1.msra.mxu0 0.0
      %3385 = vmatprep.subr.mxu0 0.0
      %3386 = vmatpush1.msra.mxu0 0.0
      %3387 = vmatprep.subr.mxu0 0.0
      %3388 = vmatpush1.msra.mxu0 0.0
      %3389 = vmatprep.subr.mxu0 0.0
      %3390 = vmatpush1.msra.mxu0 0.0
      %3391 = vmatprep.subr.mxu0 0.0
      %3392 = vmatpush1.msra.mxu0 0.0
      %3393 = vmatprep.subr.mxu0 0.0
      %3394 = vmatpush1.msra.mxu0 0.0
      %3395 = vmatprep.subr.mxu0 0.0
      %3396 = vmatpush1.msra.mxu0 0.0
      %3397 = vmatprep.subr.mxu0 0.0
      %3398 = vmatpush1.msra.mxu0 0.0
      %3399 = vmatprep.subr.mxu0 0.0
      %3400 = vmatpush1.msra.mxu0 0.0
      %3401 = vmatprep.subr.mxu0 0.0
      %3402 = vmatpush1.msra.mxu0 0.0
      %3403 = vmatprep.mubr.f32.mxu0 0.0
      %3404 = vmatmul.mubr.f32.gmra.mrb[0].mxu0 %v3289
      %v3405 = vpop.f32.mrb[0].mxu0
      %v3406 = vadd.f32 %v3286, %v3405
      %v3407 = vpop.f32.mrb[0].mxu0
      %3408 = vmatprep.mubr.f32.mxu0 0.0
      %3409 = vmatmul.mubr.f32.gmra.mrb[0].mxu0 %v3292
      %v3410 = vpop.f32.mrb[0].mxu0
      %v3411 = vadd.f32 %v3286, %v3410
      %v3412 = vpop.f32.mrb[0].mxu0
      %3413 = vmatprep.mubr.f32.mxu0 0.0
      %3414 = vmatmul.mubr.f32.gmra.mrb[0].mxu0 %v3295
      %v3415 = vpop.f32.mrb[0].mxu0
      %v3416 = vadd.f32 %v3286, %v3415
      %v3417 = vpop.f32.mrb[0].mxu0
      %3418 = vmatprep.mubr.f32.mxu0 0.0
      %3419 = vmatmul.mubr.f32.gmra.mrb[0].mxu0 %v3298
      %v3420 = vpop.f32.mrb[0].mxu0
      %v3421 = vadd.f32 %v3286, %v3420
      %v3422 = vpop.f32.mrb[0].mxu0
      %3423 = vmatprep.mubr.f32.mxu0 0.0
      %3424 = vmatmul.mubr.f32.gmra.mrb[0].mxu0 %v3301
      %v3425 = vpop.f32.mrb[0].mxu0
      %v3426 = vadd.f32 %v3286, %v3425
      %v3427 = vpop.f32.mrb[0].mxu0
      %3428 = vmatprep.mubr.f32.mxu0 0.0
      %3429 = vmatmul.mubr.f32.gmra.mrb[0].mxu0 %v3304
      %v3430 = vpop.f32.mrb[0].mxu0
      %v3431 = vadd.f32 %v3286, %v3430
      %v3432 = vpop.f32.mrb[0].mxu0
      %3433 = vmatprep.mubr.f32.mxu0 0.0
      %3434 = vmatmul.mubr.f32.gmra.mrb[0].mxu0 %v3307
      %v3435 = vpop.f32.mrb[0].mxu0
      %v3436 = vadd.f32 %v3286, %v3435
      %v3437 = vpop.f32.mrb[0].mxu0
      %3438 = vmatprep.mubr.f32.mxu0 0.0
      %3439 = vmatmul.mubr.f32.gmra.mrb[0].mxu0 %v3310
      %v3440 = vpop.f32.mrb[0].mxu0
      %v3441 = vadd.f32 %v3286, %v3440
      %v3442 = vpop.f32.mrb[0].mxu0
      %3443 = vmatprep.mubr.f32.mxu0 0.0
      %3444 = vmatmul.mubr.f32.gmra.mrb[0].mxu0 %v3313
      %v3445 = vpop.f32.mrb[0].mxu0
      %v3446 = vadd.f32 %v3286, %v3445
      %v3447 = vpop.f32.mrb[0].mxu0
      %3448 = vmatprep.mubr.f32.mxu0 0.0
      %3449 = vmatmul.mubr.f32.gmra.mrb[0].mxu0 %v3316
      %v3450 = vpop.f32.mrb[0].mxu0
      %v3451 = vadd.f32 %v3286, %v3450
      %v3452 = vpop.f32.mrb[0].mxu0
      %3453 = vmatprep.mubr.f32.mxu0 0.0
      %3454 = vmatmul.mubr.f32.gmra.mrb[0].mxu0 %v3319
      %v3455 = vpop.f32.mrb[0].mxu0
      %v3456 = vadd.f32 %v3286, %v3455
      %v3457 = vpop.f32.mrb[0].mxu0
      %3458 = vmatprep.mubr.f32.mxu0 0.0
      %3459 = vmatmul.mubr.f32.gmra.mrb[0].mxu0 %v3322
      %v3460 = vpop.f32.mrb[0].mxu0
      %v3461 = vadd.f32 %v3286, %v3460
      %v3462 = vpop.f32.mrb[0].mxu0
      %3463 = vmatprep.mubr.f32.mxu0 0.0
      %3464 = vmatmul.mubr.f32.gmra.mrb[0].mxu0 %v3325
      %v3465 = vpop.f32.mrb[0].mxu0
      %v3466 = vadd.f32 %v3286, %v3465
      %v3467 = vpop.f32.mrb[0].mxu0
      %3468 = vmatprep.mubr.f32.mxu0 0.0
      %3469 = vmatmul.mubr.f32.gmra.mrb[0].mxu0 %v3328
      %v3470 = vpop.f32.mrb[0].mxu0
      %v3471 = vadd.f32 %v3286, %v3470
      %v3472 = vpop.f32.mrb[0].mxu0
      %3473 = vmatprep.mubr.f32.mxu0 0.0
      %3474 = vmatmul.mubr.f32.gmra.mrb[0].mxu0 %v3331
      %v3475 = vpop.f32.mrb[0].mxu0
      %v3476 = vadd.f32 %v3286, %v3475
      %v3477 = vpop.f32.mrb[0].mxu0
      %3478 = vmatprep.mubr.f32.mxu0 0.0
      %3479 = vmatmul.mubr.f32.gmra.mrb[0].mxu0 %v3334
      %v3480 = vpop.f32.mrb[0].mxu0
      %v3481 = vadd.f32 %v3286, %v3480
      %v3482 = vpop.f32.mrb[0].mxu0
      %3483 = vdwg.mxu0
      %v3484 = vadd.f32 %v3406, %v554
      %v3485 = vadd.f32 %v3411, %v555
      %v3486 = vadd.f32 %v3416, %v556
      %v3487 = vadd.f32 %v3421, %v557
      %v3488 = vadd.f32 %v3426, %v558
      %v3489 = vadd.f32 %v3431, %v559
      %v3490 = vadd.f32 %v3436, %v560
      %v3491 = vadd.f32 %v3441, %v561
      %v3492 = vadd.f32 %v3446, %v562
      %v3493 = vadd.f32 %v3451, %v563
      %v3494 = vadd.f32 %v3456, %v564
      %v3495 = vadd.f32 %v3461, %v565
      %v3496 = vadd.f32 %v3466, %v566
      %v3497 = vadd.f32 %v3471, %v567
      %v3498 = vadd.f32 %v3476, %v568
      %v3499 = vadd.f32 %v3481, %v569
      %3500 = vst.msk [vmem:[%s536] sm:$0xff] %vm573, %v3484
      %3501 = vst.msk [vmem:[%s536 + $0x8] sm:$0xff] %vm573, %v3485
      %3502 = vst.msk [vmem:[%s536 + $0x10] sm:$0xff] %vm573, %v3486
      %3503 = vst.msk [vmem:[%s536 + $0x18] sm:$0xff] %vm573, %v3487
      %3504 = vst.msk [vmem:[%s536 + $0x20] sm:$0xff] %vm573, %v3488
      %3505 = vst.msk [vmem:[%s536 + $0x28] sm:$0xff] %vm573, %v3489
      %3506 = vst.msk [vmem:[%s536 + $0x30] sm:$0xff] %vm573, %v3490
      %3507 = vst.msk [vmem:[%s536 + $0x38] sm:$0xff] %vm573, %v3491
      %3508 = vst.msk [vmem:[%s536 + $0x40] sm:$0xff] %vm573, %v3492
      %3509 = vst.msk [vmem:[%s536 + $0x48] sm:$0xff] %vm573, %v3493
      %3510 = vst.msk [vmem:[%s536 + $0x50] sm:$0xff] %vm573, %v3494
      %3511 = vst.msk [vmem:[%s536 + $0x58] sm:$0xff] %vm573, %v3495
      %3512 = vst.msk [vmem:[%s536 + $0x60] sm:$0xff] %vm573, %v3496
      %3513 = vst.msk [vmem:[%s536 + $0x68] sm:$0xff] %vm573, %v3497
      %3514 = vst.msk [vmem:[%s536 + $0x70] sm:$0xff] %vm573, %v3498
      %3515 = vst.msk [vmem:[%s536 + $0x78] sm:$0xff] %vm573, %v3499
      %s3516 = smul.u32 8, %s27
      %p3517 = scmp.lt.s32.totalorder %s26, 1
      %s3518 = scalar_select %p3517, %s26, 1
      %p3519 = scmp.lt.s32.totalorder %s3516, 15
      %s3520 = scalar_select %p3519, %s3516, 15
      %s3521 = smul.addr %s3520, 2
      %s3522 = smul.addr %s3518, 32
      %s3523 = sadd.s32 %s3521, %s3522
      %s3524 = smul.addr %s3523, 8
      %s3525 = scalar_lea.vmem %s11, %s3524
      // Predicated region
      $region69: #{skip_horizontal_connection.1} parent=63 // pred_check
        %p3526 = pneg %p313
      $region70: #{skip_horizontal_connection.1} parent=63 // pred_check_branch
        %3528 = sbr.rel (%p3526) target = $region72
      $region71: #{skip_horizontal_connection.1} parent=63 // pred_region
        %s3529 = smul.u32 8, %s27
      $region72: #{skip_horizontal_connection.1} parent=63 // pred_fallthru
        _
    $region64: #{skip_horizontal_connection.1} parent=5 // pred_fallthru
      _
    %p3530 = scmp.le.s32.totalorder 2, %s17
    // Predicated region
    $region73: #{skip_horizontal_connection.1} parent=5 // pred_check
      %p3531 = pneg %p3530
    $region74: #{skip_horizontal_connection.1} parent=5 // pred_check_branch
      %3533 = sbr.rel (%p3531) target = $region76
    $region75: #{skip_horizontal_connection.1} parent=5 // pred_region
      %s3534 = ssub.s32 %s17, 2
      // Predicated region
      $region77: #{skip_horizontal_connection.1} parent=75 // pred_check
        %p3535 = pneg %p319
      $region78: #{skip_horizontal_connection.1} parent=75 // pred_check_branch
        %3537 = sbr.rel (%p3535) target = $region80
      $region79: #{skip_horizontal_connection.1} parent=75 // pred_region
        %s3538 = smul.u32 8, %s29
        %p3539 = scmp.lt.s32.totalorder %s28, 1
        %s3540 = scalar_select %p3539, %s28, 1
        %p3541 = scmp.lt.s32.totalorder %s3538, 15
        %s3542 = scalar_select %p3541, %s3538, 15
        %s3543 = smul.addr %s3542, 2
        %s3544 = smul.addr %s3540, 32
        %s3545 = sadd.s32 %s3543, %s3544
        %s3546 = smul.addr %s3545, 8
        %s3547 = scalar_lea.vmem %s11, %s3546
      $region80: #{skip_horizontal_connection.1} parent=75 // pred_fallthru
        _
    $region76: #{skip_horizontal_connection.1} parent=5 // pred_fallthru
      _
  $region6: #{skip_horizontal_connection.1} parent=0 // loop_footer
    %s21 = sadd.s32 1, %s17
  $region7: #{skip_horizontal_connection.1} parent=0 // loop_footer_branch
    %16 = sbr.rel target = $region3
  $region8: #{skip_horizontal_connection.1} parent=0 // loop_exit
    _

</llo_original>
